<compile_context>
chip_gen: v6e
topology: v6e:2x2x1
jax: 0.10.0
libtpu: 0.0.40
codegen_flags: <defaults>
</compile_context>

<pallas_src>
import functools

import jax
import jax.numpy as jnp
from jax.experimental import pallas as pl
from jax.experimental.pallas import tpu as pltpu


# ----------------------------------------------------------------------------
# Chip-aware budgets
# ----------------------------------------------------------------------------
def _vmem_capacity_bytes():
    try:
        return int(pltpu.get_tpu_info().vmem_capacity_bytes)
    except Exception:
        return 128 * 1024 * 1024  # v5e/v6e default; v7x reports 64 MiB itself.


def _chip_budgets():
    """(vmem_limit_bytes, per-tile byte target) derived from physical VMEM."""
    cap = _vmem_capacity_bytes()
    if cap >= 100 * 1024 * 1024:           # v5e / v6e (128 MiB VMEM)
        return 64 * 1024 * 1024, 8 * 1024 * 1024
    return min(32 * 1024 * 1024, cap // 2), 4 * 1024 * 1024   # v7x (64 MiB VMEM)


def _choose_c_blk(n_cls, bytes_per_class, tile_target_bytes):
    """Largest class block whose dominant tile is <= tile_target_bytes, clamped
    so the grid has >=2 blocks when n_cls > 1 (lets v7x's 2 TCs both work)."""
    c_blk = max(1, int(tile_target_bytes // max(bytes_per_class, 1)))
    c_blk = min(c_blk, n_cls)
    if n_cls > 1:
        c_blk = min(c_blk, pl.cdiv(n_cls, 2))
    return int(c_blk)


# ----------------------------------------------------------------------------
# Path A: assemble prompts from the module's stored buffers (prefix/ctx/suffix)
# ----------------------------------------------------------------------------
def _assemble_kernel(prefix_ref, ctx_ref, suffix_ref, out_ref):
    # prefix_ref : (C_BLK, 1,     D)
    # ctx_ref    : (n_ctx, D)        -- constant index_map, DMA'd once per core
    # suffix_ref : (C_BLK, n_suf, D)
    # out_ref    : (C_BLK, seq,   D)
    dtype = out_ref.dtype
    c_blk = out_ref.shape[0]
    n_ctx, d = ctx_ref.shape
    # Three direct sliced stores: no jnp.concatenate, so no (C_BLK, seq, D)
    # VMEM temp and no extra VMEM->VMEM pass.  The seams at rows 1 and 1+n_ctx
    # are masked stores either way (seq is not sublane-aligned).
    out_ref[:, 0:1, :] = prefix_ref[...].astype(dtype)
    out_ref[:, 1:1 + n_ctx, :] = jnp.broadcast_to(
        ctx_ref[...].astype(dtype)[None, :, :], (c_blk, n_ctx, d))
    out_ref[:, 1 + n_ctx:, :] = suffix_ref[...].astype(dtype)


def prompt_learner_forward(token_prefix, ctx, token_suffix,
                           min_bytes_for_pallas=2 << 20):
    """prompts[c] = [prefix[c]; ctx; suffix[c]]  (class_token_position='end')."""
    n_cls, one, ctx_dim = token_prefix.shape
    assert one == 1
    n_ctx, d2 = ctx.shape
    assert d2 == ctx_dim
    n_cls2, n_suf, d3 = token_suffix.shape
    assert n_cls2 == n_cls and d3 == ctx_dim
    seq_len = 1 + n_ctx + n_suf
    dtype = token_prefix.dtype
    itemsize = jnp.dtype(dtype).itemsize

    out_bytes = n_cls * seq_len * ctx_dim * itemsize
    if out_bytes < min_bytes_for_pallas:
        # Tiny problem: pallas_call launch overhead exceeds the copy cost and
        # (without aliasing) this path is at best parity with XLA's concat.
        ctx_b = jnp.broadcast_to(ctx.astype(dtype)[None], (n_cls, n_ctx, ctx_dim))
        return jnp.concatenate([token_prefix, ctx_b, token_suffix], axis=1)

    vmem_limit, tile_target = _chip_budgets()
    c_blk = _choose_c_blk(n_cls, seq_len * ctx_dim * itemsize, tile_target)
    # Non-divisible n_cls is handled by Pallas's boundary block (OOB reads are
    # unused garbage, OOB writes are dropped) -- no jnp.pad, no output slice.
    grid = (pl.cdiv(n_cls, c_blk),)

    return pl.pallas_call(
        _assemble_kernel,
        out_shape=jax.ShapeDtypeStruct((n_cls, seq_len, ctx_dim), dtype),
        grid_spec=pltpu.PrefetchScalarGridSpec(
            num_scalar_prefetch=0,
            grid=grid,
            in_specs=[
                pl.BlockSpec((c_blk, 1, ctx_dim), lambda i: (i, 0, 0)),
                # Shared ctx: constant index_map -> stays resident in VMEM.
                pl.BlockSpec((n_ctx, ctx_dim), lambda i: (0, 0)),
                pl.BlockSpec((c_blk, n_suf, ctx_dim), lambda i: (i, 0, 0)),
            ],
            out_specs=pl.BlockSpec((c_blk, seq_len, ctx_dim), lambda i: (i, 0, 0)),
        ),
        compiler_params=pltpu.CompilerParams(
            dimension_semantics=("parallel",),
            vmem_limit_bytes=vmem_limit,
        ),
    )(token_prefix, ctx, token_suffix)


# ----------------------------------------------------------------------------
# Path B (preferred): in-place ctx overwrite of the aliased frozen embedding.
# Writes only the n_ctx rows per class (plus the ctx read) instead of all
# seq_len rows -> ~5-10x less HBM traffic.
# ----------------------------------------------------------------------------
def _ctx_write_kernel(n_cls, emb_ref, ctx_ref, out_ref, stage_ref, sem):
    # emb_ref   : (n_cls, seq, D) HBM -- same buffer as out_ref (aliased); the
    #             prefix/suffix rows are already in place and never touched.
    # ctx_ref   : (n_ctx, D) VMEM  -- constant index_map, DMA'd once per core
    # out_ref   : (n_cls, seq, D) HBM (memory_space=ANY, manual DMA)
    # stage_ref : (c_blk, n_ctx, D) VMEM staging buffer
    del emb_ref
    c_blk, n_ctx, _ = stage_ref.shape
    # Fill the staging block unconditionally (not pl.when(pid == 0)) so a
    # megacore split of the "parallel" axis on v7x stays correct; the redundant
    # refills are ~0.5 us/step, well under the HBM DMA they feed.
    stage_ref[...] = jnp.broadcast_to(
        ctx_ref[...].astype(stage_ref.dtype)[None, :, :], stage_ref.shape)
    i = pl.program_id(0)
    # Clamp the last block's start so it stays in bounds; the overlapped
    # classes are rewritten with identical bytes (no pad, no output slice).
    c0 = jnp.minimum(i * c_blk, n_cls - c_blk)
    cp = pltpu.make_async_copy(
        stage_ref, out_ref.at[pl.ds(c0, c_blk), pl.ds(1, n_ctx)], sem)
    cp.start()
    cp.wait()


def prompt_learner_forward_inplace(embedding, ctx,
                                   min_ctx_bytes_for_pallas=256 * 1024):
    """prompts = embedding with rows [1, 1+n_ctx) replaced by the learned ctx.

    Semantically identical to prompt_learner_forward(embedding[:, :1], ctx,
    embedding[:, 1+n_ctx:]).  Use jax.jit(..., donate_argnums=(0,)) on the
    caller to make the update truly in place."""
    n_cls, seq_len, ctx_dim = embedding.shape
    n_ctx, d2 = ctx.shape
    assert d2 == ctx_dim and 1 + n_ctx <= seq_len
    dtype = embedding.dtype
    itemsize = jnp.dtype(dtype).itemsize
    ctx_bytes = n_cls * n_ctx * ctx_dim * itemsize

    def _jnp_fallback():
        ctx_b = jnp.broadcast_to(ctx.astype(dtype)[None], (n_cls, n_ctx, ctx_dim))
        return embedding.at[:, 1:1 + n_ctx, :].set(ctx_b)

    if ctx_bytes < min_ctx_bytes_for_pallas:
        return _jnp_fallback()   # tiny: XLA's in-place dynamic-update-slice wins

    vmem_limit, tile_target = _chip_budgets()
    c_blk = _choose_c_blk(n_cls, n_ctx * ctx_dim * itemsize, tile_target)
    grid = (pl.cdiv(n_cls, c_blk),)

    call = pl.pallas_call(
        functools.partial(_ctx_write_kernel, n_cls),
        out_shape=jax.ShapeDtypeStruct((n_cls, seq_len, ctx_dim), dtype),
        grid_spec=pltpu.PrefetchScalarGridSpec(
            num_scalar_prefetch=0,
            grid=grid,
            in_specs=[
                pl.BlockSpec(memory_space=pl.ANY),                 # embedding (aliased)
                pl.BlockSpec((n_ctx, ctx_dim), lambda i: (0, 0)),  # ctx, VMEM resident
            ],
            out_specs=pl.BlockSpec(memory_space=pl.ANY),
            scratch_shapes=[
                pltpu.VMEM((c_blk, n_ctx, ctx_dim), dtype),
                pltpu.SemaphoreType.DMA(()),
            ],
        ),
        input_output_aliases={0: 0},
        compiler_params=pltpu.CompilerParams(
            dimension_semantics=("parallel",),
            vmem_limit_bytes=vmem_limit,
        ),
    )
    try:
        return call(embedding, ctx)
    except Exception:
        # TODO(synk): some Mosaic builds may reject HBM DMA windows that start at
        # a non-tile-aligned row offset (seq offset 1); fall back to XLA's
        # in-place dynamic-update-slice, which moves the same HBM bytes.
        return _jnp_fallback()


# ----------------------------------------------------------------------------
# Reference & demo
# ----------------------------------------------------------------------------
def _reference(token_prefix, ctx, token_suffix):
    n_cls = token_prefix.shape[0]
    dtype = token_prefix.dtype
    ctx_b = jnp.broadcast_to(ctx.astype(dtype)[None], (n_cls,) + ctx.shape)
    return jnp.concatenate([token_prefix, ctx_b, token_suffix], axis=1)


if __name__ == "__main__":
    key = jax.random.PRNGKey(0)
    k_ctx, k_emb, k_emb2 = jax.random.split(key, 3)

    # CLIP-like shapes: big enough (>2 MiB) to exercise the Pallas paths,
    # n_cls deliberately not a multiple of the class block (remainder path).
    n_cls, n_ctx, ctx_dim, seq_len = 37, 16, 512, 77
    n_suf = seq_len - 1 - n_ctx

    # nn.init.normal_(ctx_vectors, std=0.02) -- the learned parameter.
    ctx = (0.02 * jax.random.normal(k_ctx, (n_ctx, ctx_dim))).astype(jnp.float32)
    # Synthetic frozen token embeddings (stand-in for clip token_embedding).
    embedding = jax.random.normal(k_emb, (n_cls, seq_len, ctx_dim)).astype(jnp.float32)
    token_prefix = embedding[:, :1, :]             # (n_cls, 1, D)     SOS
    token_suffix = embedding[:, 1 + n_ctx:, :]     # (n_cls, n_suf, D) class + EOS

    ref = _reference(token_prefix, ctx, token_suffix)

    # --- Path A: assemble from the module's stored buffers (f32) ---
    prompts = jax.block_until_ready(
        prompt_learner_forward(token_prefix, ctx, token_suffix))
    assert prompts.shape == (n_cls, seq_len, ctx_dim), prompts.shape
    assert prompts.dtype == jnp.float32
    assert bool(jnp.array_equal(prompts, ref)), "assemble f32 mismatch"

    # --- Path B: in-place ctx overwrite of the aliased frozen embedding ---
    prompts_ip = jax.block_until_ready(prompt_learner_forward_inplace(embedding, ctx))
    assert prompts_ip.shape == (n_cls, seq_len, ctx_dim)
    assert bool(jnp.array_equal(prompts_ip, ref)), "in-place f32 mismatch"

    # --- bf16 embeddings with f32 learned ctx (dtype-cast path) ---
    emb_bf16 = jax.random.normal(k_emb2, (n_cls, seq_len, ctx_dim)).astype(jnp.bfloat16)
    pfx_bf16 = emb_bf16[:, :1, :]
    sfx_bf16 = emb_bf16[:, 1 + n_ctx:, :]
    ref_bf16 = _reference(pfx_bf16, ctx, sfx_bf16)

    p_bf16 = jax.block_until_ready(prompt_learner_forward(pfx_bf16, ctx, sfx_bf16))
    assert p_bf16.dtype == jnp.bfloat16
    assert bool(jnp.array_equal(p_bf16, ref_bf16)), "assemble bf16 mismatch"

    p_bf16_ip = jax.block_until_ready(prompt_learner_forward_inplace(emb_bf16, ctx))
    assert p_bf16_ip.dtype == jnp.bfloat16
    assert bool(jnp.array_equal(p_bf16_ip, ref_bf16)), "in-place bf16 mismatch"

    # --- tiny-problem fallback paths (pure XLA) ---
    small = jax.block_until_ready(
        prompt_learner_forward(token_prefix[:2], ctx, token_suffix[:2]))
    assert bool(jnp.array_equal(
        small, _reference(token_prefix[:2], ctx, token_suffix[:2])))

    print("KERNEL_OK")
</pallas_src>

<mosaic_0001>
module attributes {stable_mosaic.version = 11 : i64} {
  func.func @_assemble_kernel(%arg0: i32, %arg1: memref<19x1x512xf32, #tpu.memory_space<vmem>>, %arg2: memref<16x512xf32, #tpu.memory_space<vmem>>, %arg3: memref<19x60x512xf32, #tpu.memory_space<vmem>>, %arg4: memref<19x77x512xf32, #tpu.memory_space<vmem>>) attributes {dimension_semantics = [#tpu.dimension_semantics<parallel>], iteration_bounds = array<i64: 2>, scalar_prefetch = 0 : i64, scratch_operands = 0 : i64, tpu.core_type = #tpu.core_type<tc>, window_params = [{transform_indices = @transform_0, window_bounds = array<i64: 19, 1, 512>}, {pipeline_mode = #tpu.pipeline_mode<synchronous>, transform_indices = @transform_1, window_bounds = array<i64: 16, 512>}, {transform_indices = @transform_2, window_bounds = array<i64: 19, 60, 512>}, {transform_indices = @transform_3, window_bounds = array<i64: 19, 77, 512>}]} {
    %c0 = arith.constant 0 : index
    %c0_0 = arith.constant 0 : index
    %c0_1 = arith.constant 0 : index
    %0 = vector.load %arg1[%c0, %c0_0, %c0_1] : memref<19x1x512xf32, #tpu.memory_space<vmem>>, vector<19x1x512xf32>
    %c0_2 = arith.constant 0 : index
    %c0_3 = arith.constant 0 : index
    %c0_4 = arith.constant 0 : index
    %1 = vector.load %arg4[%c0_2, %c0_3, %c0_4] : memref<19x77x512xf32, #tpu.memory_space<vmem>>, vector<19x1x512xf32>
    tpu.vector_store %arg4[%c0_2, %c0_3, %c0_4], %0 {strides = array<i32>} : memref<19x77x512xf32, #tpu.memory_space<vmem>>, vector<19x1x512xf32>,
    %c0_5 = arith.constant 0 : index
    %c0_6 = arith.constant 0 : index
    %2 = vector.load %arg2[%c0_5, %c0_6] : memref<16x512xf32, #tpu.memory_space<vmem>>, vector<16x512xf32>
    %3 = vector.shape_cast %2 : vector<16x512xf32> to vector<1x16x512xf32>
    %4 = vector.shape_cast %3 : vector<1x16x512xf32> to vector<1x16x512xf32>
    %5 = vector.broadcast %4 : vector<1x16x512xf32> to vector<19x16x512xf32>
    %c0_7 = arith.constant 0 : index
    %c1 = arith.constant 1 : index
    %c0_8 = arith.constant 0 : index
    %6 = vector.load %arg4[%c0_7, %c1, %c0_8] : memref<19x77x512xf32, #tpu.memory_space<vmem>>, vector<19x16x512xf32>
    tpu.vector_store %arg4[%c0_7, %c1, %c0_8], %5 {strides = array<i32>} : memref<19x77x512xf32, #tpu.memory_space<vmem>>, vector<19x16x512xf32>,
    %c0_9 = arith.constant 0 : index
    %c0_10 = arith.constant 0 : index
    %c0_11 = arith.constant 0 : index
    %7 = vector.load %arg3[%c0_9, %c0_10, %c0_11] : memref<19x60x512xf32, #tpu.memory_space<vmem>>, vector<19x60x512xf32>
    %c0_12 = arith.constant 0 : index
    %c17 = arith.constant 17 : index
    %c0_13 = arith.constant 0 : index
    %8 = vector.load %arg4[%c0_12, %c17, %c0_13] : memref<19x77x512xf32, #tpu.memory_space<vmem>>, vector<19x60x512xf32>
    tpu.vector_store %arg4[%c0_12, %c17, %c0_13], %7 {strides = array<i32>} : memref<19x77x512xf32, #tpu.memory_space<vmem>>, vector<19x60x512xf32>,
    return
  }
  func.func @transform_0(%arg0: i32) -> (i32, i32, i32) {
    %c0_i32 = arith.constant 0 : i32
    %c0_i32_0 = arith.constant 0 : i32
    %c0_i32_1 = arith.constant 0 : i32
    return %arg0, %c0_i32, %c0_i32_0 : i32, i32, i32
  }
  func.func @transform_1(%arg0: i32) -> (i32, i32) {
    %c0_i32 = arith.constant 0 : i32
    %c0_i32_0 = arith.constant 0 : i32
    %c0_i32_1 = arith.constant 0 : i32
    return %c0_i32, %c0_i32_0 : i32, i32
  }
  func.func @transform_2(%arg0: i32) -> (i32, i32, i32) {
    %c0_i32 = arith.constant 0 : i32
    %c0_i32_0 = arith.constant 0 : i32
    %c0_i32_1 = arith.constant 0 : i32
    return %arg0, %c0_i32, %c0_i32_0 : i32, i32, i32
  }
  func.func @transform_3(%arg0: i32) -> (i32, i32, i32) {
    %c0_i32 = arith.constant 0 : i32
    %c0_i32_0 = arith.constant 0 : i32
    %c0_i32_1 = arith.constant 0 : i32
    return %arg0, %c0_i32, %c0_i32_0 : i32, i32, i32
  }
}

</mosaic_0001>

<llo_original>
// kernel: tpu_custom_call.1
$region0: #{tpu_custom_call.1}
  #allocation0 [shape = 'u32[]', space=smem, size = 0x4, offset = 0x4, fixed_abs, tag = 'smem constant byte address 0x4 - core index']
  #allocation1 [shape = 'u32[144,128]{1,0:T(1,128)}', space=vmem, size = 0x12000, scoped, tag = 'internal scratch']
  %s0 = inlined_call_operand.hbm [shape: f32[37,1,512], index: 0, kind: input, shape index: {}]
  %s1 = inlined_call_operand.hbm [shape: f32[16,512], index: 1, kind: input, shape index: {}]
  %s2 = inlined_call_operand.hbm [shape: f32[37,60,512], index: 2, kind: input, shape index: {}]
  %s3 = inlined_call_operand.hbm [shape: f32[37,77,512], index: 3, kind: output, shape index: {}]
  %s4 = sld [smem:[#allocation0]]
  $region57: #{tpu_custom_call.1} parent=0
    _
  %s6 = ssub.s32 1, %s4
  %s7 = scalar_select 0, %s6, %s4
  $region1: #{tpu_custom_call.1} parent=0
    #allocation2 [shape = 'u8[77824]{0}', space=vmem, size = 0x13000, scoped, tag = 'input window, operand 0']
    #allocation3 [shape = 's32[2]{0}', space=sflag, size = 0x8, scoped, tag = 'scoped memory for tpu_custom_call.1']
    #allocation4 [shape = 's32[2]{0}', space=sflag, size = 0x8, scoped, tag = 'scoped memory for tpu_custom_call.1']
    #allocation5 [shape = 'u8[32768]{0}', space=vmem, size = 0x8000, scoped, tag = 'input window, operand 1, single buffered']
    #allocation6 [shape = 's32[1]{0}', space=sflag, size = 0x4, scoped, tag = 'scoped memory for tpu_custom_call.1']
    #allocation7 [shape = 'u8[4980736]{0}', space=vmem, size = 0x4c0000, scoped, tag = 'input window, operand 2']
    #allocation8 [shape = 'u8[6225920]{0}', space=vmem, size = 0x5f0000, scoped, tag = 'output window, operand 0']
    %8 = vsyncpa [#allocation3], 0
    %s9 = scalar_lea.sflag [#allocation3], 1
    %10 = vsyncpa %s9, 0
    %11 = vsyncpa [#allocation6], 0
    %12 = vsyncpa [#allocation4], 0
    %s13 = scalar_lea.sflag [#allocation4], 1
    %14 = vsyncpa %s13, 0
    loop: start=0, step=1, limit=4
    $region2: #{tpu_custom_call.1} parent=1 // loop_pre_header
      _
    $region3: #{tpu_custom_call.1} parent=1 // loop_header
      %s16 = sphi 0, %s20
      %p17 = scmp.ge.s32.totalorder %s16, 4
      %s26 = sphi 0, %s28
      %s29 = sphi 0, %s26
      %s30 = sphi 0, %s29
      %s46 = sphi 0, %s30
      %s50 = sphi 0, %s50
      %s52 = sphi 0, %s50
      %s53 = sphi 0, %s52
      %s67 = sphi 0, %s53
      %s73 = sphi 0, %s75
      %s76 = sphi 0, %s73
      %s77 = sphi 0, %s76
      %s93 = sphi 0, %s77
      %s99 = sphi 0, %s101
      %s102 = sphi 0, %s99
      %s103 = sphi 0, %s102
      %s119 = sphi 0, %s103
    $region4: #{tpu_custom_call.1} parent=1 // loop_header_branch
      %19 = sbr.rel (%p17) target = $region8
    $region5: #{tpu_custom_call.1} parent=1 // loop_body
      %s21 = ssub.s32 %s16, 1
      %s22 = ssub.s32 %s16, 2
      %s23 = sadd.s32 %s16, 1
      %s24 = ssub.s32 %s16, %s23
      %p25 = scmp.eq.s32.totalorder %s24, 0
      %s27 = sadd.s32 %s26, 1
      %s28 = scalar_select %p25, %s26, %s27
      %p31 = pneg %p25
      %p32 = scmp.eq.s32.totalorder %s16, 1
      %p33 = por %p31, %p32
      %p34 = scmp.ne.s32.totalorder %s26, %s29
      %p35 = scmp.eq.s32.totalorder %s16, 0
      %p36 = por %p34, %p35
      %p37 = scmp.ne.s32.totalorder %s26, %s29
      %p38 = scmp.eq.s32.totalorder %s21, 1
      %p39 = por %p37, %p38
      %p40 = scmp.ne.s32.totalorder %s29, %s30
      %p41 = scmp.eq.s32.totalorder %s21, 0
      %p42 = por %p40, %p41
      %p43 = scmp.ne.s32.totalorder %s29, %s30
      %p44 = scmp.eq.s32.totalorder %s22, 1
      %p45 = por %p43, %p44
      %p47 = scmp.ne.s32.totalorder %s30, %s46
      %p48 = scmp.eq.s32.totalorder %s22, 0
      %p49 = por %p47, %p48
      %s51 = sadd.s32 %s50, 1
      %p54 = scmp.eq.s32.totalorder %s16, 1
      %p55 = scmp.ne.s32.totalorder %s50, %s52
      %p56 = scmp.eq.s32.totalorder %s16, 0
      %p57 = por %p55, %p56
      %p58 = scmp.ne.s32.totalorder %s50, %s52
      %p59 = scmp.eq.s32.totalorder %s21, 1
      %p60 = por %p58, %p59
      %p61 = scmp.ne.s32.totalorder %s52, %s53
      %p62 = scmp.eq.s32.totalorder %s21, 0
      %p63 = por %p61, %p62
      %p64 = scmp.ne.s32.totalorder %s52, %s53
      %p65 = scmp.eq.s32.totalorder %s22, 1
      %p66 = por %p64, %p65
      %p68 = scmp.ne.s32.totalorder %s53, %s67
      %p69 = scmp.eq.s32.totalorder %s22, 0
      %p70 = por %p68, %p69
      %s71 = ssub.s32 %s16, %s23
      %p72 = scmp.eq.s32.totalorder %s71, 0
      %s74 = sadd.s32 %s73, 1
      %s75 = scalar_select %p72, %s73, %s74
      %p78 = pneg %p72
      %p79 = scmp.eq.s32.totalorder %s16, 1
      %p80 = por %p78, %p79
      %p81 = scmp.ne.s32.totalorder %s73, %s76
      %p82 = scmp.eq.s32.totalorder %s16, 0
      %p83 = por %p81, %p82
      %p84 = scmp.ne.s32.totalorder %s73, %s76
      %p85 = scmp.eq.s32.totalorder %s21, 1
      %p86 = por %p84, %p85
      %p87 = scmp.ne.s32.totalorder %s76, %s77
      %p88 = scmp.eq.s32.totalorder %s21, 0
      %p89 = por %p87, %p88
      %p90 = scmp.ne.s32.totalorder %s76, %s77
      %p91 = scmp.eq.s32.totalorder %s22, 1
      %p92 = por %p90, %p91
      %p94 = scmp.ne.s32.totalorder %s77, %s93
      %p95 = scmp.eq.s32.totalorder %s22, 0
      %p96 = por %p94, %p95
      %s97 = ssub.s32 %s16, %s23
      %p98 = scmp.eq.s32.totalorder %s97, 0
      %s100 = sadd.s32 %s99, 1
      %s101 = scalar_select %p98, %s99, %s100
      %p104 = pneg %p98
      %p105 = scmp.eq.s32.totalorder %s16, 1
      %p106 = por %p104, %p105
      %p107 = scmp.ne.s32.totalorder %s99, %s102
      %p108 = scmp.eq.s32.totalorder %s16, 0
      %p109 = por %p107, %p108
      %p110 = scmp.ne.s32.totalorder %s99, %s102
      %p111 = scmp.eq.s32.totalorder %s21, 1
      %p112 = por %p110, %p111
      %p113 = scmp.ne.s32.totalorder %s102, %s103
      %p114 = scmp.eq.s32.totalorder %s21, 0
      %p115 = por %p113, %p114
      %p116 = scmp.ne.s32.totalorder %s102, %s103
      %p117 = scmp.eq.s32.totalorder %s22, 1
      %p118 = por %p116, %p117
      %p120 = scmp.ne.s32.totalorder %s103, %s119
      %p121 = scmp.eq.s32.totalorder %s22, 0
      %p122 = por %p120, %p121
      %p123 = scmp.le.s32.totalorder 1, %s16
      %p124 = scmp.lt.s32.totalorder %s16, 3
      %p125 = pnand %p123, %p124
      %p126 = pneg %p125
      // Predicated region
      $region9: #{tpu_custom_call.1} parent=5 // pred_check
        _
      $region10: #{tpu_custom_call.1} parent=5 // pred_check_branch
        %128 = sbr.rel (%p125) target = $region12
      $region11: #{tpu_custom_call.1} parent=5 // pred_region
        %s129 = ssub.s32 %s16, 1
        // Predicated region
        $region13: #{tpu_custom_call.1} parent=11 // pred_check
          %p130 = pneg %p63
        $region14: #{tpu_custom_call.1} parent=11 // pred_check_branch
          %132 = sbr.rel (%p130) target = $region16
        $region15: #{tpu_custom_call.1} parent=11 // pred_region
          %s134 = ssub.s32 1024, 1024
          %135 = vsyncadd [#allocation6], %s134
          %s136 = sshll.u32 [#allocation5], 4
          %s137 = int_to_ptr.vmem [resolvable:$true] %s136
          %142 = dma.hbm_to_vmem [thread:$0]  %s1, 1024, %s137, [#allocation6], 512, 512, 32
        $region16: #{tpu_custom_call.1} parent=11 // pred_fallthru
          _
      $region12: #{tpu_custom_call.1} parent=5 // pred_fallthru
        _
      %p143 = scmp.lt.s32.totalorder %s16, 2
      // Predicated region
      $region17: #{tpu_custom_call.1} parent=5 // pred_check
        %p144 = pneg %p143
      $region18: #{tpu_custom_call.1} parent=5 // pred_check_branch
        %146 = sbr.rel (%p144) target = $region20
      $region19: #{tpu_custom_call.1} parent=5 // pred_region
        // Predicated region
        $region21: #{tpu_custom_call.1} parent=19 // pred_check
          %p147 = pneg %p36
        $region22: #{tpu_custom_call.1} parent=19 // pred_check_branch
          %149 = sbr.rel (%p147) target = $region24
        $region23: #{tpu_custom_call.1} parent=19 // pred_region
          %s150 = sand.u32 %s16, 1
          %s151 = scalar_lea.sflag [#allocation3], %s150
          %s152 = sand.u32 %s26, 1
          %s153 = smul.addr %s152, 76
          %s154 = scalar_lea.vmem [#allocation2], %s153
          %s155 = smul.u32 19, %s16
          %s156 = ssub.s32 37, %s155
          %p157 = scmp.lt.s32.totalorder %s156, 19
          %s158 = scalar_select %p157, %s156, 19
          %s159 = smul.u32 16, %s158
          %s160 = smul.u32 %s159, 4
          %s162 = ssub.s32 1216, %s160
          %163 = vsyncadd %s151, %s162
          %p164 = scmp.ne.s32.totalorder 0, %s160
          %s165 = smul.addr %s155, 4
          %s166 = smul.addr %s165, 16
          %s167 = scalar_lea.hbm %s0, %s166
          %s168 = smul.u32 4, %s158
          %s169 = sshll.u32 %s154, 4
          %s170 = int_to_ptr.vmem [resolvable:$true] %s169
          %s171 = sshll.u32 %s168, 4
          %175 = dma.hbm_to_vmem [thread:$0]  (%p164), %s167, %s171, %s170, %s151, 64, 64, 4
        $region24: #{tpu_custom_call.1} parent=19 // pred_fallthru
          _
        // Predicated region
        $region25: #{tpu_custom_call.1} parent=19 // pred_check
          %p176 = pneg %p83
        $region26: #{tpu_custom_call.1} parent=19 // pred_check_branch
          %178 = sbr.rel (%p176) target = $region28
        $region27: #{tpu_custom_call.1} parent=19 // pred_region
          %s179 = sand.u32 %s16, 1
          %s180 = scalar_lea.sflag [#allocation3], %s179
          %s181 = sand.u32 %s73, 1
          %s182 = smul.addr %s181, 4864
          %s183 = scalar_lea.vmem [#allocation7], %s182
          %s184 = smul.u32 19, %s16
          %s185 = ssub.s32 37, %s184
          %p186 = scmp.lt.s32.totalorder %s185, 19
          %s187 = scalar_select %p186, %s185, 19
          %s188 = smul.u32 128, %s187
          %s189 = smul.u32 %s188, 8
          %s190 = smul.u32 %s189, 4
          %s192 = ssub.s32 77824, %s190
          %193 = vsyncadd %s180, %s192
          %p194 = scmp.ne.s32.totalorder 0, %s190
          %s195 = smul.addr %s184, 32
          %s196 = smul.addr %s195, 128
          %s197 = scalar_lea.hbm %s2, %s196
          %s198 = smul.u32 %s187, 8
          %s199 = smul.u32 32, %s198
          %s200 = sshll.u32 %s183, 4
          %s201 = int_to_ptr.vmem [resolvable:$true] %s200
          %s202 = sshll.u32 %s199, 4
          %206 = dma.hbm_to_vmem [thread:$0]  (%p194), %s197, %s202, %s201, %s180, 512, 512, 32
        $region28: #{tpu_custom_call.1} parent=19 // pred_fallthru
          _
      $region20: #{tpu_custom_call.1} parent=5 // pred_fallthru
        _
      %p207 = scmp.le.s32.totalorder 1, %s16
      %p208 = scmp.lt.s32.totalorder %s16, 3
      %p209 = pnand %p207, %p208
      %p210 = pneg %p209
      // Predicated region
      $region29: #{tpu_custom_call.1} parent=5 // pred_check
        _
      $region30: #{tpu_custom_call.1} parent=5 // pred_check_branch
        %212 = sbr.rel (%p209) target = $region32
      $region31: #{tpu_custom_call.1} parent=5 // pred_region
        %s213 = ssub.s32 %s16, 1
        %s214 = sand.u32 %s21, 1
        %s215 = scalar_lea.sflag [#allocation3], %s214
        %s216 = sand.u32 %s29, 1
        %s217 = smul.addr %s216, 76
        %s218 = scalar_lea.vmem [#allocation2], %s217
        // Predicated region
        $region33: #{tpu_custom_call.1} parent=31 // pred_check
          %p219 = pneg %p42
        $region34: #{tpu_custom_call.1} parent=31 // pred_check_branch
          %221 = sbr.rel (%p219) target = $region36
        $region35: #{tpu_custom_call.1} parent=31 // pred_region
          %222 = dma.done %s215, 1216
        $region36: #{tpu_custom_call.1} parent=31 // pred_fallthru
          _
        // Predicated region
        $region37: #{tpu_custom_call.1} parent=31 // pred_check
          %p223 = pneg %p63
        $region38: #{tpu_custom_call.1} parent=31 // pred_check_branch
          %225 = sbr.rel (%p223) target = $region40
        $region39: #{tpu_custom_call.1} parent=31 // pred_region
          %226 = dma.done [#allocation6], 1024
        $region40: #{tpu_custom_call.1} parent=31 // pred_fallthru
          _
        %s227 = sand.u32 %s21, 1
        %s228 = scalar_lea.sflag [#allocation3], %s227
        %s229 = sand.u32 %s76, 1
        %s230 = smul.addr %s229, 4864
        %s231 = scalar_lea.vmem [#allocation7], %s230
        // Predicated region
        $region41: #{tpu_custom_call.1} parent=31 // pred_check
          %p232 = pneg %p89
        $region42: #{tpu_custom_call.1} parent=31 // pred_check_branch
          %234 = sbr.rel (%p232) target = $region44
        $region43: #{tpu_custom_call.1} parent=31 // pred_region
          %235 = dma.done %s228, 77824
        $region44: #{tpu_custom_call.1} parent=31 // pred_fallthru
          _
        %s236 = sand.u32 %s21, 1
        %s237 = scalar_lea.sflag [#allocation3], %s236
        %s238 = sand.u32 %s29, 1
        %s239 = smul.addr %s238, 76
        %s240 = scalar_lea.vmem [#allocation2], %s239
        %p241 = pneg %p42
        %p242 = pneg %p39
        %p243 = pneg %p63
        %p244 = pneg %p60
        %s245 = sand.u32 %s21, 1
        %s246 = scalar_lea.sflag [#allocation3], %s245
        %s247 = sand.u32 %s76, 1
        %s248 = smul.addr %s247, 4864
        %s249 = scalar_lea.vmem [#allocation7], %s248
        %p250 = pneg %p89
        %p251 = pneg %p86
        %p252 = pneg %p115
        %p253 = pneg %p112
        %s254 = sand.u32 %s102, 1
        %s255 = scalar_lea.sflag [#allocation4], %s254
        %s256 = sand.u32 %s102, 1
        %s257 = smul.addr %s256, 6080
        %s258 = scalar_lea.vmem [#allocation8], %s257
        %s259 = smul.u32 19, %s21
        %s260 = ssub.s32 37, %s259
        %p261 = scmp.lt.s32.totalorder %s260, 19
        %s262 = scalar_select %p261, %s260, 19
        %s263 = smul.u32 16, %s262
        %s264 = smul.u32 %s263, 4
        %s265 = smul.u32 19, %s21
        %s266 = ssub.s32 37, %s265
        %p267 = scmp.lt.s32.totalorder %s266, 19
        %s268 = scalar_select %p267, %s266, 19
        %s269 = smul.u32 128, %s268
        %s270 = smul.u32 %s269, 8
        %s271 = smul.u32 %s270, 4
        %s272 = smul.u32 19, %s21
        %s273 = ssub.s32 37, %s272
        %p274 = scmp.lt.s32.totalorder %s273, 19
        %s275 = scalar_select %p274, %s273, 19
        %s276 = smul.u32 128, %s275
        %s277 = smul.u32 %s276, 10
        %s278 = smul.u32 %s277, 4
        %v279 = vld [vmem:[%s218] sm:$0xf]
        %v280 = vld [vmem:[%s218 + $0x4] sm:$0xf]
        %v281 = vld [vmem:[%s218 + $0x8] sm:$0xf]
        %v282 = vld [vmem:[%s218 + $0xc] sm:$0xf]
        %v283 = vld [vmem:[%s218 + $0x10] sm:$0xf]
        %v284 = vld [vmem:[%s218 + $0x14] sm:$0xf]
        %v285 = vld [vmem:[%s218 + $0x18] sm:$0xf]
        %v286 = vld [vmem:[%s218 + $0x1c] sm:$0xf]
        %v287 = vld [vmem:[%s218 + $0x20] sm:$0xf]
        %v288 = vld [vmem:[%s218 + $0x24] sm:$0xf]
        %v289 = vld [vmem:[%s218 + $0x28] sm:$0xf]
        %v290 = vld [vmem:[%s218 + $0x2c] sm:$0xf]
        %v291 = vld [vmem:[%s218 + $0x30] sm:$0xf]
        %v292 = vld [vmem:[%s218 + $0x34] sm:$0xf]
        %v293 = vld [vmem:[%s218 + $0x38] sm:$0xf]
        %v294 = vld [vmem:[%s218 + $0x3c] sm:$0xf]
        %v295 = vld [vmem:[%s218 + $0x40] sm:$0xf]
        %v296 = vld [vmem:[%s218 + $0x44] sm:$0xf]
        %v297 = vld [vmem:[%s218 + $0x48] sm:$0xf]
        %v298 = vlaneseq
        %vm299 = vcmp.ge.s32.totalorder %v298, 0
        %vm300 = vcmp.lt.s32.totalorder %v298, 512
        %vm301 = vmand %vm299, %vm300
        %302 = vst.msk [vmem:[%s258] ss:$8 sm:$0xf] %vm301, %v279
        %303 = vst.msk [vmem:[%s258] ss:$8 sm:$0x0] %vm301, %v279
        %s304 = scalar_lea.vmem %s258, 320 [#allocation8]
        %305 = vst.msk [vmem:[%s304] ss:$8 sm:$0xf] %vm301, %v280
        %306 = vst.msk [vmem:[%s304] ss:$8 sm:$0x0] %vm301, %v280
        %s307 = scalar_lea.vmem %s258, 640 [#allocation8]
        %308 = vst.msk [vmem:[%s307] ss:$8 sm:$0xf] %vm301, %v281
        %309 = vst.msk [vmem:[%s307] ss:$8 sm:$0x0] %vm301, %v281
        %s310 = scalar_lea.vmem %s258, 960 [#allocation8]
        %311 = vst.msk [vmem:[%s310] ss:$8 sm:$0xf] %vm301, %v282
        %312 = vst.msk [vmem:[%s310] ss:$8 sm:$0x0] %vm301, %v282
        %s313 = scalar_lea.vmem %s258, 1280 [#allocation8]
        %314 = vst.msk [vmem:[%s313] ss:$8 sm:$0xf] %vm301, %v283
        %315 = vst.msk [vmem:[%s313] ss:$8 sm:$0x0] %vm301, %v283
        %s316 = scalar_lea.vmem %s258, 1600 [#allocation8]
        %317 = vst.msk [vmem:[%s316] ss:$8 sm:$0xf] %vm301, %v284
        %318 = vst.msk [vmem:[%s316] ss:$8 sm:$0x0] %vm301, %v284
        %s319 = scalar_lea.vmem %s258, 1920 [#allocation8]
        %320 = vst.msk [vmem:[%s319] ss:$8 sm:$0xf] %vm301, %v285
        %321 = vst.msk [vmem:[%s319] ss:$8 sm:$0x0] %vm301, %v285
        %s322 = scalar_lea.vmem %s258, 2240 [#allocation8]
        %323 = vst.msk [vmem:[%s322] ss:$8 sm:$0xf] %vm301, %v286
        %324 = vst.msk [vmem:[%s322] ss:$8 sm:$0x0] %vm301, %v286
        %s325 = scalar_lea.vmem %s258, 2560 [#allocation8]
        %326 = vst.msk [vmem:[%s325] ss:$8 sm:$0xf] %vm301, %v287
        %327 = vst.msk [vmem:[%s325] ss:$8 sm:$0x0] %vm301, %v287
        %s328 = scalar_lea.vmem %s258, 2880 [#allocation8]
        %329 = vst.msk [vmem:[%s328] ss:$8 sm:$0xf] %vm301, %v288
        %330 = vst.msk [vmem:[%s328] ss:$8 sm:$0x0] %vm301, %v288
        %s331 = scalar_lea.vmem %s258, 3200 [#allocation8]
        %332 = vst.msk [vmem:[%s331] ss:$8 sm:$0xf] %vm301, %v289
        %333 = vst.msk [vmem:[%s331] ss:$8 sm:$0x0] %vm301, %v289
        %s334 = scalar_lea.vmem %s258, 3520 [#allocation8]
        %335 = vst.msk [vmem:[%s334] ss:$8 sm:$0xf] %vm301, %v290
        %336 = vst.msk [vmem:[%s334] ss:$8 sm:$0x0] %vm301, %v290
        %s337 = scalar_lea.vmem %s258, 3840 [#allocation8]
        %338 = vst.msk [vmem:[%s337] ss:$8 sm:$0xf] %vm301, %v291
        %339 = vst.msk [vmem:[%s337] ss:$8 sm:$0x0] %vm301, %v291
        %s340 = scalar_lea.vmem %s258, 4160 [#allocation8]
        %341 = vst.msk [vmem:[%s340] ss:$8 sm:$0xf] %vm301, %v292
        %342 = vst.msk [vmem:[%s340] ss:$8 sm:$0x0] %vm301, %v292
        %s343 = scalar_lea.vmem %s258, 4480 [#allocation8]
        %344 = vst.msk [vmem:[%s343] ss:$8 sm:$0xf] %vm301, %v293
        %345 = vst.msk [vmem:[%s343] ss:$8 sm:$0x0] %vm301, %v293
        %s346 = scalar_lea.vmem %s258, 4800 [#allocation8]
        %347 = vst.msk [vmem:[%s346] ss:$8 sm:$0xf] %vm301, %v294
        %348 = vst.msk [vmem:[%s346] ss:$8 sm:$0x0] %vm301, %v294
        %s349 = scalar_lea.vmem %s258, 5120 [#allocation8]
        %350 = vst.msk [vmem:[%s349] ss:$8 sm:$0xf] %vm301, %v295
        %351 = vst.msk [vmem:[%s349] ss:$8 sm:$0x0] %vm301, %v295
        %s352 = scalar_lea.vmem %s258, 5440 [#allocation8]
        %353 = vst.msk [vmem:[%s352] ss:$8 sm:$0xf] %vm301, %v296
        %354 = vst.msk [vmem:[%s352] ss:$8 sm:$0x0] %vm301, %v296
        %s355 = scalar_lea.vmem %s258, 5760 [#allocation8]
        %356 = vst.msk [vmem:[%s355] ss:$8 sm:$0xf] %vm301, %v297
        %357 = vst.msk [vmem:[%s355] ss:$8 sm:$0x0] %vm301, %v297
        %v358 = vld [vmem:[#allocation5] sm:$0xff]
        %v359 = vld [vmem:[#allocation5 + $0x8] sm:$0xff]
        %v360 = vld [vmem:[#allocation5 + $0x10] sm:$0xff]
        %v361 = vld [vmem:[#allocation5 + $0x18] sm:$0xff]
        %v362 = vld [vmem:[#allocation5 + $0x20] sm:$0xff]
        %v363 = vld [vmem:[#allocation5 + $0x28] sm:$0xff]
        %v364 = vld [vmem:[#allocation5 + $0x30] sm:$0xff]
        %v365 = vld [vmem:[#allocation5 + $0x38] sm:$0xff]
        %vm374 = vcmask 1040384
        %v375 = vrot.slane %v358, 7
        %v376 = vrot.slane %v359, 7
        %v377 = vrot.slane %v360, 7
        %v378 = vrot.slane %v361, 7
        %v379 = vrot.slane %v362, 7
        %v380 = vsel %vm374, %v375, %v379
        %v381 = vrot.slane %v363, 7
        %v382 = vsel %vm374, %v376, %v381
        %v383 = vrot.slane %v364, 7
        %v384 = vsel %vm374, %v377, %v383
        %v385 = vrot.slane %v365, 7
        %v386 = vsel %vm374, %v378, %v385
        %399 = vst [vmem:[%s258] sm:$0xfe] %v375
        %400 = vst [vmem:[%s258 + $0x8] sm:$0xfe] %v376
        %401 = vst [vmem:[%s258 + $0x10] sm:$0xfe] %v377
        %402 = vst [vmem:[%s258 + $0x18] sm:$0xfe] %v378
        %403 = vst [vmem:[%s258 + $0x20] sm:$0xff] %v380
        %404 = vst [vmem:[%s258 + $0x28] sm:$0xff] %v382
        %405 = vst [vmem:[%s258 + $0x30] sm:$0xff] %v384
        %406 = vst [vmem:[%s258 + $0x38] sm:$0xff] %v386
        %407 = vst [vmem:[%s258 + $0x40] sm:$0x1] %v379
        %408 = vst [vmem:[%s258 + $0x48] sm:$0x1] %v381
        %409 = vst [vmem:[%s258 + $0x50] sm:$0x1] %v383
        %410 = vst [vmem:[%s258 + $0x58] sm:$0x1] %v385
        %411 = vst [vmem:[%s258 + $0x140] sm:$0xfe] %v375
        %412 = vst [vmem:[%s258 + $0x148] sm:$0xfe] %v376
        %413 = vst [vmem:[%s258 + $0x150] sm:$0xfe] %v377
        %414 = vst [vmem:[%s258 + $0x158] sm:$0xfe] %v378
        %415 = vst [vmem:[%s258 + $0x160] sm:$0xff] %v380
        %416 = vst [vmem:[%s258 + $0x168] sm:$0xff] %v382
        %417 = vst [vmem:[%s258 + $0x170] sm:$0xff] %v384
        %418 = vst [vmem:[%s258 + $0x178] sm:$0xff] %v386
        %419 = vst [vmem:[%s258 + $0x180] sm:$0x1] %v379
        %420 = vst [vmem:[%s258 + $0x188] sm:$0x1] %v381
        %421 = vst [vmem:[%s258 + $0x190] sm:$0x1] %v383
        %422 = vst [vmem:[%s258 + $0x198] sm:$0x1] %v385
        %423 = vst [vmem:[%s258 + $0x280] sm:$0xfe] %v375
        %424 = vst [vmem:[%s258 + $0x288] sm:$0xfe] %v376
        %425 = vst [vmem:[%s258 + $0x290] sm:$0xfe] %v377
        %426 = vst [vmem:[%s258 + $0x298] sm:$0xfe] %v378
        %427 = vst [vmem:[%s258 + $0x2a0] sm:$0xff] %v380
        %428 = vst [vmem:[%s258 + $0x2a8] sm:$0xff] %v382
        %429 = vst [vmem:[%s258 + $0x2b0] sm:$0xff] %v384
        %430 = vst [vmem:[%s258 + $0x2b8] sm:$0xff] %v386
        %431 = vst [vmem:[%s258 + $0x2c0] sm:$0x1] %v379
        %432 = vst [vmem:[%s258 + $0x2c8] sm:$0x1] %v381
        %433 = vst [vmem:[%s258 + $0x2d0] sm:$0x1] %v383
        %434 = vst [vmem:[%s258 + $0x2d8] sm:$0x1] %v385
        %435 = vst [vmem:[%s258 + $0x3c0] sm:$0xfe] %v375
        %436 = vst [vmem:[%s258 + $0x3c8] sm:$0xfe] %v376
        %437 = vst [vmem:[%s258 + $0x3d0] sm:$0xfe] %v377
        %438 = vst [vmem:[%s258 + $0x3d8] sm:$0xfe] %v378
        %439 = vst [vmem:[%s258 + $0x3e0] sm:$0xff] %v380
        %440 = vst [vmem:[%s258 + $0x3e8] sm:$0xff] %v382
        %441 = vst [vmem:[%s258 + $0x3f0] sm:$0xff] %v384
        %442 = vst [vmem:[%s258 + $0x3f8] sm:$0xff] %v386
        %443 = vst [vmem:[%s258 + $0x400] sm:$0x1] %v379
        %444 = vst [vmem:[%s258 + $0x408] sm:$0x1] %v381
        %445 = vst [vmem:[%s258 + $0x410] sm:$0x1] %v383
        %446 = vst [vmem:[%s258 + $0x418] sm:$0x1] %v385
        %447 = vst [vmem:[%s258 + $0x500] sm:$0xfe] %v375
        %448 = vst [vmem:[%s258 + $0x508] sm:$0xfe] %v376
        %449 = vst [vmem:[%s258 + $0x510] sm:$0xfe] %v377
        %450 = vst [vmem:[%s258 + $0x518] sm:$0xfe] %v378
        %451 = vst [vmem:[%s258 + $0x520] sm:$0xff] %v380
        %452 = vst [vmem:[%s258 + $0x528] sm:$0xff] %v382
        %453 = vst [vmem:[%s258 + $0x530] sm:$0xff] %v384
        %454 = vst [vmem:[%s258 + $0x538] sm:$0xff] %v386
        %455 = vst [vmem:[%s258 + $0x540] sm:$0x1] %v379
        %456 = vst [vmem:[%s258 + $0x548] sm:$0x1] %v381
        %457 = vst [vmem:[%s258 + $0x550] sm:$0x1] %v383
        %458 = vst [vmem:[%s258 + $0x558] sm:$0x1] %v385
        %459 = vst [vmem:[%s258 + $0x640] sm:$0xfe] %v375
        %460 = vst [vmem:[%s258 + $0x648] sm:$0xfe] %v376
        %461 = vst [vmem:[%s258 + $0x650] sm:$0xfe] %v377
        %462 = vst [vmem:[%s258 + $0x658] sm:$0xfe] %v378
        %463 = vst [vmem:[%s258 + $0x660] sm:$0xff] %v380
        %464 = vst [vmem:[%s258 + $0x668] sm:$0xff] %v382
        %465 = vst [vmem:[%s258 + $0x670] sm:$0xff] %v384
        %466 = vst [vmem:[%s258 + $0x678] sm:$0xff] %v386
        %467 = vst [vmem:[%s258 + $0x680] sm:$0x1] %v379
        %468 = vst [vmem:[%s258 + $0x688] sm:$0x1] %v381
        %469 = vst [vmem:[%s258 + $0x690] sm:$0x1] %v383
        %470 = vst [vmem:[%s258 + $0x698] sm:$0x1] %v385
        %471 = vst [vmem:[%s258 + $0x780] sm:$0xfe] %v375
        %472 = vst [vmem:[%s258 + $0x788] sm:$0xfe] %v376
        %473 = vst [vmem:[%s258 + $0x790] sm:$0xfe] %v377
        %474 = vst [vmem:[%s258 + $0x798] sm:$0xfe] %v378
        %475 = vst [vmem:[%s258 + $0x7a0] sm:$0xff] %v380
        %476 = vst [vmem:[%s258 + $0x7a8] sm:$0xff] %v382
        %477 = vst [vmem:[%s258 + $0x7b0] sm:$0xff] %v384
        %478 = vst [vmem:[%s258 + $0x7b8] sm:$0xff] %v386
        %479 = vst [vmem:[%s258 + $0x7c0] sm:$0x1] %v379
        %480 = vst [vmem:[%s258 + $0x7c8] sm:$0x1] %v381
        %481 = vst [vmem:[%s258 + $0x7d0] sm:$0x1] %v383
        %482 = vst [vmem:[%s258 + $0x7d8] sm:$0x1] %v385
        %483 = vst [vmem:[%s258 + $0x8c0] sm:$0xfe] %v375
        %484 = vst [vmem:[%s258 + $0x8c8] sm:$0xfe] %v376
        %485 = vst [vmem:[%s258 + $0x8d0] sm:$0xfe] %v377
        %486 = vst [vmem:[%s258 + $0x8d8] sm:$0xfe] %v378
        %487 = vst [vmem:[%s258 + $0x8e0] sm:$0xff] %v380
        %488 = vst [vmem:[%s258 + $0x8e8] sm:$0xff] %v382
        %489 = vst [vmem:[%s258 + $0x8f0] sm:$0xff] %v384
        %490 = vst [vmem:[%s258 + $0x8f8] sm:$0xff] %v386
        %491 = vst [vmem:[%s258 + $0x900] sm:$0x1] %v379
        %492 = vst [vmem:[%s258 + $0x908] sm:$0x1] %v381
        %493 = vst [vmem:[%s258 + $0x910] sm:$0x1] %v383
        %494 = vst [vmem:[%s258 + $0x918] sm:$0x1] %v385
        %495 = vst [vmem:[%s258 + $0xa00] sm:$0xfe] %v375
        %496 = vst [vmem:[%s258 + $0xa08] sm:$0xfe] %v376
        %497 = vst [vmem:[%s258 + $0xa10] sm:$0xfe] %v377
        %498 = vst [vmem:[%s258 + $0xa18] sm:$0xfe] %v378
        %499 = vst [vmem:[%s258 + $0xa20] sm:$0xff] %v380
        %500 = vst [vmem:[%s258 + $0xa28] sm:$0xff] %v382
        %501 = vst [vmem:[%s258 + $0xa30] sm:$0xff] %v384
        %502 = vst [vmem:[%s258 + $0xa38] sm:$0xff] %v386
        %503 = vst [vmem:[%s258 + $0xa40] sm:$0x1] %v379
        %504 = vst [vmem:[%s258 + $0xa48] sm:$0x1] %v381
        %505 = vst [vmem:[%s258 + $0xa50] sm:$0x1] %v383
        %506 = vst [vmem:[%s258 + $0xa58] sm:$0x1] %v385
        %507 = vst [vmem:[%s258 + $0xb40] sm:$0xfe] %v375
        %508 = vst [vmem:[%s258 + $0xb48] sm:$0xfe] %v376
        %509 = vst [vmem:[%s258 + $0xb50] sm:$0xfe] %v377
        %510 = vst [vmem:[%s258 + $0xb58] sm:$0xfe] %v378
        %511 = vst [vmem:[%s258 + $0xb60] sm:$0xff] %v380
        %512 = vst [vmem:[%s258 + $0xb68] sm:$0xff] %v382
        %513 = vst [vmem:[%s258 + $0xb70] sm:$0xff] %v384
        %514 = vst [vmem:[%s258 + $0xb78] sm:$0xff] %v386
        %515 = vst [vmem:[%s258 + $0xb80] sm:$0x1] %v379
        %516 = vst [vmem:[%s258 + $0xb88] sm:$0x1] %v381
        %517 = vst [vmem:[%s258 + $0xb90] sm:$0x1] %v383
        %518 = vst [vmem:[%s258 + $0xb98] sm:$0x1] %v385
        %519 = vst [vmem:[%s258 + $0xc80] sm:$0xfe] %v375
        %520 = vst [vmem:[%s258 + $0xc88] sm:$0xfe] %v376
        %521 = vst [vmem:[%s258 + $0xc90] sm:$0xfe] %v377
        %522 = vst [vmem:[%s258 + $0xc98] sm:$0xfe] %v378
        %523 = vst [vmem:[%s258 + $0xca0] sm:$0xff] %v380
        %524 = vst [vmem:[%s258 + $0xca8] sm:$0xff] %v382
        %525 = vst [vmem:[%s258 + $0xcb0] sm:$0xff] %v384
        %526 = vst [vmem:[%s258 + $0xcb8] sm:$0xff] %v386
        %527 = vst [vmem:[%s258 + $0xcc0] sm:$0x1] %v379
        %528 = vst [vmem:[%s258 + $0xcc8] sm:$0x1] %v381
        %529 = vst [vmem:[%s258 + $0xcd0] sm:$0x1] %v383
        %530 = vst [vmem:[%s258 + $0xcd8] sm:$0x1] %v385
        %531 = vst [vmem:[%s258 + $0xdc0] sm:$0xfe] %v375
        %532 = vst [vmem:[%s258 + $0xdc8] sm:$0xfe] %v376
        %533 = vst [vmem:[%s258 + $0xdd0] sm:$0xfe] %v377
        %534 = vst [vmem:[%s258 + $0xdd8] sm:$0xfe] %v378
        %535 = vst [vmem:[%s258 + $0xde0] sm:$0xff] %v380
        %536 = vst [vmem:[%s258 + $0xde8] sm:$0xff] %v382
        %537 = vst [vmem:[%s258 + $0xdf0] sm:$0xff] %v384
        %538 = vst [vmem:[%s258 + $0xdf8] sm:$0xff] %v386
        %539 = vst [vmem:[%s258 + $0xe00] sm:$0x1] %v379
        %540 = vst [vmem:[%s258 + $0xe08] sm:$0x1] %v381
        %541 = vst [vmem:[%s258 + $0xe10] sm:$0x1] %v383
        %542 = vst [vmem:[%s258 + $0xe18] sm:$0x1] %v385
        %543 = vst [vmem:[%s258 + $0xf00] sm:$0xfe] %v375
        %544 = vst [vmem:[%s258 + $0xf08] sm:$0xfe] %v376
        %545 = vst [vmem:[%s258 + $0xf10] sm:$0xfe] %v377
        %546 = vst [vmem:[%s258 + $0xf18] sm:$0xfe] %v378
        %547 = vst [vmem:[%s258 + $0xf20] sm:$0xff] %v380
        %548 = vst [vmem:[%s258 + $0xf28] sm:$0xff] %v382
        %549 = vst [vmem:[%s258 + $0xf30] sm:$0xff] %v384
        %550 = vst [vmem:[%s258 + $0xf38] sm:$0xff] %v386
        %551 = vst [vmem:[%s258 + $0xf40] sm:$0x1] %v379
        %552 = vst [vmem:[%s258 + $0xf48] sm:$0x1] %v381
        %553 = vst [vmem:[%s258 + $0xf50] sm:$0x1] %v383
        %554 = vst [vmem:[%s258 + $0xf58] sm:$0x1] %v385
        %555 = vst [vmem:[%s258 + $0x1040] sm:$0xfe] %v375
        %556 = vst [vmem:[%s258 + $0x1048] sm:$0xfe] %v376
        %557 = vst [vmem:[%s258 + $0x1050] sm:$0xfe] %v377
        %558 = vst [vmem:[%s258 + $0x1058] sm:$0xfe] %v378
        %559 = vst [vmem:[%s258 + $0x1060] sm:$0xff] %v380
        %560 = vst [vmem:[%s258 + $0x1068] sm:$0xff] %v382
        %561 = vst [vmem:[%s258 + $0x1070] sm:$0xff] %v384
        %562 = vst [vmem:[%s258 + $0x1078] sm:$0xff] %v386
        %563 = vst [vmem:[%s258 + $0x1080] sm:$0x1] %v379
        %564 = vst [vmem:[%s258 + $0x1088] sm:$0x1] %v381
        %565 = vst [vmem:[%s258 + $0x1090] sm:$0x1] %v383
        %566 = vst [vmem:[%s258 + $0x1098] sm:$0x1] %v385
        %567 = vst [vmem:[%s258 + $0x1180] sm:$0xfe] %v375
        %568 = vst [vmem:[%s258 + $0x1188] sm:$0xfe] %v376
        %569 = vst [vmem:[%s258 + $0x1190] sm:$0xfe] %v377
        %570 = vst [vmem:[%s258 + $0x1198] sm:$0xfe] %v378
        %571 = vst [vmem:[%s258 + $0x11a0] sm:$0xff] %v380
        %572 = vst [vmem:[%s258 + $0x11a8] sm:$0xff] %v382
        %573 = vst [vmem:[%s258 + $0x11b0] sm:$0xff] %v384
        %574 = vst [vmem:[%s258 + $0x11b8] sm:$0xff] %v386
        %575 = vst [vmem:[%s258 + $0x11c0] sm:$0x1] %v379
        %576 = vst [vmem:[%s258 + $0x11c8] sm:$0x1] %v381
        %577 = vst [vmem:[%s258 + $0x11d0] sm:$0x1] %v383
        %578 = vst [vmem:[%s258 + $0x11d8] sm:$0x1] %v385
        %579 = vst [vmem:[%s258 + $0x12c0] sm:$0xfe] %v375
        %580 = vst [vmem:[%s258 + $0x12c8] sm:$0xfe] %v376
        %581 = vst [vmem:[%s258 + $0x12d0] sm:$0xfe] %v377
        %582 = vst [vmem:[%s258 + $0x12d8] sm:$0xfe] %v378
        %583 = vst [vmem:[%s258 + $0x12e0] sm:$0xff] %v380
        %584 = vst [vmem:[%s258 + $0x12e8] sm:$0xff] %v382
        %585 = vst [vmem:[%s258 + $0x12f0] sm:$0xff] %v384
        %586 = vst [vmem:[%s258 + $0x12f8] sm:$0xff] %v386
        %587 = vst [vmem:[%s258 + $0x1300] sm:$0x1] %v379
        %588 = vst [vmem:[%s258 + $0x1308] sm:$0x1] %v381
        %589 = vst [vmem:[%s258 + $0x1310] sm:$0x1] %v383
        %590 = vst [vmem:[%s258 + $0x1318] sm:$0x1] %v385
        %591 = vst [vmem:[%s258 + $0x1400] sm:$0xfe] %v375
        %592 = vst [vmem:[%s258 + $0x1408] sm:$0xfe] %v376
        %593 = vst [vmem:[%s258 + $0x1410] sm:$0xfe] %v377
        %594 = vst [vmem:[%s258 + $0x1418] sm:$0xfe] %v378
        %595 = vst [vmem:[%s258 + $0x1420] sm:$0xff] %v380
        %596 = vst [vmem:[%s258 + $0x1428] sm:$0xff] %v382
        %597 = vst [vmem:[%s258 + $0x1430] sm:$0xff] %v384
        %598 = vst [vmem:[%s258 + $0x1438] sm:$0xff] %v386
        %599 = vst [vmem:[%s258 + $0x1440] sm:$0x1] %v379
        %600 = vst [vmem:[%s258 + $0x1448] sm:$0x1] %v381
        %601 = vst [vmem:[%s258 + $0x1450] sm:$0x1] %v383
        %602 = vst [vmem:[%s258 + $0x1458] sm:$0x1] %v385
        %603 = vst [vmem:[%s258 + $0x1540] sm:$0xfe] %v375
        %604 = vst [vmem:[%s258 + $0x1548] sm:$0xfe] %v376
        %605 = vst [vmem:[%s258 + $0x1550] sm:$0xfe] %v377
        %606 = vst [vmem:[%s258 + $0x1558] sm:$0xfe] %v378
        %607 = vst [vmem:[%s258 + $0x1560] sm:$0xff] %v380
        %608 = vst [vmem:[%s258 + $0x1568] sm:$0xff] %v382
        %609 = vst [vmem:[%s258 + $0x1570] sm:$0xff] %v384
        %610 = vst [vmem:[%s258 + $0x1578] sm:$0xff] %v386
        %611 = vst [vmem:[%s258 + $0x1580] sm:$0x1] %v379
        %612 = vst [vmem:[%s258 + $0x1588] sm:$0x1] %v381
        %613 = vst [vmem:[%s258 + $0x1590] sm:$0x1] %v383
        %614 = vst [vmem:[%s258 + $0x1598] sm:$0x1] %v385
        %615 = vst [vmem:[%s258 + $0x1680] sm:$0xfe] %v375
        %616 = vst [vmem:[%s258 + $0x1688] sm:$0xfe] %v376
        %617 = vst [vmem:[%s258 + $0x1690] sm:$0xfe] %v377
        %618 = vst [vmem:[%s258 + $0x1698] sm:$0xfe] %v378
        %619 = vst [vmem:[%s258 + $0x16a0] sm:$0xff] %v380
        %620 = vst [vmem:[%s258 + $0x16a8] sm:$0xff] %v382
        %621 = vst [vmem:[%s258 + $0x16b0] sm:$0xff] %v384
        %622 = vst [vmem:[%s258 + $0x16b8] sm:$0xff] %v386
        %623 = vst [vmem:[%s258 + $0x16c0] sm:$0x1] %v379
        %624 = vst [vmem:[%s258 + $0x16c8] sm:$0x1] %v381
        %625 = vst [vmem:[%s258 + $0x16d0] sm:$0x1] %v383
        %626 = vst [vmem:[%s258 + $0x16d8] sm:$0x1] %v385
        %v627 = vld [vmem:[%s231] sm:$0xff]
        %v628 = vld [vmem:[%s231 + $0x8] sm:$0xff]
        %v629 = vld [vmem:[%s231 + $0x10] sm:$0xff]
        %v630 = vld [vmem:[%s231 + $0x18] sm:$0xff]
        %v631 = vld [vmem:[%s231 + $0x20] sm:$0xff]
        %v632 = vld [vmem:[%s231 + $0x28] sm:$0xff]
        %v633 = vld [vmem:[%s231 + $0x30] sm:$0xff]
        %v634 = vld [vmem:[%s231 + $0x38] sm:$0xff]
        %v635 = vld [vmem:[%s231 + $0x40] sm:$0xff]
        %v636 = vld [vmem:[%s231 + $0x48] sm:$0xff]
        %v637 = vld [vmem:[%s231 + $0x50] sm:$0xff]
        %v638 = vld [vmem:[%s231 + $0x58] sm:$0xff]
        %v639 = vld [vmem:[%s231 + $0x60] sm:$0xff]
        %v640 = vld [vmem:[%s231 + $0x68] sm:$0xff]
        %v641 = vld [vmem:[%s231 + $0x70] sm:$0xff]
        %v642 = vld [vmem:[%s231 + $0x78] sm:$0xff]
        %v643 = vld [vmem:[%s231 + $0x80] sm:$0xff]
        %v644 = vld [vmem:[%s231 + $0x88] sm:$0xff]
        %v645 = vld [vmem:[%s231 + $0x90] sm:$0xff]
        %v646 = vld [vmem:[%s231 + $0x98] sm:$0xff]
        %v647 = vld [vmem:[%s231 + $0xa0] sm:$0xff]
        %v648 = vld [vmem:[%s231 + $0xa8] sm:$0xff]
        %v649 = vld [vmem:[%s231 + $0xb0] sm:$0xff]
        %v650 = vld [vmem:[%s231 + $0xb8] sm:$0xff]
        %v651 = vld [vmem:[%s231 + $0xc0] sm:$0xff]
        %v652 = vld [vmem:[%s231 + $0xc8] sm:$0xff]
        %v653 = vld [vmem:[%s231 + $0xd0] sm:$0xff]
        %v654 = vld [vmem:[%s231 + $0xd8] sm:$0xff]
        %v655 = vld [vmem:[%s231 + $0xe0] sm:$0xf]
        %v656 = vld [vmem:[%s231 + $0xe8] sm:$0xf]
        %v657 = vld [vmem:[%s231 + $0xf0] sm:$0xf]
        %v658 = vld [vmem:[%s231 + $0xf8] sm:$0xf]
        %v659 = vld [vmem:[%s231 + $0x100] sm:$0xff]
        %v660 = vld [vmem:[%s231 + $0x108] sm:$0xff]
        %v661 = vld [vmem:[%s231 + $0x110] sm:$0xff]
        %v662 = vld [vmem:[%s231 + $0x118] sm:$0xff]
        %v663 = vld [vmem:[%s231 + $0x120] sm:$0xff]
        %v664 = vld [vmem:[%s231 + $0x128] sm:$0xff]
        %v665 = vld [vmem:[%s231 + $0x130] sm:$0xff]
        %v666 = vld [vmem:[%s231 + $0x138] sm:$0xff]
        %v667 = vld [vmem:[%s231 + $0x140] sm:$0xff]
        %v668 = vld [vmem:[%s231 + $0x148] sm:$0xff]
        %v669 = vld [vmem:[%s231 + $0x150] sm:$0xff]
        %v670 = vld [vmem:[%s231 + $0x158] sm:$0xff]
        %v671 = vld [vmem:[%s231 + $0x160] sm:$0xff]
        %v672 = vld [vmem:[%s231 + $0x168] sm:$0xff]
        %v673 = vld [vmem:[%s231 + $0x170] sm:$0xff]
        %v674 = vld [vmem:[%s231 + $0x178] sm:$0xff]
        %v675 = vld [vmem:[%s231 + $0x180] sm:$0xff]
        %v676 = vld [vmem:[%s231 + $0x188] sm:$0xff]
        %v677 = vld [vmem:[%s231 + $0x190] sm:$0xff]
        %v678 = vld [vmem:[%s231 + $0x198] sm:$0xff]
        %v679 = vld [vmem:[%s231 + $0x1a0] sm:$0xff]
        %v680 = vld [vmem:[%s231 + $0x1a8] sm:$0xff]
        %v681 = vld [vmem:[%s231 + $0x1b0] sm:$0xff]
        %v682 = vld [vmem:[%s231 + $0x1b8] sm:$0xff]
        %v683 = vld [vmem:[%s231 + $0x1c0] sm:$0xff]
        %v684 = vld [vmem:[%s231 + $0x1c8] sm:$0xff]
        %v685 = vld [vmem:[%s231 + $0x1d0] sm:$0xff]
        %v686 = vld [vmem:[%s231 + $0x1d8] sm:$0xff]
        %v687 = vld [vmem:[%s231 + $0x1e0] sm:$0xf]
        %v688 = vld [vmem:[%s231 + $0x1e8] sm:$0xf]
        %v689 = vld [vmem:[%s231 + $0x1f0] sm:$0xf]
        %v690 = vld [vmem:[%s231 + $0x1f8] sm:$0xf]
        %v691 = vld [vmem:[%s231 + $0x200] sm:$0xff]
        %v692 = vld [vmem:[%s231 + $0x208] sm:$0xff]
        %v693 = vld [vmem:[%s231 + $0x210] sm:$0xff]
        %v694 = vld [vmem:[%s231 + $0x218] sm:$0xff]
        %v695 = vld [vmem:[%s231 + $0x220] sm:$0xff]
        %v696 = vld [vmem:[%s231 + $0x228] sm:$0xff]
        %v697 = vld [vmem:[%s231 + $0x230] sm:$0xff]
        %v698 = vld [vmem:[%s231 + $0x238] sm:$0xff]
        %v699 = vld [vmem:[%s231 + $0x240] sm:$0xff]
        %v700 = vld [vmem:[%s231 + $0x248] sm:$0xff]
        %v701 = vld [vmem:[%s231 + $0x250] sm:$0xff]
        %v702 = vld [vmem:[%s231 + $0x258] sm:$0xff]
        %v703 = vld [vmem:[%s231 + $0x260] sm:$0xff]
        %v704 = vld [vmem:[%s231 + $0x268] sm:$0xff]
        %v705 = vld [vmem:[%s231 + $0x270] sm:$0xff]
        %v706 = vld [vmem:[%s231 + $0x278] sm:$0xff]
        %v707 = vld [vmem:[%s231 + $0x280] sm:$0xff]
        %v708 = vld [vmem:[%s231 + $0x288] sm:$0xff]
        %v709 = vld [vmem:[%s231 + $0x290] sm:$0xff]
        %v710 = vld [vmem:[%s231 + $0x298] sm:$0xff]
        %v711 = vld [vmem:[%s231 + $0x2a0] sm:$0xff]
        %v712 = vld [vmem:[%s231 + $0x2a8] sm:$0xff]
        %v713 = vld [vmem:[%s231 + $0x2b0] sm:$0xff]
        %v714 = vld [vmem:[%s231 + $0x2b8] sm:$0xff]
        %v715 = vld [vmem:[%s231 + $0x2c0] sm:$0xff]
        %v716 = vld [vmem:[%s231 + $0x2c8] sm:$0xff]
        %v717 = vld [vmem:[%s231 + $0x2d0] sm:$0xff]
        %v718 = vld [vmem:[%s231 + $0x2d8] sm:$0xff]
        %v719 = vld [vmem:[%s231 + $0x2e0] sm:$0xf]
        %v720 = vld [vmem:[%s231 + $0x2e8] sm:$0xf]
        %v721 = vld [vmem:[%s231 + $0x2f0] sm:$0xf]
        %v722 = vld [vmem:[%s231 + $0x2f8] sm:$0xf]
        %v723 = vld [vmem:[%s231 + $0x300] sm:$0xff]
        %v724 = vld [vmem:[%s231 + $0x308] sm:$0xff]
        %v725 = vld [vmem:[%s231 + $0x310] sm:$0xff]
        %v726 = vld [vmem:[%s231 + $0x318] sm:$0xff]
        %v727 = vld [vmem:[%s231 + $0x320] sm:$0xff]
        %v728 = vld [vmem:[%s231 + $0x328] sm:$0xff]
        %v729 = vld [vmem:[%s231 + $0x330] sm:$0xff]
        %v730 = vld [vmem:[%s231 + $0x338] sm:$0xff]
        %v731 = vld [vmem:[%s231 + $0x340] sm:$0xff]
        %v732 = vld [vmem:[%s231 + $0x348] sm:$0xff]
        %v733 = vld [vmem:[%s231 + $0x350] sm:$0xff]
        %v734 = vld [vmem:[%s231 + $0x358] sm:$0xff]
        %v735 = vld [vmem:[%s231 + $0x360] sm:$0xff]
        %v736 = vld [vmem:[%s231 + $0x368] sm:$0xff]
        %v737 = vld [vmem:[%s231 + $0x370] sm:$0xff]
        %v738 = vld [vmem:[%s231 + $0x378] sm:$0xff]
        %v739 = vld [vmem:[%s231 + $0x380] sm:$0xff]
        %v740 = vld [vmem:[%s231 + $0x388] sm:$0xff]
        %v741 = vld [vmem:[%s231 + $0x390] sm:$0xff]
        %v742 = vld [vmem:[%s231 + $0x398] sm:$0xff]
        %v743 = vld [vmem:[%s231 + $0x3a0] sm:$0xff]
        %v744 = vld [vmem:[%s231 + $0x3a8] sm:$0xff]
        %v745 = vld [vmem:[%s231 + $0x3b0] sm:$0xff]
        %v746 = vld [vmem:[%s231 + $0x3b8] sm:$0xff]
        %v747 = vld [vmem:[%s231 + $0x3c0] sm:$0xff]
        %v748 = vld [vmem:[%s231 + $0x3c8] sm:$0xff]
        %v749 = vld [vmem:[%s231 + $0x3d0] sm:$0xff]
        %v750 = vld [vmem:[%s231 + $0x3d8] sm:$0xff]
        %v751 = vld [vmem:[%s231 + $0x3e0] sm:$0xf]
        %v752 = vld [vmem:[%s231 + $0x3e8] sm:$0xf]
        %v753 = vld [vmem:[%s231 + $0x3f0] sm:$0xf]
        %v754 = vld [vmem:[%s231 + $0x3f8] sm:$0xf]
        %v755 = vld [vmem:[%s231 + $0x400] sm:$0xff]
        %v756 = vld [vmem:[%s231 + $0x408] sm:$0xff]
        %v757 = vld [vmem:[%s231 + $0x410] sm:$0xff]
        %v758 = vld [vmem:[%s231 + $0x418] sm:$0xff]
        %v759 = vld [vmem:[%s231 + $0x420] sm:$0xff]
        %v760 = vld [vmem:[%s231 + $0x428] sm:$0xff]
        %v761 = vld [vmem:[%s231 + $0x430] sm:$0xff]
        %v762 = vld [vmem:[%s231 + $0x438] sm:$0xff]
        %v763 = vld [vmem:[%s231 + $0x440] sm:$0xff]
        %v764 = vld [vmem:[%s231 + $0x448] sm:$0xff]
        %v765 = vld [vmem:[%s231 + $0x450] sm:$0xff]
        %v766 = vld [vmem:[%s231 + $0x458] sm:$0xff]
        %v767 = vld [vmem:[%s231 + $0x460] sm:$0xff]
        %v768 = vld [vmem:[%s231 + $0x468] sm:$0xff]
        %v769 = vld [vmem:[%s231 + $0x470] sm:$0xff]
        %v770 = vld [vmem:[%s231 + $0x478] sm:$0xff]
        %v771 = vld [vmem:[%s231 + $0x480] sm:$0xff]
        %v772 = vld [vmem:[%s231 + $0x488] sm:$0xff]
        %v773 = vld [vmem:[%s231 + $0x490] sm:$0xff]
        %v774 = vld [vmem:[%s231 + $0x498] sm:$0xff]
        %v775 = vld [vmem:[%s231 + $0x4a0] sm:$0xff]
        %v776 = vld [vmem:[%s231 + $0x4a8] sm:$0xff]
        %v777 = vld [vmem:[%s231 + $0x4b0] sm:$0xff]
        %v778 = vld [vmem:[%s231 + $0x4b8] sm:$0xff]
        %v779 = vld [vmem:[%s231 + $0x4c0] sm:$0xff]
        %v780 = vld [vmem:[%s231 + $0x4c8] sm:$0xff]
        %v781 = vld [vmem:[%s231 + $0x4d0] sm:$0xff]
        %v782 = vld [vmem:[%s231 + $0x4d8] sm:$0xff]
        %v783 = vld [vmem:[%s231 + $0x4e0] sm:$0xf]
        %v784 = vld [vmem:[%s231 + $0x4e8] sm:$0xf]
        %v785 = vld [vmem:[%s231 + $0x4f0] sm:$0xf]
        %v786 = vld [vmem:[%s231 + $0x4f8] sm:$0xf]
        %v787 = vld [vmem:[%s231 + $0x500] sm:$0xff]
        %v788 = vld [vmem:[%s231 + $0x508] sm:$0xff]
        %v789 = vld [vmem:[%s231 + $0x510] sm:$0xff]
        %v790 = vld [vmem:[%s231 + $0x518] sm:$0xff]
        %v791 = vld [vmem:[%s231 + $0x520] sm:$0xff]
        %v792 = vld [vmem:[%s231 + $0x528] sm:$0xff]
        %v793 = vld [vmem:[%s231 + $0x530] sm:$0xff]
        %v794 = vld [vmem:[%s231 + $0x538] sm:$0xff]
        %v795 = vld [vmem:[%s231 + $0x540] sm:$0xff]
        %v796 = vld [vmem:[%s231 + $0x548] sm:$0xff]
        %v797 = vld [vmem:[%s231 + $0x550] sm:$0xff]
        %v798 = vld [vmem:[%s231 + $0x558] sm:$0xff]
        %v799 = vld [vmem:[%s231 + $0x560] sm:$0xff]
        %v800 = vld [vmem:[%s231 + $0x568] sm:$0xff]
        %v801 = vld [vmem:[%s231 + $0x570] sm:$0xff]
        %v802 = vld [vmem:[%s231 + $0x578] sm:$0xff]
        %v803 = vld [vmem:[%s231 + $0x580] sm:$0xff]
        %v804 = vld [vmem:[%s231 + $0x588] sm:$0xff]
        %v805 = vld [vmem:[%s231 + $0x590] sm:$0xff]
        %v806 = vld [vmem:[%s231 + $0x598] sm:$0xff]
        %v807 = vld [vmem:[%s231 + $0x5a0] sm:$0xff]
        %v808 = vld [vmem:[%s231 + $0x5a8] sm:$0xff]
        %v809 = vld [vmem:[%s231 + $0x5b0] sm:$0xff]
        %v810 = vld [vmem:[%s231 + $0x5b8] sm:$0xff]
        %v811 = vld [vmem:[%s231 + $0x5c0] sm:$0xff]
        %v812 = vld [vmem:[%s231 + $0x5c8] sm:$0xff]
        %v813 = vld [vmem:[%s231 + $0x5d0] sm:$0xff]
        %v814 = vld [vmem:[%s231 + $0x5d8] sm:$0xff]
        %v815 = vld [vmem:[%s231 + $0x5e0] sm:$0xf]
        %v816 = vld [vmem:[%s231 + $0x5e8] sm:$0xf]
        %v817 = vld [vmem:[%s231 + $0x5f0] sm:$0xf]
        %v818 = vld [vmem:[%s231 + $0x5f8] sm:$0xf]
        %v819 = vld [vmem:[%s231 + $0x600] sm:$0xff]
        %v820 = vld [vmem:[%s231 + $0x608] sm:$0xff]
        %v821 = vld [vmem:[%s231 + $0x610] sm:$0xff]
        %v822 = vld [vmem:[%s231 + $0x618] sm:$0xff]
        %v823 = vld [vmem:[%s231 + $0x620] sm:$0xff]
        %v824 = vld [vmem:[%s231 + $0x628] sm:$0xff]
        %v825 = vld [vmem:[%s231 + $0x630] sm:$0xff]
        %v826 = vld [vmem:[%s231 + $0x638] sm:$0xff]
        %v827 = vld [vmem:[%s231 + $0x640] sm:$0xff]
        %v828 = vld [vmem:[%s231 + $0x648] sm:$0xff]
        %v829 = vld [vmem:[%s231 + $0x650] sm:$0xff]
        %v830 = vld [vmem:[%s231 + $0x658] sm:$0xff]
        %v831 = vld [vmem:[%s231 + $0x660] sm:$0xff]
        %v832 = vld [vmem:[%s231 + $0x668] sm:$0xff]
        %v833 = vld [vmem:[%s231 + $0x670] sm:$0xff]
        %v834 = vld [vmem:[%s231 + $0x678] sm:$0xff]
        %v835 = vld [vmem:[%s231 + $0x680] sm:$0xff]
        %v836 = vld [vmem:[%s231 + $0x688] sm:$0xff]
        %v837 = vld [vmem:[%s231 + $0x690] sm:$0xff]
        %v838 = vld [vmem:[%s231 + $0x698] sm:$0xff]
        %v839 = vld [vmem:[%s231 + $0x6a0] sm:$0xff]
        %v840 = vld [vmem:[%s231 + $0x6a8] sm:$0xff]
        %v841 = vld [vmem:[%s231 + $0x6b0] sm:$0xff]
        %v842 = vld [vmem:[%s231 + $0x6b8] sm:$0xff]
        %v843 = vld [vmem:[%s231 + $0x6c0] sm:$0xff]
        %v844 = vld [vmem:[%s231 + $0x6c8] sm:$0xff]
        %v845 = vld [vmem:[%s231 + $0x6d0] sm:$0xff]
        %v846 = vld [vmem:[%s231 + $0x6d8] sm:$0xff]
        %v847 = vld [vmem:[%s231 + $0x6e0] sm:$0xf]
        %v848 = vld [vmem:[%s231 + $0x6e8] sm:$0xf]
        %v849 = vld [vmem:[%s231 + $0x6f0] sm:$0xf]
        %v850 = vld [vmem:[%s231 + $0x6f8] sm:$0xf]
        %v851 = vld [vmem:[%s231 + $0x700] sm:$0xff]
        %v852 = vld [vmem:[%s231 + $0x708] sm:$0xff]
        %v853 = vld [vmem:[%s231 + $0x710] sm:$0xff]
        %v854 = vld [vmem:[%s231 + $0x718] sm:$0xff]
        %v855 = vld [vmem:[%s231 + $0x720] sm:$0xff]
        %v856 = vld [vmem:[%s231 + $0x728] sm:$0xff]
        %v857 = vld [vmem:[%s231 + $0x730] sm:$0xff]
        %v858 = vld [vmem:[%s231 + $0x738] sm:$0xff]
        %v859 = vld [vmem:[%s231 + $0x740] sm:$0xff]
        %v860 = vld [vmem:[%s231 + $0x748] sm:$0xff]
        %v861 = vld [vmem:[%s231 + $0x750] sm:$0xff]
        %v862 = vld [vmem:[%s231 + $0x758] sm:$0xff]
        %v863 = vld [vmem:[%s231 + $0x760] sm:$0xff]
        %v864 = vld [vmem:[%s231 + $0x768] sm:$0xff]
        %v865 = vld [vmem:[%s231 + $0x770] sm:$0xff]
        %v866 = vld [vmem:[%s231 + $0x778] sm:$0xff]
        %v867 = vld [vmem:[%s231 + $0x780] sm:$0xff]
        %v868 = vld [vmem:[%s231 + $0x788] sm:$0xff]
        %v869 = vld [vmem:[%s231 + $0x790] sm:$0xff]
        %v870 = vld [vmem:[%s231 + $0x798] sm:$0xff]
        %v871 = vld [vmem:[%s231 + $0x7a0] sm:$0xff]
        %v872 = vld [vmem:[%s231 + $0x7a8] sm:$0xff]
        %v873 = vld [vmem:[%s231 + $0x7b0] sm:$0xff]
        %v874 = vld [vmem:[%s231 + $0x7b8] sm:$0xff]
        %v875 = vld [vmem:[%s231 + $0x7c0] sm:$0xff]
        %v876 = vld [vmem:[%s231 + $0x7c8] sm:$0xff]
        %v877 = vld [vmem:[%s231 + $0x7d0] sm:$0xff]
        %v878 = vld [vmem:[%s231 + $0x7d8] sm:$0xff]
        %v879 = vld [vmem:[%s231 + $0x7e0] sm:$0xf]
        %v880 = vld [vmem:[%s231 + $0x7e8] sm:$0xf]
        %v881 = vld [vmem:[%s231 + $0x7f0] sm:$0xf]
        %v882 = vld [vmem:[%s231 + $0x7f8] sm:$0xf]
        %v883 = vld [vmem:[%s231 + $0x800] sm:$0xff]
        %v884 = vld [vmem:[%s231 + $0x808] sm:$0xff]
        %v885 = vld [vmem:[%s231 + $0x810] sm:$0xff]
        %v886 = vld [vmem:[%s231 + $0x818] sm:$0xff]
        %v887 = vld [vmem:[%s231 + $0x820] sm:$0xff]
        %v888 = vld [vmem:[%s231 + $0x828] sm:$0xff]
        %v889 = vld [vmem:[%s231 + $0x830] sm:$0xff]
        %v890 = vld [vmem:[%s231 + $0x838] sm:$0xff]
        %v891 = vld [vmem:[%s231 + $0x840] sm:$0xff]
        %v892 = vld [vmem:[%s231 + $0x848] sm:$0xff]
        %v893 = vld [vmem:[%s231 + $0x850] sm:$0xff]
        %v894 = vld [vmem:[%s231 + $0x858] sm:$0xff]
        %v895 = vld [vmem:[%s231 + $0x860] sm:$0xff]
        %v896 = vld [vmem:[%s231 + $0x868] sm:$0xff]
        %v897 = vld [vmem:[%s231 + $0x870] sm:$0xff]
        %v898 = vld [vmem:[%s231 + $0x878] sm:$0xff]
        %v899 = vld [vmem:[%s231 + $0x880] sm:$0xff]
        %v900 = vld [vmem:[%s231 + $0x888] sm:$0xff]
        %v901 = vld [vmem:[%s231 + $0x890] sm:$0xff]
        %v902 = vld [vmem:[%s231 + $0x898] sm:$0xff]
        %v903 = vld [vmem:[%s231 + $0x8a0] sm:$0xff]
        %v904 = vld [vmem:[%s231 + $0x8a8] sm:$0xff]
        %v905 = vld [vmem:[%s231 + $0x8b0] sm:$0xff]
        %v906 = vld [vmem:[%s231 + $0x8b8] sm:$0xff]
        %v907 = vld [vmem:[%s231 + $0x8c0] sm:$0xff]
        %v908 = vld [vmem:[%s231 + $0x8c8] sm:$0xff]
        %v909 = vld [vmem:[%s231 + $0x8d0] sm:$0xff]
        %v910 = vld [vmem:[%s231 + $0x8d8] sm:$0xff]
        %v911 = vld [vmem:[%s231 + $0x8e0] sm:$0xf]
        %v912 = vld [vmem:[%s231 + $0x8e8] sm:$0xf]
        %v913 = vld [vmem:[%s231 + $0x8f0] sm:$0xf]
        %v914 = vld [vmem:[%s231 + $0x8f8] sm:$0xf]
        %v915 = vld [vmem:[%s231 + $0x900] sm:$0xff]
        %v916 = vld [vmem:[%s231 + $0x908] sm:$0xff]
        %v917 = vld [vmem:[%s231 + $0x910] sm:$0xff]
        %v918 = vld [vmem:[%s231 + $0x918] sm:$0xff]
        %v919 = vld [vmem:[%s231 + $0x920] sm:$0xff]
        %v920 = vld [vmem:[%s231 + $0x928] sm:$0xff]
        %v921 = vld [vmem:[%s231 + $0x930] sm:$0xff]
        %v922 = vld [vmem:[%s231 + $0x938] sm:$0xff]
        %v923 = vld [vmem:[%s231 + $0x940] sm:$0xff]
        %v924 = vld [vmem:[%s231 + $0x948] sm:$0xff]
        %v925 = vld [vmem:[%s231 + $0x950] sm:$0xff]
        %v926 = vld [vmem:[%s231 + $0x958] sm:$0xff]
        %v927 = vld [vmem:[%s231 + $0x960] sm:$0xff]
        %v928 = vld [vmem:[%s231 + $0x968] sm:$0xff]
        %v929 = vld [vmem:[%s231 + $0x970] sm:$0xff]
        %v930 = vld [vmem:[%s231 + $0x978] sm:$0xff]
        %v931 = vld [vmem:[%s231 + $0x980] sm:$0xff]
        %v932 = vld [vmem:[%s231 + $0x988] sm:$0xff]
        %v933 = vld [vmem:[%s231 + $0x990] sm:$0xff]
        %v934 = vld [vmem:[%s231 + $0x998] sm:$0xff]
        %v935 = vld [vmem:[%s231 + $0x9a0] sm:$0xff]
        %v936 = vld [vmem:[%s231 + $0x9a8] sm:$0xff]
        %v937 = vld [vmem:[%s231 + $0x9b0] sm:$0xff]
        %v938 = vld [vmem:[%s231 + $0x9b8] sm:$0xff]
        %v939 = vld [vmem:[%s231 + $0x9c0] sm:$0xff]
        %v940 = vld [vmem:[%s231 + $0x9c8] sm:$0xff]
        %v941 = vld [vmem:[%s231 + $0x9d0] sm:$0xff]
        %v942 = vld [vmem:[%s231 + $0x9d8] sm:$0xff]
        %v943 = vld [vmem:[%s231 + $0x9e0] sm:$0xf]
        %v944 = vld [vmem:[%s231 + $0x9e8] sm:$0xf]
        %v945 = vld [vmem:[%s231 + $0x9f0] sm:$0xf]
        %v946 = vld [vmem:[%s231 + $0x9f8] sm:$0xf]
        %v947 = vld [vmem:[%s231 + $0xa00] sm:$0xff]
        %v948 = vld [vmem:[%s231 + $0xa08] sm:$0xff]
        %v949 = vld [vmem:[%s231 + $0xa10] sm:$0xff]
        %v950 = vld [vmem:[%s231 + $0xa18] sm:$0xff]
        %v951 = vld [vmem:[%s231 + $0xa20] sm:$0xff]
        %v952 = vld [vmem:[%s231 + $0xa28] sm:$0xff]
        %v953 = vld [vmem:[%s231 + $0xa30] sm:$0xff]
        %v954 = vld [vmem:[%s231 + $0xa38] sm:$0xff]
        %v955 = vld [vmem:[%s231 + $0xa40] sm:$0xff]
        %v956 = vld [vmem:[%s231 + $0xa48] sm:$0xff]
        %v957 = vld [vmem:[%s231 + $0xa50] sm:$0xff]
        %v958 = vld [vmem:[%s231 + $0xa58] sm:$0xff]
        %v959 = vld [vmem:[%s231 + $0xa60] sm:$0xff]
        %v960 = vld [vmem:[%s231 + $0xa68] sm:$0xff]
        %v961 = vld [vmem:[%s231 + $0xa70] sm:$0xff]
        %v962 = vld [vmem:[%s231 + $0xa78] sm:$0xff]
        %v963 = vld [vmem:[%s231 + $0xa80] sm:$0xff]
        %v964 = vld [vmem:[%s231 + $0xa88] sm:$0xff]
        %v965 = vld [vmem:[%s231 + $0xa90] sm:$0xff]
        %v966 = vld [vmem:[%s231 + $0xa98] sm:$0xff]
        %v967 = vld [vmem:[%s231 + $0xaa0] sm:$0xff]
        %v968 = vld [vmem:[%s231 + $0xaa8] sm:$0xff]
        %v969 = vld [vmem:[%s231 + $0xab0] sm:$0xff]
        %v970 = vld [vmem:[%s231 + $0xab8] sm:$0xff]
        %v971 = vld [vmem:[%s231 + $0xac0] sm:$0xff]
        %v972 = vld [vmem:[%s231 + $0xac8] sm:$0xff]
        %v973 = vld [vmem:[%s231 + $0xad0] sm:$0xff]
        %v974 = vld [vmem:[%s231 + $0xad8] sm:$0xff]
        %v975 = vld [vmem:[%s231 + $0xae0] sm:$0xf]
        %v976 = vld [vmem:[%s231 + $0xae8] sm:$0xf]
        %v977 = vld [vmem:[%s231 + $0xaf0] sm:$0xf]
        %v978 = vld [vmem:[%s231 + $0xaf8] sm:$0xf]
        %v979 = vld [vmem:[%s231 + $0xb00] sm:$0xff]
        %v980 = vld [vmem:[%s231 + $0xb08] sm:$0xff]
        %v981 = vld [vmem:[%s231 + $0xb10] sm:$0xff]
        %v982 = vld [vmem:[%s231 + $0xb18] sm:$0xff]
        %v983 = vld [vmem:[%s231 + $0xb20] sm:$0xff]
        %v984 = vld [vmem:[%s231 + $0xb28] sm:$0xff]
        %v985 = vld [vmem:[%s231 + $0xb30] sm:$0xff]
        %v986 = vld [vmem:[%s231 + $0xb38] sm:$0xff]
        %v987 = vld [vmem:[%s231 + $0xb40] sm:$0xff]
        %v988 = vld [vmem:[%s231 + $0xb48] sm:$0xff]
        %v989 = vld [vmem:[%s231 + $0xb50] sm:$0xff]
        %v990 = vld [vmem:[%s231 + $0xb58] sm:$0xff]
        %v991 = vld [vmem:[%s231 + $0xb60] sm:$0xff]
        %v992 = vld [vmem:[%s231 + $0xb68] sm:$0xff]
        %v993 = vld [vmem:[%s231 + $0xb70] sm:$0xff]
        %v994 = vld [vmem:[%s231 + $0xb78] sm:$0xff]
        %v995 = vld [vmem:[%s231 + $0xb80] sm:$0xff]
        %v996 = vld [vmem:[%s231 + $0xb88] sm:$0xff]
        %v997 = vld [vmem:[%s231 + $0xb90] sm:$0xff]
        %v998 = vld [vmem:[%s231 + $0xb98] sm:$0xff]
        %v999 = vld [vmem:[%s231 + $0xba0] sm:$0xff]
        %v1000 = vld [vmem:[%s231 + $0xba8] sm:$0xff]
        %v1001 = vld [vmem:[%s231 + $0xbb0] sm:$0xff]
        %v1002 = vld [vmem:[%s231 + $0xbb8] sm:$0xff]
        %v1003 = vld [vmem:[%s231 + $0xbc0] sm:$0xff]
        %v1004 = vld [vmem:[%s231 + $0xbc8] sm:$0xff]
        %v1005 = vld [vmem:[%s231 + $0xbd0] sm:$0xff]
        %v1006 = vld [vmem:[%s231 + $0xbd8] sm:$0xff]
        %v1007 = vld [vmem:[%s231 + $0xbe0] sm:$0xf]
        %v1008 = vld [vmem:[%s231 + $0xbe8] sm:$0xf]
        %v1009 = vld [vmem:[%s231 + $0xbf0] sm:$0xf]
        %v1010 = vld [vmem:[%s231 + $0xbf8] sm:$0xf]
        %v1011 = vld [vmem:[%s231 + $0xc00] sm:$0xff]
        %v1012 = vld [vmem:[%s231 + $0xc08] sm:$0xff]
        %v1013 = vld [vmem:[%s231 + $0xc10] sm:$0xff]
        %v1014 = vld [vmem:[%s231 + $0xc18] sm:$0xff]
        %v1015 = vld [vmem:[%s231 + $0xc20] sm:$0xff]
        %v1016 = vld [vmem:[%s231 + $0xc28] sm:$0xff]
        %v1017 = vld [vmem:[%s231 + $0xc30] sm:$0xff]
        %v1018 = vld [vmem:[%s231 + $0xc38] sm:$0xff]
        %v1019 = vld [vmem:[%s231 + $0xc40] sm:$0xff]
        %v1020 = vld [vmem:[%s231 + $0xc48] sm:$0xff]
        %v1021 = vld [vmem:[%s231 + $0xc50] sm:$0xff]
        %v1022 = vld [vmem:[%s231 + $0xc58] sm:$0xff]
        %v1023 = vld [vmem:[%s231 + $0xc60] sm:$0xff]
        %v1024 = vld [vmem:[%s231 + $0xc68] sm:$0xff]
        %v1025 = vld [vmem:[%s231 + $0xc70] sm:$0xff]
        %v1026 = vld [vmem:[%s231 + $0xc78] sm:$0xff]
        %v1027 = vld [vmem:[%s231 + $0xc80] sm:$0xff]
        %v1028 = vld [vmem:[%s231 + $0xc88] sm:$0xff]
        %v1029 = vld [vmem:[%s231 + $0xc90] sm:$0xff]
        %v1030 = vld [vmem:[%s231 + $0xc98] sm:$0xff]
        %v1031 = vld [vmem:[%s231 + $0xca0] sm:$0xff]
        %v1032 = vld [vmem:[%s231 + $0xca8] sm:$0xff]
        %v1033 = vld [vmem:[%s231 + $0xcb0] sm:$0xff]
        %v1034 = vld [vmem:[%s231 + $0xcb8] sm:$0xff]
        %v1035 = vld [vmem:[%s231 + $0xcc0] sm:$0xff]
        %v1036 = vld [vmem:[%s231 + $0xcc8] sm:$0xff]
        %v1037 = vld [vmem:[%s231 + $0xcd0] sm:$0xff]
        %v1038 = vld [vmem:[%s231 + $0xcd8] sm:$0xff]
        %v1039 = vld [vmem:[%s231 + $0xce0] sm:$0xf]
        %v1040 = vld [vmem:[%s231 + $0xce8] sm:$0xf]
        %v1041 = vld [vmem:[%s231 + $0xcf0] sm:$0xf]
        %v1042 = vld [vmem:[%s231 + $0xcf8] sm:$0xf]
        %v1043 = vld [vmem:[%s231 + $0xd00] sm:$0xff]
        %v1044 = vld [vmem:[%s231 + $0xd08] sm:$0xff]
        %v1045 = vld [vmem:[%s231 + $0xd10] sm:$0xff]
        %v1046 = vld [vmem:[%s231 + $0xd18] sm:$0xff]
        %v1047 = vld [vmem:[%s231 + $0xd20] sm:$0xff]
        %v1048 = vld [vmem:[%s231 + $0xd28] sm:$0xff]
        %v1049 = vld [vmem:[%s231 + $0xd30] sm:$0xff]
        %v1050 = vld [vmem:[%s231 + $0xd38] sm:$0xff]
        %v1051 = vld [vmem:[%s231 + $0xd40] sm:$0xff]
        %v1052 = vld [vmem:[%s231 + $0xd48] sm:$0xff]
        %v1053 = vld [vmem:[%s231 + $0xd50] sm:$0xff]
        %v1054 = vld [vmem:[%s231 + $0xd58] sm:$0xff]
        %v1055 = vld [vmem:[%s231 + $0xd60] sm:$0xff]
        %v1056 = vld [vmem:[%s231 + $0xd68] sm:$0xff]
        %v1057 = vld [vmem:[%s231 + $0xd70] sm:$0xff]
        %v1058 = vld [vmem:[%s231 + $0xd78] sm:$0xff]
        %v1059 = vld [vmem:[%s231 + $0xd80] sm:$0xff]
        %v1060 = vld [vmem:[%s231 + $0xd88] sm:$0xff]
        %v1061 = vld [vmem:[%s231 + $0xd90] sm:$0xff]
        %v1062 = vld [vmem:[%s231 + $0xd98] sm:$0xff]
        %v1063 = vld [vmem:[%s231 + $0xda0] sm:$0xff]
        %v1064 = vld [vmem:[%s231 + $0xda8] sm:$0xff]
        %v1065 = vld [vmem:[%s231 + $0xdb0] sm:$0xff]
        %v1066 = vld [vmem:[%s231 + $0xdb8] sm:$0xff]
        %v1067 = vld [vmem:[%s231 + $0xdc0] sm:$0xff]
        %v1068 = vld [vmem:[%s231 + $0xdc8] sm:$0xff]
        %v1069 = vld [vmem:[%s231 + $0xdd0] sm:$0xff]
        %v1070 = vld [vmem:[%s231 + $0xdd8] sm:$0xff]
        %v1071 = vld [vmem:[%s231 + $0xde0] sm:$0xf]
        %v1072 = vld [vmem:[%s231 + $0xde8] sm:$0xf]
        %v1073 = vld [vmem:[%s231 + $0xdf0] sm:$0xf]
        %v1074 = vld [vmem:[%s231 + $0xdf8] sm:$0xf]
        %v1075 = vld [vmem:[%s231 + $0xe00] sm:$0xff]
        %v1076 = vld [vmem:[%s231 + $0xe08] sm:$0xff]
        %v1077 = vld [vmem:[%s231 + $0xe10] sm:$0xff]
        %v1078 = vld [vmem:[%s231 + $0xe18] sm:$0xff]
        %v1079 = vld [vmem:[%s231 + $0xe20] sm:$0xff]
        %v1080 = vld [vmem:[%s231 + $0xe28] sm:$0xff]
        %v1081 = vld [vmem:[%s231 + $0xe30] sm:$0xff]
        %v1082 = vld [vmem:[%s231 + $0xe38] sm:$0xff]
        %v1083 = vld [vmem:[%s231 + $0xe40] sm:$0xff]
        %v1084 = vld [vmem:[%s231 + $0xe48] sm:$0xff]
        %v1085 = vld [vmem:[%s231 + $0xe50] sm:$0xff]
        %v1086 = vld [vmem:[%s231 + $0xe58] sm:$0xff]
        %v1087 = vld [vmem:[%s231 + $0xe60] sm:$0xff]
        %v1088 = vld [vmem:[%s231 + $0xe68] sm:$0xff]
        %v1089 = vld [vmem:[%s231 + $0xe70] sm:$0xff]
        %v1090 = vld [vmem:[%s231 + $0xe78] sm:$0xff]
        %v1091 = vld [vmem:[%s231 + $0xe80] sm:$0xff]
        %v1092 = vld [vmem:[%s231 + $0xe88] sm:$0xff]
        %v1093 = vld [vmem:[%s231 + $0xe90] sm:$0xff]
        %v1094 = vld [vmem:[%s231 + $0xe98] sm:$0xff]
        %v1095 = vld [vmem:[%s231 + $0xea0] sm:$0xff]
        %v1096 = vld [vmem:[%s231 + $0xea8] sm:$0xff]
        %v1097 = vld [vmem:[%s231 + $0xeb0] sm:$0xff]
        %v1098 = vld [vmem:[%s231 + $0xeb8] sm:$0xff]
        %v1099 = vld [vmem:[%s231 + $0xec0] sm:$0xff]
        %v1100 = vld [vmem:[%s231 + $0xec8] sm:$0xff]
        %v1101 = vld [vmem:[%s231 + $0xed0] sm:$0xff]
        %v1102 = vld [vmem:[%s231 + $0xed8] sm:$0xff]
        %v1103 = vld [vmem:[%s231 + $0xee0] sm:$0xf]
        %v1104 = vld [vmem:[%s231 + $0xee8] sm:$0xf]
        %v1105 = vld [vmem:[%s231 + $0xef0] sm:$0xf]
        %v1106 = vld [vmem:[%s231 + $0xef8] sm:$0xf]
        %v1107 = vld [vmem:[%s231 + $0xf00] sm:$0xff]
        %v1108 = vld [vmem:[%s231 + $0xf08] sm:$0xff]
        %v1109 = vld [vmem:[%s231 + $0xf10] sm:$0xff]
        %v1110 = vld [vmem:[%s231 + $0xf18] sm:$0xff]
        %v1111 = vld [vmem:[%s231 + $0xf20] sm:$0xff]
        %v1112 = vld [vmem:[%s231 + $0xf28] sm:$0xff]
        %v1113 = vld [vmem:[%s231 + $0xf30] sm:$0xff]
        %v1114 = vld [vmem:[%s231 + $0xf38] sm:$0xff]
        %v1115 = vld [vmem:[%s231 + $0xf40] sm:$0xff]
        %v1116 = vld [vmem:[%s231 + $0xf48] sm:$0xff]
        %v1117 = vld [vmem:[%s231 + $0xf50] sm:$0xff]
        %v1118 = vld [vmem:[%s231 + $0xf58] sm:$0xff]
        %v1119 = vld [vmem:[%s231 + $0xf60] sm:$0xff]
        %v1120 = vld [vmem:[%s231 + $0xf68] sm:$0xff]
        %v1121 = vld [vmem:[%s231 + $0xf70] sm:$0xff]
        %v1122 = vld [vmem:[%s231 + $0xf78] sm:$0xff]
        %v1123 = vld [vmem:[%s231 + $0xf80] sm:$0xff]
        %v1124 = vld [vmem:[%s231 + $0xf88] sm:$0xff]
        %v1125 = vld [vmem:[%s231 + $0xf90] sm:$0xff]
        %v1126 = vld [vmem:[%s231 + $0xf98] sm:$0xff]
        %v1127 = vld [vmem:[%s231 + $0xfa0] sm:$0xff]
        %v1128 = vld [vmem:[%s231 + $0xfa8] sm:$0xff]
        %v1129 = vld [vmem:[%s231 + $0xfb0] sm:$0xff]
        %v1130 = vld [vmem:[%s231 + $0xfb8] sm:$0xff]
        %v1131 = vld [vmem:[%s231 + $0xfc0] sm:$0xff]
        %v1132 = vld [vmem:[%s231 + $0xfc8] sm:$0xff]
        %v1133 = vld [vmem:[%s231 + $0xfd0] sm:$0xff]
        %v1134 = vld [vmem:[%s231 + $0xfd8] sm:$0xff]
        %v1135 = vld [vmem:[%s231 + $0xfe0] sm:$0xf]
        %v1136 = vld [vmem:[%s231 + $0xfe8] sm:$0xf]
        %v1137 = vld [vmem:[%s231 + $0xff0] sm:$0xf]
        %v1138 = vld [vmem:[%s231 + $0xff8] sm:$0xf]
        %v1139 = vld [vmem:[%s231 + $0x1000] sm:$0xff]
        %v1140 = vld [vmem:[%s231 + $0x1008] sm:$0xff]
        %v1141 = vld [vmem:[%s231 + $0x1010] sm:$0xff]
        %v1142 = vld [vmem:[%s231 + $0x1018] sm:$0xff]
        %v1143 = vld [vmem:[%s231 + $0x1020] sm:$0xff]
        %v1144 = vld [vmem:[%s231 + $0x1028] sm:$0xff]
        %v1145 = vld [vmem:[%s231 + $0x1030] sm:$0xff]
        %v1146 = vld [vmem:[%s231 + $0x1038] sm:$0xff]
        %v1147 = vld [vmem:[%s231 + $0x1040] sm:$0xff]
        %v1148 = vld [vmem:[%s231 + $0x1048] sm:$0xff]
        %v1149 = vld [vmem:[%s231 + $0x1050] sm:$0xff]
        %v1150 = vld [vmem:[%s231 + $0x1058] sm:$0xff]
        %v1151 = vld [vmem:[%s231 + $0x1060] sm:$0xff]
        %v1152 = vld [vmem:[%s231 + $0x1068] sm:$0xff]
        %v1153 = vld [vmem:[%s231 + $0x1070] sm:$0xff]
        %v1154 = vld [vmem:[%s231 + $0x1078] sm:$0xff]
        %v1155 = vld [vmem:[%s231 + $0x1080] sm:$0xff]
        %v1156 = vld [vmem:[%s231 + $0x1088] sm:$0xff]
        %v1157 = vld [vmem:[%s231 + $0x1090] sm:$0xff]
        %v1158 = vld [vmem:[%s231 + $0x1098] sm:$0xff]
        %v1159 = vld [vmem:[%s231 + $0x10a0] sm:$0xff]
        %v1160 = vld [vmem:[%s231 + $0x10a8] sm:$0xff]
        %v1161 = vld [vmem:[%s231 + $0x10b0] sm:$0xff]
        %v1162 = vld [vmem:[%s231 + $0x10b8] sm:$0xff]
        %v1163 = vld [vmem:[%s231 + $0x10c0] sm:$0xff]
        %v1164 = vld [vmem:[%s231 + $0x10c8] sm:$0xff]
        %v1165 = vld [vmem:[%s231 + $0x10d0] sm:$0xff]
        %v1166 = vld [vmem:[%s231 + $0x10d8] sm:$0xff]
        %v1167 = vld [vmem:[%s231 + $0x10e0] sm:$0xf]
        %v1168 = vld [vmem:[%s231 + $0x10e8] sm:$0xf]
        %v1169 = vld [vmem:[%s231 + $0x10f0] sm:$0xf]
        %v1170 = vld [vmem:[%s231 + $0x10f8] sm:$0xf]
        %v1171 = vld [vmem:[%s231 + $0x1100] sm:$0xff]
        %v1172 = vld [vmem:[%s231 + $0x1108] sm:$0xff]
        %v1173 = vld [vmem:[%s231 + $0x1110] sm:$0xff]
        %v1174 = vld [vmem:[%s231 + $0x1118] sm:$0xff]
        %v1175 = vld [vmem:[%s231 + $0x1120] sm:$0xff]
        %v1176 = vld [vmem:[%s231 + $0x1128] sm:$0xff]
        %v1177 = vld [vmem:[%s231 + $0x1130] sm:$0xff]
        %v1178 = vld [vmem:[%s231 + $0x1138] sm:$0xff]
        %v1179 = vld [vmem:[%s231 + $0x1140] sm:$0xff]
        %v1180 = vld [vmem:[%s231 + $0x1148] sm:$0xff]
        %v1181 = vld [vmem:[%s231 + $0x1150] sm:$0xff]
        %v1182 = vld [vmem:[%s231 + $0x1158] sm:$0xff]
        %v1183 = vld [vmem:[%s231 + $0x1160] sm:$0xff]
        %v1184 = vld [vmem:[%s231 + $0x1168] sm:$0xff]
        %v1185 = vld [vmem:[%s231 + $0x1170] sm:$0xff]
        %v1186 = vld [vmem:[%s231 + $0x1178] sm:$0xff]
        %v1187 = vld [vmem:[%s231 + $0x1180] sm:$0xff]
        %v1188 = vld [vmem:[%s231 + $0x1188] sm:$0xff]
        %v1189 = vld [vmem:[%s231 + $0x1190] sm:$0xff]
        %v1190 = vld [vmem:[%s231 + $0x1198] sm:$0xff]
        %v1191 = vld [vmem:[%s231 + $0x11a0] sm:$0xff]
        %v1192 = vld [vmem:[%s231 + $0x11a8] sm:$0xff]
        %v1193 = vld [vmem:[%s231 + $0x11b0] sm:$0xff]
        %v1194 = vld [vmem:[%s231 + $0x11b8] sm:$0xff]
        %v1195 = vld [vmem:[%s231 + $0x11c0] sm:$0xff]
        %v1196 = vld [vmem:[%s231 + $0x11c8] sm:$0xff]
        %v1197 = vld [vmem:[%s231 + $0x11d0] sm:$0xff]
        %v1198 = vld [vmem:[%s231 + $0x11d8] sm:$0xff]
        %v1199 = vld [vmem:[%s231 + $0x11e0] sm:$0xf]
        %v1200 = vld [vmem:[%s231 + $0x11e8] sm:$0xf]
        %v1201 = vld [vmem:[%s231 + $0x11f0] sm:$0xf]
        %v1202 = vld [vmem:[%s231 + $0x11f8] sm:$0xf]
        %v1203 = vld [vmem:[%s231 + $0x1200] sm:$0xff]
        %v1204 = vld [vmem:[%s231 + $0x1208] sm:$0xff]
        %v1205 = vld [vmem:[%s231 + $0x1210] sm:$0xff]
        %v1206 = vld [vmem:[%s231 + $0x1218] sm:$0xff]
        %v1207 = vld [vmem:[%s231 + $0x1220] sm:$0xff]
        %v1208 = vld [vmem:[%s231 + $0x1228] sm:$0xff]
        %v1209 = vld [vmem:[%s231 + $0x1230] sm:$0xff]
        %v1210 = vld [vmem:[%s231 + $0x1238] sm:$0xff]
        %v1211 = vld [vmem:[%s231 + $0x1240] sm:$0xff]
        %v1212 = vld [vmem:[%s231 + $0x1248] sm:$0xff]
        %v1213 = vld [vmem:[%s231 + $0x1250] sm:$0xff]
        %v1214 = vld [vmem:[%s231 + $0x1258] sm:$0xff]
        %v1215 = vld [vmem:[%s231 + $0x1260] sm:$0xff]
        %v1216 = vld [vmem:[%s231 + $0x1268] sm:$0xff]
        %v1217 = vld [vmem:[%s231 + $0x1270] sm:$0xff]
        %v1218 = vld [vmem:[%s231 + $0x1278] sm:$0xff]
        %v1219 = vld [vmem:[%s231 + $0x1280] sm:$0xff]
        %v1220 = vld [vmem:[%s231 + $0x1288] sm:$0xff]
        %v1221 = vld [vmem:[%s231 + $0x1290] sm:$0xff]
        %v1222 = vld [vmem:[%s231 + $0x1298] sm:$0xff]
        %v1223 = vld [vmem:[%s231 + $0x12a0] sm:$0xff]
        %v1224 = vld [vmem:[%s231 + $0x12a8] sm:$0xff]
        %v1225 = vld [vmem:[%s231 + $0x12b0] sm:$0xff]
        %v1226 = vld [vmem:[%s231 + $0x12b8] sm:$0xff]
        %v1227 = vld [vmem:[%s231 + $0x12c0] sm:$0xff]
        %v1228 = vld [vmem:[%s231 + $0x12c8] sm:$0xff]
        %v1229 = vld [vmem:[%s231 + $0x12d0] sm:$0xff]
        %v1230 = vld [vmem:[%s231 + $0x12d8] sm:$0xff]
        %v1231 = vld [vmem:[%s231 + $0x12e0] sm:$0xf]
        %v1232 = vld [vmem:[%s231 + $0x12e8] sm:$0xf]
        %v1233 = vld [vmem:[%s231 + $0x12f0] sm:$0xf]
        %v1234 = vld [vmem:[%s231 + $0x12f8] sm:$0xf]
        %v1843 = vrot.slane %v627, 7
        %v1844 = vrot.slane %v628, 7
        %v1845 = vrot.slane %v629, 7
        %v1846 = vrot.slane %v630, 7
        %v1847 = vrot.slane %v631, 7
        %v1848 = vsel %vm374, %v1843, %v1847
        %v1849 = vrot.slane %v632, 7
        %v1850 = vsel %vm374, %v1844, %v1849
        %v1851 = vrot.slane %v633, 7
        %v1852 = vsel %vm374, %v1845, %v1851
        %v1853 = vrot.slane %v634, 7
        %v1854 = vsel %vm374, %v1846, %v1853
        %v1855 = vrot.slane %v635, 7
        %v1856 = vsel %vm374, %v1847, %v1855
        %v1857 = vrot.slane %v636, 7
        %v1858 = vsel %vm374, %v1849, %v1857
        %v1859 = vrot.slane %v637, 7
        %v1860 = vsel %vm374, %v1851, %v1859
        %v1861 = vrot.slane %v638, 7
        %v1862 = vsel %vm374, %v1853, %v1861
        %v1863 = vrot.slane %v639, 7
        %v1864 = vsel %vm374, %v1855, %v1863
        %v1865 = vrot.slane %v640, 7
        %v1866 = vsel %vm374, %v1857, %v1865
        %v1867 = vrot.slane %v641, 7
        %v1868 = vsel %vm374, %v1859, %v1867
        %v1869 = vrot.slane %v642, 7
        %v1870 = vsel %vm374, %v1861, %v1869
        %v1871 = vrot.slane %v643, 7
        %v1872 = vsel %vm374, %v1863, %v1871
        %v1873 = vrot.slane %v644, 7
        %v1874 = vsel %vm374, %v1865, %v1873
        %v1875 = vrot.slane %v645, 7
        %v1876 = vsel %vm374, %v1867, %v1875
        %v1877 = vrot.slane %v646, 7
        %v1878 = vsel %vm374, %v1869, %v1877
        %v1879 = vrot.slane %v647, 7
        %v1880 = vsel %vm374, %v1871, %v1879
        %v1881 = vrot.slane %v648, 7
        %v1882 = vsel %vm374, %v1873, %v1881
        %v1883 = vrot.slane %v649, 7
        %v1884 = vsel %vm374, %v1875, %v1883
        %v1885 = vrot.slane %v650, 7
        %v1886 = vsel %vm374, %v1877, %v1885
        %v1887 = vrot.slane %v651, 7
        %v1888 = vsel %vm374, %v1879, %v1887
        %v1889 = vrot.slane %v652, 7
        %v1890 = vsel %vm374, %v1881, %v1889
        %v1891 = vrot.slane %v653, 7
        %v1892 = vsel %vm374, %v1883, %v1891
        %v1893 = vrot.slane %v654, 7
        %v1894 = vsel %vm374, %v1885, %v1893
        %v1895 = vrot.slane %v655, 7
        %v1896 = vsel %vm374, %v1887, %v1895
        %v1897 = vrot.slane %v656, 7
        %v1898 = vsel %vm374, %v1889, %v1897
        %v1899 = vrot.slane %v657, 7
        %v1900 = vsel %vm374, %v1891, %v1899
        %v1901 = vrot.slane %v658, 7
        %v1902 = vsel %vm374, %v1893, %v1901
        %v1903 = vrot.slane %v659, 7
        %v1904 = vrot.slane %v660, 7
        %v1905 = vrot.slane %v661, 7
        %v1906 = vrot.slane %v662, 7
        %v1907 = vrot.slane %v663, 7
        %v1908 = vsel %vm374, %v1903, %v1907
        %v1909 = vrot.slane %v664, 7
        %v1910 = vsel %vm374, %v1904, %v1909
        %v1911 = vrot.slane %v665, 7
        %v1912 = vsel %vm374, %v1905, %v1911
        %v1913 = vrot.slane %v666, 7
        %v1914 = vsel %vm374, %v1906, %v1913
        %v1915 = vrot.slane %v667, 7
        %v1916 = vsel %vm374, %v1907, %v1915
        %v1917 = vrot.slane %v668, 7
        %v1918 = vsel %vm374, %v1909, %v1917
        %v1919 = vrot.slane %v669, 7
        %v1920 = vsel %vm374, %v1911, %v1919
        %v1921 = vrot.slane %v670, 7
        %v1922 = vsel %vm374, %v1913, %v1921
        %v1923 = vrot.slane %v671, 7
        %v1924 = vsel %vm374, %v1915, %v1923
        %v1925 = vrot.slane %v672, 7
        %v1926 = vsel %vm374, %v1917, %v1925
        %v1927 = vrot.slane %v673, 7
        %v1928 = vsel %vm374, %v1919, %v1927
        %v1929 = vrot.slane %v674, 7
        %v1930 = vsel %vm374, %v1921, %v1929
        %v1931 = vrot.slane %v675, 7
        %v1932 = vsel %vm374, %v1923, %v1931
        %v1933 = vrot.slane %v676, 7
        %v1934 = vsel %vm374, %v1925, %v1933
        %v1935 = vrot.slane %v677, 7
        %v1936 = vsel %vm374, %v1927, %v1935
        %v1937 = vrot.slane %v678, 7
        %v1938 = vsel %vm374, %v1929, %v1937
        %v1939 = vrot.slane %v679, 7
        %v1940 = vsel %vm374, %v1931, %v1939
        %v1941 = vrot.slane %v680, 7
        %v1942 = vsel %vm374, %v1933, %v1941
        %v1943 = vrot.slane %v681, 7
        %v1944 = vsel %vm374, %v1935, %v1943
        %v1945 = vrot.slane %v682, 7
        %v1946 = vsel %vm374, %v1937, %v1945
        %v1947 = vrot.slane %v683, 7
        %v1948 = vsel %vm374, %v1939, %v1947
        %v1949 = vrot.slane %v684, 7
        %v1950 = vsel %vm374, %v1941, %v1949
        %v1951 = vrot.slane %v685, 7
        %v1952 = vsel %vm374, %v1943, %v1951
        %v1953 = vrot.slane %v686, 7
        %v1954 = vsel %vm374, %v1945, %v1953
        %v1955 = vrot.slane %v687, 7
        %v1956 = vsel %vm374, %v1947, %v1955
        %v1957 = vrot.slane %v688, 7
        %v1958 = vsel %vm374, %v1949, %v1957
        %v1959 = vrot.slane %v689, 7
        %v1960 = vsel %vm374, %v1951, %v1959
        %v1961 = vrot.slane %v690, 7
        %v1962 = vsel %vm374, %v1953, %v1961
        %v1963 = vrot.slane %v691, 7
        %v1964 = vrot.slane %v692, 7
        %v1965 = vrot.slane %v693, 7
        %v1966 = vrot.slane %v694, 7
        %v1967 = vrot.slane %v695, 7
        %v1968 = vsel %vm374, %v1963, %v1967
        %v1969 = vrot.slane %v696, 7
        %v1970 = vsel %vm374, %v1964, %v1969
        %v1971 = vrot.slane %v697, 7
        %v1972 = vsel %vm374, %v1965, %v1971
        %v1973 = vrot.slane %v698, 7
        %v1974 = vsel %vm374, %v1966, %v1973
        %v1975 = vrot.slane %v699, 7
        %v1976 = vsel %vm374, %v1967, %v1975
        %v1977 = vrot.slane %v700, 7
        %v1978 = vsel %vm374, %v1969, %v1977
        %v1979 = vrot.slane %v701, 7
        %v1980 = vsel %vm374, %v1971, %v1979
        %v1981 = vrot.slane %v702, 7
        %v1982 = vsel %vm374, %v1973, %v1981
        %v1983 = vrot.slane %v703, 7
        %v1984 = vsel %vm374, %v1975, %v1983
        %v1985 = vrot.slane %v704, 7
        %v1986 = vsel %vm374, %v1977, %v1985
        %v1987 = vrot.slane %v705, 7
        %v1988 = vsel %vm374, %v1979, %v1987
        %v1989 = vrot.slane %v706, 7
        %v1990 = vsel %vm374, %v1981, %v1989
        %v1991 = vrot.slane %v707, 7
        %v1992 = vsel %vm374, %v1983, %v1991
        %v1993 = vrot.slane %v708, 7
        %v1994 = vsel %vm374, %v1985, %v1993
        %v1995 = vrot.slane %v709, 7
        %v1996 = vsel %vm374, %v1987, %v1995
        %v1997 = vrot.slane %v710, 7
        %v1998 = vsel %vm374, %v1989, %v1997
        %v1999 = vrot.slane %v711, 7
        %v2000 = vsel %vm374, %v1991, %v1999
        %v2001 = vrot.slane %v712, 7
        %v2002 = vsel %vm374, %v1993, %v2001
        %v2003 = vrot.slane %v713, 7
        %v2004 = vsel %vm374, %v1995, %v2003
        %v2005 = vrot.slane %v714, 7
        %v2006 = vsel %vm374, %v1997, %v2005
        %v2007 = vrot.slane %v715, 7
        %v2008 = vsel %vm374, %v1999, %v2007
        %v2009 = vrot.slane %v716, 7
        %v2010 = vsel %vm374, %v2001, %v2009
        %v2011 = vrot.slane %v717, 7
        %v2012 = vsel %vm374, %v2003, %v2011
        %v2013 = vrot.slane %v718, 7
        %v2014 = vsel %vm374, %v2005, %v2013
        %v2015 = vrot.slane %v719, 7
        %v2016 = vsel %vm374, %v2007, %v2015
        %v2017 = vrot.slane %v720, 7
        %v2018 = vsel %vm374, %v2009, %v2017
        %v2019 = vrot.slane %v721, 7
        %v2020 = vsel %vm374, %v2011, %v2019
        %v2021 = vrot.slane %v722, 7
        %v2022 = vsel %vm374, %v2013, %v2021
        %v2023 = vrot.slane %v723, 7
        %v2024 = vrot.slane %v724, 7
        %v2025 = vrot.slane %v725, 7
        %v2026 = vrot.slane %v726, 7
        %v2027 = vrot.slane %v727, 7
        %v2028 = vsel %vm374, %v2023, %v2027
        %v2029 = vrot.slane %v728, 7
        %v2030 = vsel %vm374, %v2024, %v2029
        %v2031 = vrot.slane %v729, 7
        %v2032 = vsel %vm374, %v2025, %v2031
        %v2033 = vrot.slane %v730, 7
        %v2034 = vsel %vm374, %v2026, %v2033
        %v2035 = vrot.slane %v731, 7
        %v2036 = vsel %vm374, %v2027, %v2035
        %v2037 = vrot.slane %v732, 7
        %v2038 = vsel %vm374, %v2029, %v2037
        %v2039 = vrot.slane %v733, 7
        %v2040 = vsel %vm374, %v2031, %v2039
        %v2041 = vrot.slane %v734, 7
        %v2042 = vsel %vm374, %v2033, %v2041
        %v2043 = vrot.slane %v735, 7
        %v2044 = vsel %vm374, %v2035, %v2043
        %v2045 = vrot.slane %v736, 7
        %v2046 = vsel %vm374, %v2037, %v2045
        %v2047 = vrot.slane %v737, 7
        %v2048 = vsel %vm374, %v2039, %v2047
        %v2049 = vrot.slane %v738, 7
        %v2050 = vsel %vm374, %v2041, %v2049
        %v2051 = vrot.slane %v739, 7
        %v2052 = vsel %vm374, %v2043, %v2051
        %v2053 = vrot.slane %v740, 7
        %v2054 = vsel %vm374, %v2045, %v2053
        %v2055 = vrot.slane %v741, 7
        %v2056 = vsel %vm374, %v2047, %v2055
        %v2057 = vrot.slane %v742, 7
        %v2058 = vsel %vm374, %v2049, %v2057
        %v2059 = vrot.slane %v743, 7
        %v2060 = vsel %vm374, %v2051, %v2059
        %v2061 = vrot.slane %v744, 7
        %v2062 = vsel %vm374, %v2053, %v2061
        %v2063 = vrot.slane %v745, 7
        %v2064 = vsel %vm374, %v2055, %v2063
        %v2065 = vrot.slane %v746, 7
        %v2066 = vsel %vm374, %v2057, %v2065
        %v2067 = vrot.slane %v747, 7
        %v2068 = vsel %vm374, %v2059, %v2067
        %v2069 = vrot.slane %v748, 7
        %v2070 = vsel %vm374, %v2061, %v2069
        %v2071 = vrot.slane %v749, 7
        %v2072 = vsel %vm374, %v2063, %v2071
        %v2073 = vrot.slane %v750, 7
        %v2074 = vsel %vm374, %v2065, %v2073
        %v2075 = vrot.slane %v751, 7
        %v2076 = vsel %vm374, %v2067, %v2075
        %v2077 = vrot.slane %v752, 7
        %v2078 = vsel %vm374, %v2069, %v2077
        %v2079 = vrot.slane %v753, 7
        %v2080 = vsel %vm374, %v2071, %v2079
        %v2081 = vrot.slane %v754, 7
        %v2082 = vsel %vm374, %v2073, %v2081
        %v2083 = vrot.slane %v755, 7
        %v2084 = vrot.slane %v756, 7
        %v2085 = vrot.slane %v757, 7
        %v2086 = vrot.slane %v758, 7
        %v2087 = vrot.slane %v759, 7
        %v2088 = vsel %vm374, %v2083, %v2087
        %v2089 = vrot.slane %v760, 7
        %v2090 = vsel %vm374, %v2084, %v2089
        %v2091 = vrot.slane %v761, 7
        %v2092 = vsel %vm374, %v2085, %v2091
        %v2093 = vrot.slane %v762, 7
        %v2094 = vsel %vm374, %v2086, %v2093
        %v2095 = vrot.slane %v763, 7
        %v2096 = vsel %vm374, %v2087, %v2095
        %v2097 = vrot.slane %v764, 7
        %v2098 = vsel %vm374, %v2089, %v2097
        %v2099 = vrot.slane %v765, 7
        %v2100 = vsel %vm374, %v2091, %v2099
        %v2101 = vrot.slane %v766, 7
        %v2102 = vsel %vm374, %v2093, %v2101
        %v2103 = vrot.slane %v767, 7
        %v2104 = vsel %vm374, %v2095, %v2103
        %v2105 = vrot.slane %v768, 7
        %v2106 = vsel %vm374, %v2097, %v2105
        %v2107 = vrot.slane %v769, 7
        %v2108 = vsel %vm374, %v2099, %v2107
        %v2109 = vrot.slane %v770, 7
        %v2110 = vsel %vm374, %v2101, %v2109
        %v2111 = vrot.slane %v771, 7
        %v2112 = vsel %vm374, %v2103, %v2111
        %v2113 = vrot.slane %v772, 7
        %v2114 = vsel %vm374, %v2105, %v2113
        %v2115 = vrot.slane %v773, 7
        %v2116 = vsel %vm374, %v2107, %v2115
        %v2117 = vrot.slane %v774, 7
        %v2118 = vsel %vm374, %v2109, %v2117
        %v2119 = vrot.slane %v775, 7
        %v2120 = vsel %vm374, %v2111, %v2119
        %v2121 = vrot.slane %v776, 7
        %v2122 = vsel %vm374, %v2113, %v2121
        %v2123 = vrot.slane %v777, 7
        %v2124 = vsel %vm374, %v2115, %v2123
        %v2125 = vrot.slane %v778, 7
        %v2126 = vsel %vm374, %v2117, %v2125
        %v2127 = vrot.slane %v779, 7
        %v2128 = vsel %vm374, %v2119, %v2127
        %v2129 = vrot.slane %v780, 7
        %v2130 = vsel %vm374, %v2121, %v2129
        %v2131 = vrot.slane %v781, 7
        %v2132 = vsel %vm374, %v2123, %v2131
        %v2133 = vrot.slane %v782, 7
        %v2134 = vsel %vm374, %v2125, %v2133
        %v2135 = vrot.slane %v783, 7
        %v2136 = vsel %vm374, %v2127, %v2135
        %v2137 = vrot.slane %v784, 7
        %v2138 = vsel %vm374, %v2129, %v2137
        %v2139 = vrot.slane %v785, 7
        %v2140 = vsel %vm374, %v2131, %v2139
        %v2141 = vrot.slane %v786, 7
        %v2142 = vsel %vm374, %v2133, %v2141
        %v2143 = vrot.slane %v787, 7
        %v2144 = vrot.slane %v788, 7
        %v2145 = vrot.slane %v789, 7
        %v2146 = vrot.slane %v790, 7
        %v2147 = vrot.slane %v791, 7
        %v2148 = vsel %vm374, %v2143, %v2147
        %v2149 = vrot.slane %v792, 7
        %v2150 = vsel %vm374, %v2144, %v2149
        %v2151 = vrot.slane %v793, 7
        %v2152 = vsel %vm374, %v2145, %v2151
        %v2153 = vrot.slane %v794, 7
        %v2154 = vsel %vm374, %v2146, %v2153
        %v2155 = vrot.slane %v795, 7
        %v2156 = vsel %vm374, %v2147, %v2155
        %v2157 = vrot.slane %v796, 7
        %v2158 = vsel %vm374, %v2149, %v2157
        %v2159 = vrot.slane %v797, 7
        %v2160 = vsel %vm374, %v2151, %v2159
        %v2161 = vrot.slane %v798, 7
        %v2162 = vsel %vm374, %v2153, %v2161
        %v2163 = vrot.slane %v799, 7
        %v2164 = vsel %vm374, %v2155, %v2163
        %v2165 = vrot.slane %v800, 7
        %v2166 = vsel %vm374, %v2157, %v2165
        %v2167 = vrot.slane %v801, 7
        %v2168 = vsel %vm374, %v2159, %v2167
        %v2169 = vrot.slane %v802, 7
        %v2170 = vsel %vm374, %v2161, %v2169
        %v2171 = vrot.slane %v803, 7
        %v2172 = vsel %vm374, %v2163, %v2171
        %v2173 = vrot.slane %v804, 7
        %v2174 = vsel %vm374, %v2165, %v2173
        %v2175 = vrot.slane %v805, 7
        %v2176 = vsel %vm374, %v2167, %v2175
        %v2177 = vrot.slane %v806, 7
        %v2178 = vsel %vm374, %v2169, %v2177
        %v2179 = vrot.slane %v807, 7
        %v2180 = vsel %vm374, %v2171, %v2179
        %v2181 = vrot.slane %v808, 7
        %v2182 = vsel %vm374, %v2173, %v2181
        %v2183 = vrot.slane %v809, 7
        %v2184 = vsel %vm374, %v2175, %v2183
        %v2185 = vrot.slane %v810, 7
        %v2186 = vsel %vm374, %v2177, %v2185
        %v2187 = vrot.slane %v811, 7
        %v2188 = vsel %vm374, %v2179, %v2187
        %v2189 = vrot.slane %v812, 7
        %v2190 = vsel %vm374, %v2181, %v2189
        %v2191 = vrot.slane %v813, 7
        %v2192 = vsel %vm374, %v2183, %v2191
        %v2193 = vrot.slane %v814, 7
        %v2194 = vsel %vm374, %v2185, %v2193
        %v2195 = vrot.slane %v815, 7
        %v2196 = vsel %vm374, %v2187, %v2195
        %v2197 = vrot.slane %v816, 7
        %v2198 = vsel %vm374, %v2189, %v2197
        %v2199 = vrot.slane %v817, 7
        %v2200 = vsel %vm374, %v2191, %v2199
        %v2201 = vrot.slane %v818, 7
        %v2202 = vsel %vm374, %v2193, %v2201
        %v2203 = vrot.slane %v819, 7
        %v2204 = vrot.slane %v820, 7
        %v2205 = vrot.slane %v821, 7
        %v2206 = vrot.slane %v822, 7
        %v2207 = vrot.slane %v823, 7
        %v2208 = vsel %vm374, %v2203, %v2207
        %v2209 = vrot.slane %v824, 7
        %v2210 = vsel %vm374, %v2204, %v2209
        %v2211 = vrot.slane %v825, 7
        %v2212 = vsel %vm374, %v2205, %v2211
        %v2213 = vrot.slane %v826, 7
        %v2214 = vsel %vm374, %v2206, %v2213
        %v2215 = vrot.slane %v827, 7
        %v2216 = vsel %vm374, %v2207, %v2215
        %v2217 = vrot.slane %v828, 7
        %v2218 = vsel %vm374, %v2209, %v2217
        %v2219 = vrot.slane %v829, 7
        %v2220 = vsel %vm374, %v2211, %v2219
        %v2221 = vrot.slane %v830, 7
        %v2222 = vsel %vm374, %v2213, %v2221
        %v2223 = vrot.slane %v831, 7
        %v2224 = vsel %vm374, %v2215, %v2223
        %v2225 = vrot.slane %v832, 7
        %v2226 = vsel %vm374, %v2217, %v2225
        %v2227 = vrot.slane %v833, 7
        %v2228 = vsel %vm374, %v2219, %v2227
        %v2229 = vrot.slane %v834, 7
        %v2230 = vsel %vm374, %v2221, %v2229
        %v2231 = vrot.slane %v835, 7
        %v2232 = vsel %vm374, %v2223, %v2231
        %v2233 = vrot.slane %v836, 7
        %v2234 = vsel %vm374, %v2225, %v2233
        %v2235 = vrot.slane %v837, 7
        %v2236 = vsel %vm374, %v2227, %v2235
        %v2237 = vrot.slane %v838, 7
        %v2238 = vsel %vm374, %v2229, %v2237
        %v2239 = vrot.slane %v839, 7
        %v2240 = vsel %vm374, %v2231, %v2239
        %v2241 = vrot.slane %v840, 7
        %v2242 = vsel %vm374, %v2233, %v2241
        %v2243 = vrot.slane %v841, 7
        %v2244 = vsel %vm374, %v2235, %v2243
        %v2245 = vrot.slane %v842, 7
        %v2246 = vsel %vm374, %v2237, %v2245
        %v2247 = vrot.slane %v843, 7
        %v2248 = vsel %vm374, %v2239, %v2247
        %v2249 = vrot.slane %v844, 7
        %v2250 = vsel %vm374, %v2241, %v2249
        %v2251 = vrot.slane %v845, 7
        %v2252 = vsel %vm374, %v2243, %v2251
        %v2253 = vrot.slane %v846, 7
        %v2254 = vsel %vm374, %v2245, %v2253
        %v2255 = vrot.slane %v847, 7
        %v2256 = vsel %vm374, %v2247, %v2255
        %v2257 = vrot.slane %v848, 7
        %v2258 = vsel %vm374, %v2249, %v2257
        %v2259 = vrot.slane %v849, 7
        %v2260 = vsel %vm374, %v2251, %v2259
        %v2261 = vrot.slane %v850, 7
        %v2262 = vsel %vm374, %v2253, %v2261
        %v2263 = vrot.slane %v851, 7
        %v2264 = vrot.slane %v852, 7
        %v2265 = vrot.slane %v853, 7
        %v2266 = vrot.slane %v854, 7
        %v2267 = vrot.slane %v855, 7
        %v2268 = vsel %vm374, %v2263, %v2267
        %v2269 = vrot.slane %v856, 7
        %v2270 = vsel %vm374, %v2264, %v2269
        %v2271 = vrot.slane %v857, 7
        %v2272 = vsel %vm374, %v2265, %v2271
        %v2273 = vrot.slane %v858, 7
        %v2274 = vsel %vm374, %v2266, %v2273
        %v2275 = vrot.slane %v859, 7
        %v2276 = vsel %vm374, %v2267, %v2275
        %v2277 = vrot.slane %v860, 7
        %v2278 = vsel %vm374, %v2269, %v2277
        %v2279 = vrot.slane %v861, 7
        %v2280 = vsel %vm374, %v2271, %v2279
        %v2281 = vrot.slane %v862, 7
        %v2282 = vsel %vm374, %v2273, %v2281
        %v2283 = vrot.slane %v863, 7
        %v2284 = vsel %vm374, %v2275, %v2283
        %v2285 = vrot.slane %v864, 7
        %v2286 = vsel %vm374, %v2277, %v2285
        %v2287 = vrot.slane %v865, 7
        %v2288 = vsel %vm374, %v2279, %v2287
        %v2289 = vrot.slane %v866, 7
        %v2290 = vsel %vm374, %v2281, %v2289
        %v2291 = vrot.slane %v867, 7
        %v2292 = vsel %vm374, %v2283, %v2291
        %v2293 = vrot.slane %v868, 7
        %v2294 = vsel %vm374, %v2285, %v2293
        %v2295 = vrot.slane %v869, 7
        %v2296 = vsel %vm374, %v2287, %v2295
        %v2297 = vrot.slane %v870, 7
        %v2298 = vsel %vm374, %v2289, %v2297
        %v2299 = vrot.slane %v871, 7
        %v2300 = vsel %vm374, %v2291, %v2299
        %v2301 = vrot.slane %v872, 7
        %v2302 = vsel %vm374, %v2293, %v2301
        %v2303 = vrot.slane %v873, 7
        %v2304 = vsel %vm374, %v2295, %v2303
        %v2305 = vrot.slane %v874, 7
        %v2306 = vsel %vm374, %v2297, %v2305
        %v2307 = vrot.slane %v875, 7
        %v2308 = vsel %vm374, %v2299, %v2307
        %v2309 = vrot.slane %v876, 7
        %v2310 = vsel %vm374, %v2301, %v2309
        %v2311 = vrot.slane %v877, 7
        %v2312 = vsel %vm374, %v2303, %v2311
        %v2313 = vrot.slane %v878, 7
        %v2314 = vsel %vm374, %v2305, %v2313
        %v2315 = vrot.slane %v879, 7
        %v2316 = vsel %vm374, %v2307, %v2315
        %v2317 = vrot.slane %v880, 7
        %v2318 = vsel %vm374, %v2309, %v2317
        %v2319 = vrot.slane %v881, 7
        %v2320 = vsel %vm374, %v2311, %v2319
        %v2321 = vrot.slane %v882, 7
        %v2322 = vsel %vm374, %v2313, %v2321
        %v2323 = vrot.slane %v883, 7
        %v2324 = vrot.slane %v884, 7
        %v2325 = vrot.slane %v885, 7
        %v2326 = vrot.slane %v886, 7
        %v2327 = vrot.slane %v887, 7
        %v2328 = vsel %vm374, %v2323, %v2327
        %v2329 = vrot.slane %v888, 7
        %v2330 = vsel %vm374, %v2324, %v2329
        %v2331 = vrot.slane %v889, 7
        %v2332 = vsel %vm374, %v2325, %v2331
        %v2333 = vrot.slane %v890, 7
        %v2334 = vsel %vm374, %v2326, %v2333
        %v2335 = vrot.slane %v891, 7
        %v2336 = vsel %vm374, %v2327, %v2335
        %v2337 = vrot.slane %v892, 7
        %v2338 = vsel %vm374, %v2329, %v2337
        %v2339 = vrot.slane %v893, 7
        %v2340 = vsel %vm374, %v2331, %v2339
        %v2341 = vrot.slane %v894, 7
        %v2342 = vsel %vm374, %v2333, %v2341
        %v2343 = vrot.slane %v895, 7
        %v2344 = vsel %vm374, %v2335, %v2343
        %v2345 = vrot.slane %v896, 7
        %v2346 = vsel %vm374, %v2337, %v2345
        %v2347 = vrot.slane %v897, 7
        %v2348 = vsel %vm374, %v2339, %v2347
        %v2349 = vrot.slane %v898, 7
        %v2350 = vsel %vm374, %v2341, %v2349
        %v2351 = vrot.slane %v899, 7
        %v2352 = vsel %vm374, %v2343, %v2351
        %v2353 = vrot.slane %v900, 7
        %v2354 = vsel %vm374, %v2345, %v2353
        %v2355 = vrot.slane %v901, 7
        %v2356 = vsel %vm374, %v2347, %v2355
        %v2357 = vrot.slane %v902, 7
        %v2358 = vsel %vm374, %v2349, %v2357
        %v2359 = vrot.slane %v903, 7
        %v2360 = vsel %vm374, %v2351, %v2359
        %v2361 = vrot.slane %v904, 7
        %v2362 = vsel %vm374, %v2353, %v2361
        %v2363 = vrot.slane %v905, 7
        %v2364 = vsel %vm374, %v2355, %v2363
        %v2365 = vrot.slane %v906, 7
        %v2366 = vsel %vm374, %v2357, %v2365
        %v2367 = vrot.slane %v907, 7
        %v2368 = vsel %vm374, %v2359, %v2367
        %v2369 = vrot.slane %v908, 7
        %v2370 = vsel %vm374, %v2361, %v2369
        %v2371 = vrot.slane %v909, 7
        %v2372 = vsel %vm374, %v2363, %v2371
        %v2373 = vrot.slane %v910, 7
        %v2374 = vsel %vm374, %v2365, %v2373
        %v2375 = vrot.slane %v911, 7
        %v2376 = vsel %vm374, %v2367, %v2375
        %v2377 = vrot.slane %v912, 7
        %v2378 = vsel %vm374, %v2369, %v2377
        %v2379 = vrot.slane %v913, 7
        %v2380 = vsel %vm374, %v2371, %v2379
        %v2381 = vrot.slane %v914, 7
        %v2382 = vsel %vm374, %v2373, %v2381
        %v2383 = vrot.slane %v915, 7
        %v2384 = vrot.slane %v916, 7
        %v2385 = vrot.slane %v917, 7
        %v2386 = vrot.slane %v918, 7
        %v2387 = vrot.slane %v919, 7
        %v2388 = vsel %vm374, %v2383, %v2387
        %v2389 = vrot.slane %v920, 7
        %v2390 = vsel %vm374, %v2384, %v2389
        %v2391 = vrot.slane %v921, 7
        %v2392 = vsel %vm374, %v2385, %v2391
        %v2393 = vrot.slane %v922, 7
        %v2394 = vsel %vm374, %v2386, %v2393
        %v2395 = vrot.slane %v923, 7
        %v2396 = vsel %vm374, %v2387, %v2395
        %v2397 = vrot.slane %v924, 7
        %v2398 = vsel %vm374, %v2389, %v2397
        %v2399 = vrot.slane %v925, 7
        %v2400 = vsel %vm374, %v2391, %v2399
        %v2401 = vrot.slane %v926, 7
        %v2402 = vsel %vm374, %v2393, %v2401
        %v2403 = vrot.slane %v927, 7
        %v2404 = vsel %vm374, %v2395, %v2403
        %v2405 = vrot.slane %v928, 7
        %v2406 = vsel %vm374, %v2397, %v2405
        %v2407 = vrot.slane %v929, 7
        %v2408 = vsel %vm374, %v2399, %v2407
        %v2409 = vrot.slane %v930, 7
        %v2410 = vsel %vm374, %v2401, %v2409
        %v2411 = vrot.slane %v931, 7
        %v2412 = vsel %vm374, %v2403, %v2411
        %v2413 = vrot.slane %v932, 7
        %v2414 = vsel %vm374, %v2405, %v2413
        %v2415 = vrot.slane %v933, 7
        %v2416 = vsel %vm374, %v2407, %v2415
        %v2417 = vrot.slane %v934, 7
        %v2418 = vsel %vm374, %v2409, %v2417
        %v2419 = vrot.slane %v935, 7
        %v2420 = vsel %vm374, %v2411, %v2419
        %v2421 = vrot.slane %v936, 7
        %v2422 = vsel %vm374, %v2413, %v2421
        %v2423 = vrot.slane %v937, 7
        %v2424 = vsel %vm374, %v2415, %v2423
        %v2425 = vrot.slane %v938, 7
        %v2426 = vsel %vm374, %v2417, %v2425
        %v2427 = vrot.slane %v939, 7
        %v2428 = vsel %vm374, %v2419, %v2427
        %v2429 = vrot.slane %v940, 7
        %v2430 = vsel %vm374, %v2421, %v2429
        %v2431 = vrot.slane %v941, 7
        %v2432 = vsel %vm374, %v2423, %v2431
        %v2433 = vrot.slane %v942, 7
        %v2434 = vsel %vm374, %v2425, %v2433
        %v2435 = vrot.slane %v943, 7
        %v2436 = vsel %vm374, %v2427, %v2435
        %v2437 = vrot.slane %v944, 7
        %v2438 = vsel %vm374, %v2429, %v2437
        %v2439 = vrot.slane %v945, 7
        %v2440 = vsel %vm374, %v2431, %v2439
        %v2441 = vrot.slane %v946, 7
        %v2442 = vsel %vm374, %v2433, %v2441
        %v2443 = vrot.slane %v947, 7
        %v2444 = vrot.slane %v948, 7
        %v2445 = vrot.slane %v949, 7
        %v2446 = vrot.slane %v950, 7
        %v2447 = vrot.slane %v951, 7
        %v2448 = vsel %vm374, %v2443, %v2447
        %v2449 = vrot.slane %v952, 7
        %v2450 = vsel %vm374, %v2444, %v2449
        %v2451 = vrot.slane %v953, 7
        %v2452 = vsel %vm374, %v2445, %v2451
        %v2453 = vrot.slane %v954, 7
        %v2454 = vsel %vm374, %v2446, %v2453
        %v2455 = vrot.slane %v955, 7
        %v2456 = vsel %vm374, %v2447, %v2455
        %v2457 = vrot.slane %v956, 7
        %v2458 = vsel %vm374, %v2449, %v2457
        %v2459 = vrot.slane %v957, 7
        %v2460 = vsel %vm374, %v2451, %v2459
        %v2461 = vrot.slane %v958, 7
        %v2462 = vsel %vm374, %v2453, %v2461
        %v2463 = vrot.slane %v959, 7
        %v2464 = vsel %vm374, %v2455, %v2463
        %v2465 = vrot.slane %v960, 7
        %v2466 = vsel %vm374, %v2457, %v2465
        %v2467 = vrot.slane %v961, 7
        %v2468 = vsel %vm374, %v2459, %v2467
        %v2469 = vrot.slane %v962, 7
        %v2470 = vsel %vm374, %v2461, %v2469
        %v2471 = vrot.slane %v963, 7
        %v2472 = vsel %vm374, %v2463, %v2471
        %v2473 = vrot.slane %v964, 7
        %v2474 = vsel %vm374, %v2465, %v2473
        %v2475 = vrot.slane %v965, 7
        %v2476 = vsel %vm374, %v2467, %v2475
        %v2477 = vrot.slane %v966, 7
        %v2478 = vsel %vm374, %v2469, %v2477
        %v2479 = vrot.slane %v967, 7
        %v2480 = vsel %vm374, %v2471, %v2479
        %v2481 = vrot.slane %v968, 7
        %v2482 = vsel %vm374, %v2473, %v2481
        %v2483 = vrot.slane %v969, 7
        %v2484 = vsel %vm374, %v2475, %v2483
        %v2485 = vrot.slane %v970, 7
        %v2486 = vsel %vm374, %v2477, %v2485
        %v2487 = vrot.slane %v971, 7
        %v2488 = vsel %vm374, %v2479, %v2487
        %v2489 = vrot.slane %v972, 7
        %v2490 = vsel %vm374, %v2481, %v2489
        %v2491 = vrot.slane %v973, 7
        %v2492 = vsel %vm374, %v2483, %v2491
        %v2493 = vrot.slane %v974, 7
        %v2494 = vsel %vm374, %v2485, %v2493
        %v2495 = vrot.slane %v975, 7
        %v2496 = vsel %vm374, %v2487, %v2495
        %v2497 = vrot.slane %v976, 7
        %v2498 = vsel %vm374, %v2489, %v2497
        %v2499 = vrot.slane %v977, 7
        %v2500 = vsel %vm374, %v2491, %v2499
        %v2501 = vrot.slane %v978, 7
        %v2502 = vsel %vm374, %v2493, %v2501
        %v2503 = vrot.slane %v979, 7
        %v2504 = vrot.slane %v980, 7
        %v2505 = vrot.slane %v981, 7
        %v2506 = vrot.slane %v982, 7
        %v2507 = vrot.slane %v983, 7
        %v2508 = vsel %vm374, %v2503, %v2507
        %v2509 = vrot.slane %v984, 7
        %v2510 = vsel %vm374, %v2504, %v2509
        %v2511 = vrot.slane %v985, 7
        %v2512 = vsel %vm374, %v2505, %v2511
        %v2513 = vrot.slane %v986, 7
        %v2514 = vsel %vm374, %v2506, %v2513
        %v2515 = vrot.slane %v987, 7
        %v2516 = vsel %vm374, %v2507, %v2515
        %v2517 = vrot.slane %v988, 7
        %v2518 = vsel %vm374, %v2509, %v2517
        %v2519 = vrot.slane %v989, 7
        %v2520 = vsel %vm374, %v2511, %v2519
        %v2521 = vrot.slane %v990, 7
        %v2522 = vsel %vm374, %v2513, %v2521
        %v2523 = vrot.slane %v991, 7
        %v2524 = vsel %vm374, %v2515, %v2523
        %v2525 = vrot.slane %v992, 7
        %v2526 = vsel %vm374, %v2517, %v2525
        %v2527 = vrot.slane %v993, 7
        %v2528 = vsel %vm374, %v2519, %v2527
        %v2529 = vrot.slane %v994, 7
        %v2530 = vsel %vm374, %v2521, %v2529
        %v2531 = vrot.slane %v995, 7
        %v2532 = vsel %vm374, %v2523, %v2531
        %v2533 = vrot.slane %v996, 7
        %v2534 = vsel %vm374, %v2525, %v2533
        %v2535 = vrot.slane %v997, 7
        %v2536 = vsel %vm374, %v2527, %v2535
        %v2537 = vrot.slane %v998, 7
        %v2538 = vsel %vm374, %v2529, %v2537
        %v2539 = vrot.slane %v999, 7
        %v2540 = vsel %vm374, %v2531, %v2539
        %v2541 = vrot.slane %v1000, 7
        %v2542 = vsel %vm374, %v2533, %v2541
        %v2543 = vrot.slane %v1001, 7
        %v2544 = vsel %vm374, %v2535, %v2543
        %v2545 = vrot.slane %v1002, 7
        %v2546 = vsel %vm374, %v2537, %v2545
        %v2547 = vrot.slane %v1003, 7
        %v2548 = vsel %vm374, %v2539, %v2547
        %v2549 = vrot.slane %v1004, 7
        %v2550 = vsel %vm374, %v2541, %v2549
        %v2551 = vrot.slane %v1005, 7
        %v2552 = vsel %vm374, %v2543, %v2551
        %v2553 = vrot.slane %v1006, 7
        %v2554 = vsel %vm374, %v2545, %v2553
        %v2555 = vrot.slane %v1007, 7
        %v2556 = vsel %vm374, %v2547, %v2555
        %v2557 = vrot.slane %v1008, 7
        %v2558 = vsel %vm374, %v2549, %v2557
        %v2559 = vrot.slane %v1009, 7
        %v2560 = vsel %vm374, %v2551, %v2559
        %v2561 = vrot.slane %v1010, 7
        %v2562 = vsel %vm374, %v2553, %v2561
        %v2563 = vrot.slane %v1011, 7
        %v2564 = vrot.slane %v1012, 7
        %v2565 = vrot.slane %v1013, 7
        %v2566 = vrot.slane %v1014, 7
        %v2567 = vrot.slane %v1015, 7
        %v2568 = vsel %vm374, %v2563, %v2567
        %v2569 = vrot.slane %v1016, 7
        %v2570 = vsel %vm374, %v2564, %v2569
        %v2571 = vrot.slane %v1017, 7
        %v2572 = vsel %vm374, %v2565, %v2571
        %v2573 = vrot.slane %v1018, 7
        %v2574 = vsel %vm374, %v2566, %v2573
        %v2575 = vrot.slane %v1019, 7
        %v2576 = vsel %vm374, %v2567, %v2575
        %v2577 = vrot.slane %v1020, 7
        %v2578 = vsel %vm374, %v2569, %v2577
        %v2579 = vrot.slane %v1021, 7
        %v2580 = vsel %vm374, %v2571, %v2579
        %v2581 = vrot.slane %v1022, 7
        %v2582 = vsel %vm374, %v2573, %v2581
        %v2583 = vrot.slane %v1023, 7
        %v2584 = vsel %vm374, %v2575, %v2583
        %v2585 = vrot.slane %v1024, 7
        %v2586 = vsel %vm374, %v2577, %v2585
        %v2587 = vrot.slane %v1025, 7
        %v2588 = vsel %vm374, %v2579, %v2587
        %v2589 = vrot.slane %v1026, 7
        %v2590 = vsel %vm374, %v2581, %v2589
        %v2591 = vrot.slane %v1027, 7
        %v2592 = vsel %vm374, %v2583, %v2591
        %v2593 = vrot.slane %v1028, 7
        %v2594 = vsel %vm374, %v2585, %v2593
        %v2595 = vrot.slane %v1029, 7
        %v2596 = vsel %vm374, %v2587, %v2595
        %v2597 = vrot.slane %v1030, 7
        %v2598 = vsel %vm374, %v2589, %v2597
        %v2599 = vrot.slane %v1031, 7
        %v2600 = vsel %vm374, %v2591, %v2599
        %v2601 = vrot.slane %v1032, 7
        %v2602 = vsel %vm374, %v2593, %v2601
        %v2603 = vrot.slane %v1033, 7
        %v2604 = vsel %vm374, %v2595, %v2603
        %v2605 = vrot.slane %v1034, 7
        %v2606 = vsel %vm374, %v2597, %v2605
        %v2607 = vrot.slane %v1035, 7
        %v2608 = vsel %vm374, %v2599, %v2607
        %v2609 = vrot.slane %v1036, 7
        %v2610 = vsel %vm374, %v2601, %v2609
        %v2611 = vrot.slane %v1037, 7
        %v2612 = vsel %vm374, %v2603, %v2611
        %v2613 = vrot.slane %v1038, 7
        %v2614 = vsel %vm374, %v2605, %v2613
        %v2615 = vrot.slane %v1039, 7
        %v2616 = vsel %vm374, %v2607, %v2615
        %v2617 = vrot.slane %v1040, 7
        %v2618 = vsel %vm374, %v2609, %v2617
        %v2619 = vrot.slane %v1041, 7
        %v2620 = vsel %vm374, %v2611, %v2619
        %v2621 = vrot.slane %v1042, 7
        %v2622 = vsel %vm374, %v2613, %v2621
        %v2623 = vrot.slane %v1043, 7
        %v2624 = vrot.slane %v1044, 7
        %v2625 = vrot.slane %v1045, 7
        %v2626 = vrot.slane %v1046, 7
        %v2627 = vrot.slane %v1047, 7
        %v2628 = vsel %vm374, %v2623, %v2627
        %v2629 = vrot.slane %v1048, 7
        %v2630 = vsel %vm374, %v2624, %v2629
        %v2631 = vrot.slane %v1049, 7
        %v2632 = vsel %vm374, %v2625, %v2631
        %v2633 = vrot.slane %v1050, 7
        %v2634 = vsel %vm374, %v2626, %v2633
        %v2635 = vrot.slane %v1051, 7
        %v2636 = vsel %vm374, %v2627, %v2635
        %v2637 = vrot.slane %v1052, 7
        %v2638 = vsel %vm374, %v2629, %v2637
        %v2639 = vrot.slane %v1053, 7
        %v2640 = vsel %vm374, %v2631, %v2639
        %v2641 = vrot.slane %v1054, 7
        %v2642 = vsel %vm374, %v2633, %v2641
        %v2643 = vrot.slane %v1055, 7
        %v2644 = vsel %vm374, %v2635, %v2643
        %v2645 = vrot.slane %v1056, 7
        %v2646 = vsel %vm374, %v2637, %v2645
        %v2647 = vrot.slane %v1057, 7
        %v2648 = vsel %vm374, %v2639, %v2647
        %v2649 = vrot.slane %v1058, 7
        %v2650 = vsel %vm374, %v2641, %v2649
        %v2651 = vrot.slane %v1059, 7
        %v2652 = vsel %vm374, %v2643, %v2651
        %v2653 = vrot.slane %v1060, 7
        %v2654 = vsel %vm374, %v2645, %v2653
        %v2655 = vrot.slane %v1061, 7
        %v2656 = vsel %vm374, %v2647, %v2655
        %v2657 = vrot.slane %v1062, 7
        %v2658 = vsel %vm374, %v2649, %v2657
        %v2659 = vrot.slane %v1063, 7
        %v2660 = vsel %vm374, %v2651, %v2659
        %v2661 = vrot.slane %v1064, 7
        %v2662 = vsel %vm374, %v2653, %v2661
        %v2663 = vrot.slane %v1065, 7
        %v2664 = vsel %vm374, %v2655, %v2663
        %v2665 = vrot.slane %v1066, 7
        %v2666 = vsel %vm374, %v2657, %v2665
        %v2667 = vrot.slane %v1067, 7
        %v2668 = vsel %vm374, %v2659, %v2667
        %v2669 = vrot.slane %v1068, 7
        %v2670 = vsel %vm374, %v2661, %v2669
        %v2671 = vrot.slane %v1069, 7
        %v2672 = vsel %vm374, %v2663, %v2671
        %v2673 = vrot.slane %v1070, 7
        %v2674 = vsel %vm374, %v2665, %v2673
        %v2675 = vrot.slane %v1071, 7
        %v2676 = vsel %vm374, %v2667, %v2675
        %v2677 = vrot.slane %v1072, 7
        %v2678 = vsel %vm374, %v2669, %v2677
        %v2679 = vrot.slane %v1073, 7
        %v2680 = vsel %vm374, %v2671, %v2679
        %v2681 = vrot.slane %v1074, 7
        %v2682 = vsel %vm374, %v2673, %v2681
        %v2683 = vrot.slane %v1075, 7
        %v2684 = vrot.slane %v1076, 7
        %v2685 = vrot.slane %v1077, 7
        %v2686 = vrot.slane %v1078, 7
        %v2687 = vrot.slane %v1079, 7
        %v2688 = vsel %vm374, %v2683, %v2687
        %v2689 = vrot.slane %v1080, 7
        %v2690 = vsel %vm374, %v2684, %v2689
        %v2691 = vrot.slane %v1081, 7
        %v2692 = vsel %vm374, %v2685, %v2691
        %v2693 = vrot.slane %v1082, 7
        %v2694 = vsel %vm374, %v2686, %v2693
        %v2695 = vrot.slane %v1083, 7
        %v2696 = vsel %vm374, %v2687, %v2695
        %v2697 = vrot.slane %v1084, 7
        %v2698 = vsel %vm374, %v2689, %v2697
        %v2699 = vrot.slane %v1085, 7
        %v2700 = vsel %vm374, %v2691, %v2699
        %v2701 = vrot.slane %v1086, 7
        %v2702 = vsel %vm374, %v2693, %v2701
        %v2703 = vrot.slane %v1087, 7
        %v2704 = vsel %vm374, %v2695, %v2703
        %v2705 = vrot.slane %v1088, 7
        %v2706 = vsel %vm374, %v2697, %v2705
        %v2707 = vrot.slane %v1089, 7
        %v2708 = vsel %vm374, %v2699, %v2707
        %v2709 = vrot.slane %v1090, 7
        %v2710 = vsel %vm374, %v2701, %v2709
        %v2711 = vrot.slane %v1091, 7
        %v2712 = vsel %vm374, %v2703, %v2711
        %v2713 = vrot.slane %v1092, 7
        %v2714 = vsel %vm374, %v2705, %v2713
        %v2715 = vrot.slane %v1093, 7
        %v2716 = vsel %vm374, %v2707, %v2715
        %v2717 = vrot.slane %v1094, 7
        %v2718 = vsel %vm374, %v2709, %v2717
        %v2719 = vrot.slane %v1095, 7
        %v2720 = vsel %vm374, %v2711, %v2719
        %v2721 = vrot.slane %v1096, 7
        %v2722 = vsel %vm374, %v2713, %v2721
        %v2723 = vrot.slane %v1097, 7
        %v2724 = vsel %vm374, %v2715, %v2723
        %v2725 = vrot.slane %v1098, 7
        %v2726 = vsel %vm374, %v2717, %v2725
        %v2727 = vrot.slane %v1099, 7
        %v2728 = vsel %vm374, %v2719, %v2727
        %v2729 = vrot.slane %v1100, 7
        %v2730 = vsel %vm374, %v2721, %v2729
        %v2731 = vrot.slane %v1101, 7
        %v2732 = vsel %vm374, %v2723, %v2731
        %v2733 = vrot.slane %v1102, 7
        %v2734 = vsel %vm374, %v2725, %v2733
        %v2735 = vrot.slane %v1103, 7
        %v2736 = vsel %vm374, %v2727, %v2735
        %v2737 = vrot.slane %v1104, 7
        %v2738 = vsel %vm374, %v2729, %v2737
        %v2739 = vrot.slane %v1105, 7
        %v2740 = vsel %vm374, %v2731, %v2739
        %v2741 = vrot.slane %v1106, 7
        %v2742 = vsel %vm374, %v2733, %v2741
        %v2743 = vrot.slane %v1107, 7
        %v2744 = vrot.slane %v1108, 7
        %v2745 = vrot.slane %v1109, 7
        %v2746 = vrot.slane %v1110, 7
        %v2747 = vrot.slane %v1111, 7
        %v2748 = vsel %vm374, %v2743, %v2747
        %v2749 = vrot.slane %v1112, 7
        %v2750 = vsel %vm374, %v2744, %v2749
        %v2751 = vrot.slane %v1113, 7
        %v2752 = vsel %vm374, %v2745, %v2751
        %v2753 = vrot.slane %v1114, 7
        %v2754 = vsel %vm374, %v2746, %v2753
        %v2755 = vrot.slane %v1115, 7
        %v2756 = vsel %vm374, %v2747, %v2755
        %v2757 = vrot.slane %v1116, 7
        %v2758 = vsel %vm374, %v2749, %v2757
        %v2759 = vrot.slane %v1117, 7
        %v2760 = vsel %vm374, %v2751, %v2759
        %v2761 = vrot.slane %v1118, 7
        %v2762 = vsel %vm374, %v2753, %v2761
        %v2763 = vrot.slane %v1119, 7
        %v2764 = vsel %vm374, %v2755, %v2763
        %v2765 = vrot.slane %v1120, 7
        %v2766 = vsel %vm374, %v2757, %v2765
        %v2767 = vrot.slane %v1121, 7
        %v2768 = vsel %vm374, %v2759, %v2767
        %v2769 = vrot.slane %v1122, 7
        %v2770 = vsel %vm374, %v2761, %v2769
        %v2771 = vrot.slane %v1123, 7
        %v2772 = vsel %vm374, %v2763, %v2771
        %v2773 = vrot.slane %v1124, 7
        %v2774 = vsel %vm374, %v2765, %v2773
        %v2775 = vrot.slane %v1125, 7
        %v2776 = vsel %vm374, %v2767, %v2775
        %v2777 = vrot.slane %v1126, 7
        %v2778 = vsel %vm374, %v2769, %v2777
        %v2779 = vrot.slane %v1127, 7
        %v2780 = vsel %vm374, %v2771, %v2779
        %v2781 = vrot.slane %v1128, 7
        %v2782 = vsel %vm374, %v2773, %v2781
        %v2783 = vrot.slane %v1129, 7
        %v2784 = vsel %vm374, %v2775, %v2783
        %v2785 = vrot.slane %v1130, 7
        %v2786 = vsel %vm374, %v2777, %v2785
        %v2787 = vrot.slane %v1131, 7
        %v2788 = vsel %vm374, %v2779, %v2787
        %v2789 = vrot.slane %v1132, 7
        %v2790 = vsel %vm374, %v2781, %v2789
        %v2791 = vrot.slane %v1133, 7
        %v2792 = vsel %vm374, %v2783, %v2791
        %v2793 = vrot.slane %v1134, 7
        %v2794 = vsel %vm374, %v2785, %v2793
        %v2795 = vrot.slane %v1135, 7
        %v2796 = vsel %vm374, %v2787, %v2795
        %v2797 = vrot.slane %v1136, 7
        %v2798 = vsel %vm374, %v2789, %v2797
        %v2799 = vrot.slane %v1137, 7
        %v2800 = vsel %vm374, %v2791, %v2799
        %v2801 = vrot.slane %v1138, 7
        %v2802 = vsel %vm374, %v2793, %v2801
        %v2803 = vrot.slane %v1139, 7
        %v2804 = vrot.slane %v1140, 7
        %v2805 = vrot.slane %v1141, 7
        %v2806 = vrot.slane %v1142, 7
        %v2807 = vrot.slane %v1143, 7
        %v2808 = vsel %vm374, %v2803, %v2807
        %v2809 = vrot.slane %v1144, 7
        %v2810 = vsel %vm374, %v2804, %v2809
        %v2811 = vrot.slane %v1145, 7
        %v2812 = vsel %vm374, %v2805, %v2811
        %v2813 = vrot.slane %v1146, 7
        %v2814 = vsel %vm374, %v2806, %v2813
        %v2815 = vrot.slane %v1147, 7
        %v2816 = vsel %vm374, %v2807, %v2815
        %v2817 = vrot.slane %v1148, 7
        %v2818 = vsel %vm374, %v2809, %v2817
        %v2819 = vrot.slane %v1149, 7
        %v2820 = vsel %vm374, %v2811, %v2819
        %v2821 = vrot.slane %v1150, 7
        %v2822 = vsel %vm374, %v2813, %v2821
        %v2823 = vrot.slane %v1151, 7
        %v2824 = vsel %vm374, %v2815, %v2823
        %v2825 = vrot.slane %v1152, 7
        %v2826 = vsel %vm374, %v2817, %v2825
        %v2827 = vrot.slane %v1153, 7
        %v2828 = vsel %vm374, %v2819, %v2827
        %v2829 = vrot.slane %v1154, 7
        %v2830 = vsel %vm374, %v2821, %v2829
        %v2831 = vrot.slane %v1155, 7
        %v2832 = vsel %vm374, %v2823, %v2831
        %v2833 = vrot.slane %v1156, 7
        %v2834 = vsel %vm374, %v2825, %v2833
        %v2835 = vrot.slane %v1157, 7
        %v2836 = vsel %vm374, %v2827, %v2835
        %v2837 = vrot.slane %v1158, 7
        %v2838 = vsel %vm374, %v2829, %v2837
        %v2839 = vrot.slane %v1159, 7
        %v2840 = vsel %vm374, %v2831, %v2839
        %v2841 = vrot.slane %v1160, 7
        %v2842 = vsel %vm374, %v2833, %v2841
        %v2843 = vrot.slane %v1161, 7
        %v2844 = vsel %vm374, %v2835, %v2843
        %v2845 = vrot.slane %v1162, 7
        %v2846 = vsel %vm374, %v2837, %v2845
        %v2847 = vrot.slane %v1163, 7
        %v2848 = vsel %vm374, %v2839, %v2847
        %v2849 = vrot.slane %v1164, 7
        %v2850 = vsel %vm374, %v2841, %v2849
        %v2851 = vrot.slane %v1165, 7
        %v2852 = vsel %vm374, %v2843, %v2851
        %v2853 = vrot.slane %v1166, 7
        %v2854 = vsel %vm374, %v2845, %v2853
        %v2855 = vrot.slane %v1167, 7
        %v2856 = vsel %vm374, %v2847, %v2855
        %v2857 = vrot.slane %v1168, 7
        %v2858 = vsel %vm374, %v2849, %v2857
        %v2859 = vrot.slane %v1169, 7
        %v2860 = vsel %vm374, %v2851, %v2859
        %v2861 = vrot.slane %v1170, 7
        %v2862 = vsel %vm374, %v2853, %v2861
        %v2863 = vrot.slane %v1171, 7
        %v2864 = vrot.slane %v1172, 7
        %v2865 = vrot.slane %v1173, 7
        %v2866 = vrot.slane %v1174, 7
        %v2867 = vrot.slane %v1175, 7
        %v2868 = vsel %vm374, %v2863, %v2867
        %v2869 = vrot.slane %v1176, 7
        %v2870 = vsel %vm374, %v2864, %v2869
        %v2871 = vrot.slane %v1177, 7
        %v2872 = vsel %vm374, %v2865, %v2871
        %v2873 = vrot.slane %v1178, 7
        %v2874 = vsel %vm374, %v2866, %v2873
        %v2875 = vrot.slane %v1179, 7
        %v2876 = vsel %vm374, %v2867, %v2875
        %v2877 = vrot.slane %v1180, 7
        %v2878 = vsel %vm374, %v2869, %v2877
        %v2879 = vrot.slane %v1181, 7
        %v2880 = vsel %vm374, %v2871, %v2879
        %v2881 = vrot.slane %v1182, 7
        %v2882 = vsel %vm374, %v2873, %v2881
        %v2883 = vrot.slane %v1183, 7
        %v2884 = vsel %vm374, %v2875, %v2883
        %v2885 = vrot.slane %v1184, 7
        %v2886 = vsel %vm374, %v2877, %v2885
        %v2887 = vrot.slane %v1185, 7
        %v2888 = vsel %vm374, %v2879, %v2887
        %v2889 = vrot.slane %v1186, 7
        %v2890 = vsel %vm374, %v2881, %v2889
        %v2891 = vrot.slane %v1187, 7
        %v2892 = vsel %vm374, %v2883, %v2891
        %v2893 = vrot.slane %v1188, 7
        %v2894 = vsel %vm374, %v2885, %v2893
        %v2895 = vrot.slane %v1189, 7
        %v2896 = vsel %vm374, %v2887, %v2895
        %v2897 = vrot.slane %v1190, 7
        %v2898 = vsel %vm374, %v2889, %v2897
        %v2899 = vrot.slane %v1191, 7
        %v2900 = vsel %vm374, %v2891, %v2899
        %v2901 = vrot.slane %v1192, 7
        %v2902 = vsel %vm374, %v2893, %v2901
        %v2903 = vrot.slane %v1193, 7
        %v2904 = vsel %vm374, %v2895, %v2903
        %v2905 = vrot.slane %v1194, 7
        %v2906 = vsel %vm374, %v2897, %v2905
        %v2907 = vrot.slane %v1195, 7
        %v2908 = vsel %vm374, %v2899, %v2907
        %v2909 = vrot.slane %v1196, 7
        %v2910 = vsel %vm374, %v2901, %v2909
        %v2911 = vrot.slane %v1197, 7
        %v2912 = vsel %vm374, %v2903, %v2911
        %v2913 = vrot.slane %v1198, 7
        %v2914 = vsel %vm374, %v2905, %v2913
        %v2915 = vrot.slane %v1199, 7
        %v2916 = vsel %vm374, %v2907, %v2915
        %v2917 = vrot.slane %v1200, 7
        %v2918 = vsel %vm374, %v2909, %v2917
        %v2919 = vrot.slane %v1201, 7
        %v2920 = vsel %vm374, %v2911, %v2919
        %v2921 = vrot.slane %v1202, 7
        %v2922 = vsel %vm374, %v2913, %v2921
        %v2923 = vrot.slane %v1203, 7
        %v2924 = vrot.slane %v1204, 7
        %v2925 = vrot.slane %v1205, 7
        %v2926 = vrot.slane %v1206, 7
        %v2927 = vrot.slane %v1207, 7
        %v2928 = vsel %vm374, %v2923, %v2927
        %v2929 = vrot.slane %v1208, 7
        %v2930 = vsel %vm374, %v2924, %v2929
        %v2931 = vrot.slane %v1209, 7
        %v2932 = vsel %vm374, %v2925, %v2931
        %v2933 = vrot.slane %v1210, 7
        %v2934 = vsel %vm374, %v2926, %v2933
        %v2935 = vrot.slane %v1211, 7
        %v2936 = vsel %vm374, %v2927, %v2935
        %v2937 = vrot.slane %v1212, 7
        %v2938 = vsel %vm374, %v2929, %v2937
        %v2939 = vrot.slane %v1213, 7
        %v2940 = vsel %vm374, %v2931, %v2939
        %v2941 = vrot.slane %v1214, 7
        %v2942 = vsel %vm374, %v2933, %v2941
        %v2943 = vrot.slane %v1215, 7
        %v2944 = vsel %vm374, %v2935, %v2943
        %v2945 = vrot.slane %v1216, 7
        %v2946 = vsel %vm374, %v2937, %v2945
        %v2947 = vrot.slane %v1217, 7
        %v2948 = vsel %vm374, %v2939, %v2947
        %v2949 = vrot.slane %v1218, 7
        %v2950 = vsel %vm374, %v2941, %v2949
        %v2951 = vrot.slane %v1219, 7
        %v2952 = vsel %vm374, %v2943, %v2951
        %v2953 = vrot.slane %v1220, 7
        %v2954 = vsel %vm374, %v2945, %v2953
        %v2955 = vrot.slane %v1221, 7
        %v2956 = vsel %vm374, %v2947, %v2955
        %v2957 = vrot.slane %v1222, 7
        %v2958 = vsel %vm374, %v2949, %v2957
        %v2959 = vrot.slane %v1223, 7
        %v2960 = vsel %vm374, %v2951, %v2959
        %v2961 = vrot.slane %v1224, 7
        %v2962 = vsel %vm374, %v2953, %v2961
        %v2963 = vrot.slane %v1225, 7
        %v2964 = vsel %vm374, %v2955, %v2963
        %v2965 = vrot.slane %v1226, 7
        %v2966 = vsel %vm374, %v2957, %v2965
        %v2967 = vrot.slane %v1227, 7
        %v2968 = vsel %vm374, %v2959, %v2967
        %v2969 = vrot.slane %v1228, 7
        %v2970 = vsel %vm374, %v2961, %v2969
        %v2971 = vrot.slane %v1229, 7
        %v2972 = vsel %vm374, %v2963, %v2971
        %v2973 = vrot.slane %v1230, 7
        %v2974 = vsel %vm374, %v2965, %v2973
        %v2975 = vrot.slane %v1231, 7
        %v2976 = vsel %vm374, %v2967, %v2975
        %v2977 = vrot.slane %v1232, 7
        %v2978 = vsel %vm374, %v2969, %v2977
        %v2979 = vrot.slane %v1233, 7
        %v2980 = vsel %vm374, %v2971, %v2979
        %v2981 = vrot.slane %v1234, 7
        %v2982 = vsel %vm374, %v2973, %v2981
        %3591 = vst [vmem:[%s258 + $0x40] sm:$0xfe] %v1843
        %3592 = vst [vmem:[%s258 + $0x48] sm:$0xfe] %v1844
        %3593 = vst [vmem:[%s258 + $0x50] sm:$0xfe] %v1845
        %3594 = vst [vmem:[%s258 + $0x58] sm:$0xfe] %v1846
        %3595 = vst [vmem:[%s258 + $0x60] sm:$0xff] %v1848
        %3596 = vst [vmem:[%s258 + $0x68] sm:$0xff] %v1850
        %3597 = vst [vmem:[%s258 + $0x70] sm:$0xff] %v1852
        %3598 = vst [vmem:[%s258 + $0x78] sm:$0xff] %v1854
        %3599 = vst [vmem:[%s258 + $0x80] sm:$0xff] %v1856
        %3600 = vst [vmem:[%s258 + $0x88] sm:$0xff] %v1858
        %3601 = vst [vmem:[%s258 + $0x90] sm:$0xff] %v1860
        %3602 = vst [vmem:[%s258 + $0x98] sm:$0xff] %v1862
        %3603 = vst [vmem:[%s258 + $0xa0] sm:$0xff] %v1864
        %3604 = vst [vmem:[%s258 + $0xa8] sm:$0xff] %v1866
        %3605 = vst [vmem:[%s258 + $0xb0] sm:$0xff] %v1868
        %3606 = vst [vmem:[%s258 + $0xb8] sm:$0xff] %v1870
        %3607 = vst [vmem:[%s258 + $0xc0] sm:$0xff] %v1872
        %3608 = vst [vmem:[%s258 + $0xc8] sm:$0xff] %v1874
        %3609 = vst [vmem:[%s258 + $0xd0] sm:$0xff] %v1876
        %3610 = vst [vmem:[%s258 + $0xd8] sm:$0xff] %v1878
        %3611 = vst [vmem:[%s258 + $0xe0] sm:$0xff] %v1880
        %3612 = vst [vmem:[%s258 + $0xe8] sm:$0xff] %v1882
        %3613 = vst [vmem:[%s258 + $0xf0] sm:$0xff] %v1884
        %3614 = vst [vmem:[%s258 + $0xf8] sm:$0xff] %v1886
        %3615 = vst [vmem:[%s258 + $0x100] sm:$0xff] %v1888
        %3616 = vst [vmem:[%s258 + $0x108] sm:$0xff] %v1890
        %3617 = vst [vmem:[%s258 + $0x110] sm:$0xff] %v1892
        %3618 = vst [vmem:[%s258 + $0x118] sm:$0xff] %v1894
        %3619 = vst [vmem:[%s258 + $0x120] sm:$0x1f] %v1896
        %3620 = vst [vmem:[%s258 + $0x128] sm:$0x1f] %v1898
        %3621 = vst [vmem:[%s258 + $0x130] sm:$0x1f] %v1900
        %3622 = vst [vmem:[%s258 + $0x138] sm:$0x1f] %v1902
        %3623 = vst [vmem:[%s258 + $0x180] sm:$0xfe] %v1903
        %3624 = vst [vmem:[%s258 + $0x188] sm:$0xfe] %v1904
        %3625 = vst [vmem:[%s258 + $0x190] sm:$0xfe] %v1905
        %3626 = vst [vmem:[%s258 + $0x198] sm:$0xfe] %v1906
        %3627 = vst [vmem:[%s258 + $0x1a0] sm:$0xff] %v1908
        %3628 = vst [vmem:[%s258 + $0x1a8] sm:$0xff] %v1910
        %3629 = vst [vmem:[%s258 + $0x1b0] sm:$0xff] %v1912
        %3630 = vst [vmem:[%s258 + $0x1b8] sm:$0xff] %v1914
        %3631 = vst [vmem:[%s258 + $0x1c0] sm:$0xff] %v1916
        %3632 = vst [vmem:[%s258 + $0x1c8] sm:$0xff] %v1918
        %3633 = vst [vmem:[%s258 + $0x1d0] sm:$0xff] %v1920
        %3634 = vst [vmem:[%s258 + $0x1d8] sm:$0xff] %v1922
        %3635 = vst [vmem:[%s258 + $0x1e0] sm:$0xff] %v1924
        %3636 = vst [vmem:[%s258 + $0x1e8] sm:$0xff] %v1926
        %3637 = vst [vmem:[%s258 + $0x1f0] sm:$0xff] %v1928
        %3638 = vst [vmem:[%s258 + $0x1f8] sm:$0xff] %v1930
        %3639 = vst [vmem:[%s258 + $0x200] sm:$0xff] %v1932
        %3640 = vst [vmem:[%s258 + $0x208] sm:$0xff] %v1934
        %3641 = vst [vmem:[%s258 + $0x210] sm:$0xff] %v1936
        %3642 = vst [vmem:[%s258 + $0x218] sm:$0xff] %v1938
        %3643 = vst [vmem:[%s258 + $0x220] sm:$0xff] %v1940
        %3644 = vst [vmem:[%s258 + $0x228] sm:$0xff] %v1942
        %3645 = vst [vmem:[%s258 + $0x230] sm:$0xff] %v1944
        %3646 = vst [vmem:[%s258 + $0x238] sm:$0xff] %v1946
        %3647 = vst [vmem:[%s258 + $0x240] sm:$0xff] %v1948
        %3648 = vst [vmem:[%s258 + $0x248] sm:$0xff] %v1950
        %3649 = vst [vmem:[%s258 + $0x250] sm:$0xff] %v1952
        %3650 = vst [vmem:[%s258 + $0x258] sm:$0xff] %v1954
        %3651 = vst [vmem:[%s258 + $0x260] sm:$0x1f] %v1956
        %3652 = vst [vmem:[%s258 + $0x268] sm:$0x1f] %v1958
        %3653 = vst [vmem:[%s258 + $0x270] sm:$0x1f] %v1960
        %3654 = vst [vmem:[%s258 + $0x278] sm:$0x1f] %v1962
        %3655 = vst [vmem:[%s258 + $0x2c0] sm:$0xfe] %v1963
        %3656 = vst [vmem:[%s258 + $0x2c8] sm:$0xfe] %v1964
        %3657 = vst [vmem:[%s258 + $0x2d0] sm:$0xfe] %v1965
        %3658 = vst [vmem:[%s258 + $0x2d8] sm:$0xfe] %v1966
        %3659 = vst [vmem:[%s258 + $0x2e0] sm:$0xff] %v1968
        %3660 = vst [vmem:[%s258 + $0x2e8] sm:$0xff] %v1970
        %3661 = vst [vmem:[%s258 + $0x2f0] sm:$0xff] %v1972
        %3662 = vst [vmem:[%s258 + $0x2f8] sm:$0xff] %v1974
        %3663 = vst [vmem:[%s258 + $0x300] sm:$0xff] %v1976
        %3664 = vst [vmem:[%s258 + $0x308] sm:$0xff] %v1978
        %3665 = vst [vmem:[%s258 + $0x310] sm:$0xff] %v1980
        %3666 = vst [vmem:[%s258 + $0x318] sm:$0xff] %v1982
        %3667 = vst [vmem:[%s258 + $0x320] sm:$0xff] %v1984
        %3668 = vst [vmem:[%s258 + $0x328] sm:$0xff] %v1986
        %3669 = vst [vmem:[%s258 + $0x330] sm:$0xff] %v1988
        %3670 = vst [vmem:[%s258 + $0x338] sm:$0xff] %v1990
        %3671 = vst [vmem:[%s258 + $0x340] sm:$0xff] %v1992
        %3672 = vst [vmem:[%s258 + $0x348] sm:$0xff] %v1994
        %3673 = vst [vmem:[%s258 + $0x350] sm:$0xff] %v1996
        %3674 = vst [vmem:[%s258 + $0x358] sm:$0xff] %v1998
        %3675 = vst [vmem:[%s258 + $0x360] sm:$0xff] %v2000
        %3676 = vst [vmem:[%s258 + $0x368] sm:$0xff] %v2002
        %3677 = vst [vmem:[%s258 + $0x370] sm:$0xff] %v2004
        %3678 = vst [vmem:[%s258 + $0x378] sm:$0xff] %v2006
        %3679 = vst [vmem:[%s258 + $0x380] sm:$0xff] %v2008
        %3680 = vst [vmem:[%s258 + $0x388] sm:$0xff] %v2010
        %3681 = vst [vmem:[%s258 + $0x390] sm:$0xff] %v2012
        %3682 = vst [vmem:[%s258 + $0x398] sm:$0xff] %v2014
        %3683 = vst [vmem:[%s258 + $0x3a0] sm:$0x1f] %v2016
        %3684 = vst [vmem:[%s258 + $0x3a8] sm:$0x1f] %v2018
        %3685 = vst [vmem:[%s258 + $0x3b0] sm:$0x1f] %v2020
        %3686 = vst [vmem:[%s258 + $0x3b8] sm:$0x1f] %v2022
        %3687 = vst [vmem:[%s258 + $0x400] sm:$0xfe] %v2023
        %3688 = vst [vmem:[%s258 + $0x408] sm:$0xfe] %v2024
        %3689 = vst [vmem:[%s258 + $0x410] sm:$0xfe] %v2025
        %3690 = vst [vmem:[%s258 + $0x418] sm:$0xfe] %v2026
        %3691 = vst [vmem:[%s258 + $0x420] sm:$0xff] %v2028
        %3692 = vst [vmem:[%s258 + $0x428] sm:$0xff] %v2030
        %3693 = vst [vmem:[%s258 + $0x430] sm:$0xff] %v2032
        %3694 = vst [vmem:[%s258 + $0x438] sm:$0xff] %v2034
        %3695 = vst [vmem:[%s258 + $0x440] sm:$0xff] %v2036
        %3696 = vst [vmem:[%s258 + $0x448] sm:$0xff] %v2038
        %3697 = vst [vmem:[%s258 + $0x450] sm:$0xff] %v2040
        %3698 = vst [vmem:[%s258 + $0x458] sm:$0xff] %v2042
        %3699 = vst [vmem:[%s258 + $0x460] sm:$0xff] %v2044
        %3700 = vst [vmem:[%s258 + $0x468] sm:$0xff] %v2046
        %3701 = vst [vmem:[%s258 + $0x470] sm:$0xff] %v2048
        %3702 = vst [vmem:[%s258 + $0x478] sm:$0xff] %v2050
        %3703 = vst [vmem:[%s258 + $0x480] sm:$0xff] %v2052
        %3704 = vst [vmem:[%s258 + $0x488] sm:$0xff] %v2054
        %3705 = vst [vmem:[%s258 + $0x490] sm:$0xff] %v2056
        %3706 = vst [vmem:[%s258 + $0x498] sm:$0xff] %v2058
        %3707 = vst [vmem:[%s258 + $0x4a0] sm:$0xff] %v2060
        %3708 = vst [vmem:[%s258 + $0x4a8] sm:$0xff] %v2062
        %3709 = vst [vmem:[%s258 + $0x4b0] sm:$0xff] %v2064
        %3710 = vst [vmem:[%s258 + $0x4b8] sm:$0xff] %v2066
        %3711 = vst [vmem:[%s258 + $0x4c0] sm:$0xff] %v2068
        %3712 = vst [vmem:[%s258 + $0x4c8] sm:$0xff] %v2070
        %3713 = vst [vmem:[%s258 + $0x4d0] sm:$0xff] %v2072
        %3714 = vst [vmem:[%s258 + $0x4d8] sm:$0xff] %v2074
        %3715 = vst [vmem:[%s258 + $0x4e0] sm:$0x1f] %v2076
        %3716 = vst [vmem:[%s258 + $0x4e8] sm:$0x1f] %v2078
        %3717 = vst [vmem:[%s258 + $0x4f0] sm:$0x1f] %v2080
        %3718 = vst [vmem:[%s258 + $0x4f8] sm:$0x1f] %v2082
        %3719 = vst [vmem:[%s258 + $0x540] sm:$0xfe] %v2083
        %3720 = vst [vmem:[%s258 + $0x548] sm:$0xfe] %v2084
        %3721 = vst [vmem:[%s258 + $0x550] sm:$0xfe] %v2085
        %3722 = vst [vmem:[%s258 + $0x558] sm:$0xfe] %v2086
        %3723 = vst [vmem:[%s258 + $0x560] sm:$0xff] %v2088
        %3724 = vst [vmem:[%s258 + $0x568] sm:$0xff] %v2090
        %3725 = vst [vmem:[%s258 + $0x570] sm:$0xff] %v2092
        %3726 = vst [vmem:[%s258 + $0x578] sm:$0xff] %v2094
        %3727 = vst [vmem:[%s258 + $0x580] sm:$0xff] %v2096
        %3728 = vst [vmem:[%s258 + $0x588] sm:$0xff] %v2098
        %3729 = vst [vmem:[%s258 + $0x590] sm:$0xff] %v2100
        %3730 = vst [vmem:[%s258 + $0x598] sm:$0xff] %v2102
        %3731 = vst [vmem:[%s258 + $0x5a0] sm:$0xff] %v2104
        %3732 = vst [vmem:[%s258 + $0x5a8] sm:$0xff] %v2106
        %3733 = vst [vmem:[%s258 + $0x5b0] sm:$0xff] %v2108
        %3734 = vst [vmem:[%s258 + $0x5b8] sm:$0xff] %v2110
        %3735 = vst [vmem:[%s258 + $0x5c0] sm:$0xff] %v2112
        %3736 = vst [vmem:[%s258 + $0x5c8] sm:$0xff] %v2114
        %3737 = vst [vmem:[%s258 + $0x5d0] sm:$0xff] %v2116
        %3738 = vst [vmem:[%s258 + $0x5d8] sm:$0xff] %v2118
        %3739 = vst [vmem:[%s258 + $0x5e0] sm:$0xff] %v2120
        %3740 = vst [vmem:[%s258 + $0x5e8] sm:$0xff] %v2122
        %3741 = vst [vmem:[%s258 + $0x5f0] sm:$0xff] %v2124
        %3742 = vst [vmem:[%s258 + $0x5f8] sm:$0xff] %v2126
        %3743 = vst [vmem:[%s258 + $0x600] sm:$0xff] %v2128
        %3744 = vst [vmem:[%s258 + $0x608] sm:$0xff] %v2130
        %3745 = vst [vmem:[%s258 + $0x610] sm:$0xff] %v2132
        %3746 = vst [vmem:[%s258 + $0x618] sm:$0xff] %v2134
        %3747 = vst [vmem:[%s258 + $0x620] sm:$0x1f] %v2136
        %3748 = vst [vmem:[%s258 + $0x628] sm:$0x1f] %v2138
        %3749 = vst [vmem:[%s258 + $0x630] sm:$0x1f] %v2140
        %3750 = vst [vmem:[%s258 + $0x638] sm:$0x1f] %v2142
        %3751 = vst [vmem:[%s258 + $0x680] sm:$0xfe] %v2143
        %3752 = vst [vmem:[%s258 + $0x688] sm:$0xfe] %v2144
        %3753 = vst [vmem:[%s258 + $0x690] sm:$0xfe] %v2145
        %3754 = vst [vmem:[%s258 + $0x698] sm:$0xfe] %v2146
        %3755 = vst [vmem:[%s258 + $0x6a0] sm:$0xff] %v2148
        %3756 = vst [vmem:[%s258 + $0x6a8] sm:$0xff] %v2150
        %3757 = vst [vmem:[%s258 + $0x6b0] sm:$0xff] %v2152
        %3758 = vst [vmem:[%s258 + $0x6b8] sm:$0xff] %v2154
        %3759 = vst [vmem:[%s258 + $0x6c0] sm:$0xff] %v2156
        %3760 = vst [vmem:[%s258 + $0x6c8] sm:$0xff] %v2158
        %3761 = vst [vmem:[%s258 + $0x6d0] sm:$0xff] %v2160
        %3762 = vst [vmem:[%s258 + $0x6d8] sm:$0xff] %v2162
        %3763 = vst [vmem:[%s258 + $0x6e0] sm:$0xff] %v2164
        %3764 = vst [vmem:[%s258 + $0x6e8] sm:$0xff] %v2166
        %3765 = vst [vmem:[%s258 + $0x6f0] sm:$0xff] %v2168
        %3766 = vst [vmem:[%s258 + $0x6f8] sm:$0xff] %v2170
        %3767 = vst [vmem:[%s258 + $0x700] sm:$0xff] %v2172
        %3768 = vst [vmem:[%s258 + $0x708] sm:$0xff] %v2174
        %3769 = vst [vmem:[%s258 + $0x710] sm:$0xff] %v2176
        %3770 = vst [vmem:[%s258 + $0x718] sm:$0xff] %v2178
        %3771 = vst [vmem:[%s258 + $0x720] sm:$0xff] %v2180
        %3772 = vst [vmem:[%s258 + $0x728] sm:$0xff] %v2182
        %3773 = vst [vmem:[%s258 + $0x730] sm:$0xff] %v2184
        %3774 = vst [vmem:[%s258 + $0x738] sm:$0xff] %v2186
        %3775 = vst [vmem:[%s258 + $0x740] sm:$0xff] %v2188
        %3776 = vst [vmem:[%s258 + $0x748] sm:$0xff] %v2190
        %3777 = vst [vmem:[%s258 + $0x750] sm:$0xff] %v2192
        %3778 = vst [vmem:[%s258 + $0x758] sm:$0xff] %v2194
        %3779 = vst [vmem:[%s258 + $0x760] sm:$0x1f] %v2196
        %3780 = vst [vmem:[%s258 + $0x768] sm:$0x1f] %v2198
        %3781 = vst [vmem:[%s258 + $0x770] sm:$0x1f] %v2200
        %3782 = vst [vmem:[%s258 + $0x778] sm:$0x1f] %v2202
        %3783 = vst [vmem:[%s258 + $0x7c0] sm:$0xfe] %v2203
        %3784 = vst [vmem:[%s258 + $0x7c8] sm:$0xfe] %v2204
        %3785 = vst [vmem:[%s258 + $0x7d0] sm:$0xfe] %v2205
        %3786 = vst [vmem:[%s258 + $0x7d8] sm:$0xfe] %v2206
        %3787 = vst [vmem:[%s258 + $0x7e0] sm:$0xff] %v2208
        %3788 = vst [vmem:[%s258 + $0x7e8] sm:$0xff] %v2210
        %3789 = vst [vmem:[%s258 + $0x7f0] sm:$0xff] %v2212
        %3790 = vst [vmem:[%s258 + $0x7f8] sm:$0xff] %v2214
        %3791 = vst [vmem:[%s258 + $0x800] sm:$0xff] %v2216
        %3792 = vst [vmem:[%s258 + $0x808] sm:$0xff] %v2218
        %3793 = vst [vmem:[%s258 + $0x810] sm:$0xff] %v2220
        %3794 = vst [vmem:[%s258 + $0x818] sm:$0xff] %v2222
        %3795 = vst [vmem:[%s258 + $0x820] sm:$0xff] %v2224
        %3796 = vst [vmem:[%s258 + $0x828] sm:$0xff] %v2226
        %3797 = vst [vmem:[%s258 + $0x830] sm:$0xff] %v2228
        %3798 = vst [vmem:[%s258 + $0x838] sm:$0xff] %v2230
        %3799 = vst [vmem:[%s258 + $0x840] sm:$0xff] %v2232
        %3800 = vst [vmem:[%s258 + $0x848] sm:$0xff] %v2234
        %3801 = vst [vmem:[%s258 + $0x850] sm:$0xff] %v2236
        %3802 = vst [vmem:[%s258 + $0x858] sm:$0xff] %v2238
        %3803 = vst [vmem:[%s258 + $0x860] sm:$0xff] %v2240
        %3804 = vst [vmem:[%s258 + $0x868] sm:$0xff] %v2242
        %3805 = vst [vmem:[%s258 + $0x870] sm:$0xff] %v2244
        %3806 = vst [vmem:[%s258 + $0x878] sm:$0xff] %v2246
        %3807 = vst [vmem:[%s258 + $0x880] sm:$0xff] %v2248
        %3808 = vst [vmem:[%s258 + $0x888] sm:$0xff] %v2250
        %3809 = vst [vmem:[%s258 + $0x890] sm:$0xff] %v2252
        %3810 = vst [vmem:[%s258 + $0x898] sm:$0xff] %v2254
        %3811 = vst [vmem:[%s258 + $0x8a0] sm:$0x1f] %v2256
        %3812 = vst [vmem:[%s258 + $0x8a8] sm:$0x1f] %v2258
        %3813 = vst [vmem:[%s258 + $0x8b0] sm:$0x1f] %v2260
        %3814 = vst [vmem:[%s258 + $0x8b8] sm:$0x1f] %v2262
        %3815 = vst [vmem:[%s258 + $0x900] sm:$0xfe] %v2263
        %3816 = vst [vmem:[%s258 + $0x908] sm:$0xfe] %v2264
        %3817 = vst [vmem:[%s258 + $0x910] sm:$0xfe] %v2265
        %3818 = vst [vmem:[%s258 + $0x918] sm:$0xfe] %v2266
        %3819 = vst [vmem:[%s258 + $0x920] sm:$0xff] %v2268
        %3820 = vst [vmem:[%s258 + $0x928] sm:$0xff] %v2270
        %3821 = vst [vmem:[%s258 + $0x930] sm:$0xff] %v2272
        %3822 = vst [vmem:[%s258 + $0x938] sm:$0xff] %v2274
        %3823 = vst [vmem:[%s258 + $0x940] sm:$0xff] %v2276
        %3824 = vst [vmem:[%s258 + $0x948] sm:$0xff] %v2278
        %3825 = vst [vmem:[%s258 + $0x950] sm:$0xff] %v2280
        %3826 = vst [vmem:[%s258 + $0x958] sm:$0xff] %v2282
        %3827 = vst [vmem:[%s258 + $0x960] sm:$0xff] %v2284
        %3828 = vst [vmem:[%s258 + $0x968] sm:$0xff] %v2286
        %3829 = vst [vmem:[%s258 + $0x970] sm:$0xff] %v2288
        %3830 = vst [vmem:[%s258 + $0x978] sm:$0xff] %v2290
        %3831 = vst [vmem:[%s258 + $0x980] sm:$0xff] %v2292
        %3832 = vst [vmem:[%s258 + $0x988] sm:$0xff] %v2294
        %3833 = vst [vmem:[%s258 + $0x990] sm:$0xff] %v2296
        %3834 = vst [vmem:[%s258 + $0x998] sm:$0xff] %v2298
        %3835 = vst [vmem:[%s258 + $0x9a0] sm:$0xff] %v2300
        %3836 = vst [vmem:[%s258 + $0x9a8] sm:$0xff] %v2302
        %3837 = vst [vmem:[%s258 + $0x9b0] sm:$0xff] %v2304
        %3838 = vst [vmem:[%s258 + $0x9b8] sm:$0xff] %v2306
        %3839 = vst [vmem:[%s258 + $0x9c0] sm:$0xff] %v2308
        %3840 = vst [vmem:[%s258 + $0x9c8] sm:$0xff] %v2310
        %3841 = vst [vmem:[%s258 + $0x9d0] sm:$0xff] %v2312
        %3842 = vst [vmem:[%s258 + $0x9d8] sm:$0xff] %v2314
        %3843 = vst [vmem:[%s258 + $0x9e0] sm:$0x1f] %v2316
        %3844 = vst [vmem:[%s258 + $0x9e8] sm:$0x1f] %v2318
        %3845 = vst [vmem:[%s258 + $0x9f0] sm:$0x1f] %v2320
        %3846 = vst [vmem:[%s258 + $0x9f8] sm:$0x1f] %v2322
        %3847 = vst [vmem:[%s258 + $0xa40] sm:$0xfe] %v2323
        %3848 = vst [vmem:[%s258 + $0xa48] sm:$0xfe] %v2324
        %3849 = vst [vmem:[%s258 + $0xa50] sm:$0xfe] %v2325
        %3850 = vst [vmem:[%s258 + $0xa58] sm:$0xfe] %v2326
        %3851 = vst [vmem:[%s258 + $0xa60] sm:$0xff] %v2328
        %3852 = vst [vmem:[%s258 + $0xa68] sm:$0xff] %v2330
        %3853 = vst [vmem:[%s258 + $0xa70] sm:$0xff] %v2332
        %3854 = vst [vmem:[%s258 + $0xa78] sm:$0xff] %v2334
        %3855 = vst [vmem:[%s258 + $0xa80] sm:$0xff] %v2336
        %3856 = vst [vmem:[%s258 + $0xa88] sm:$0xff] %v2338
        %3857 = vst [vmem:[%s258 + $0xa90] sm:$0xff] %v2340
        %3858 = vst [vmem:[%s258 + $0xa98] sm:$0xff] %v2342
        %3859 = vst [vmem:[%s258 + $0xaa0] sm:$0xff] %v2344
        %3860 = vst [vmem:[%s258 + $0xaa8] sm:$0xff] %v2346
        %3861 = vst [vmem:[%s258 + $0xab0] sm:$0xff] %v2348
        %3862 = vst [vmem:[%s258 + $0xab8] sm:$0xff] %v2350
        %3863 = vst [vmem:[%s258 + $0xac0] sm:$0xff] %v2352
        %3864 = vst [vmem:[%s258 + $0xac8] sm:$0xff] %v2354
        %3865 = vst [vmem:[%s258 + $0xad0] sm:$0xff] %v2356
        %3866 = vst [vmem:[%s258 + $0xad8] sm:$0xff] %v2358
        %3867 = vst [vmem:[%s258 + $0xae0] sm:$0xff] %v2360
        %3868 = vst [vmem:[%s258 + $0xae8] sm:$0xff] %v2362
        %3869 = vst [vmem:[%s258 + $0xaf0] sm:$0xff] %v2364
        %3870 = vst [vmem:[%s258 + $0xaf8] sm:$0xff] %v2366
        %3871 = vst [vmem:[%s258 + $0xb00] sm:$0xff] %v2368
        %3872 = vst [vmem:[%s258 + $0xb08] sm:$0xff] %v2370
        %3873 = vst [vmem:[%s258 + $0xb10] sm:$0xff] %v2372
        %3874 = vst [vmem:[%s258 + $0xb18] sm:$0xff] %v2374
        %3875 = vst [vmem:[%s258 + $0xb20] sm:$0x1f] %v2376
        %3876 = vst [vmem:[%s258 + $0xb28] sm:$0x1f] %v2378
        %3877 = vst [vmem:[%s258 + $0xb30] sm:$0x1f] %v2380
        %3878 = vst [vmem:[%s258 + $0xb38] sm:$0x1f] %v2382
        %3879 = vst [vmem:[%s258 + $0xb80] sm:$0xfe] %v2383
        %3880 = vst [vmem:[%s258 + $0xb88] sm:$0xfe] %v2384
        %3881 = vst [vmem:[%s258 + $0xb90] sm:$0xfe] %v2385
        %3882 = vst [vmem:[%s258 + $0xb98] sm:$0xfe] %v2386
        %3883 = vst [vmem:[%s258 + $0xba0] sm:$0xff] %v2388
        %3884 = vst [vmem:[%s258 + $0xba8] sm:$0xff] %v2390
        %3885 = vst [vmem:[%s258 + $0xbb0] sm:$0xff] %v2392
        %3886 = vst [vmem:[%s258 + $0xbb8] sm:$0xff] %v2394
        %3887 = vst [vmem:[%s258 + $0xbc0] sm:$0xff] %v2396
        %3888 = vst [vmem:[%s258 + $0xbc8] sm:$0xff] %v2398
        %3889 = vst [vmem:[%s258 + $0xbd0] sm:$0xff] %v2400
        %3890 = vst [vmem:[%s258 + $0xbd8] sm:$0xff] %v2402
        %3891 = vst [vmem:[%s258 + $0xbe0] sm:$0xff] %v2404
        %3892 = vst [vmem:[%s258 + $0xbe8] sm:$0xff] %v2406
        %3893 = vst [vmem:[%s258 + $0xbf0] sm:$0xff] %v2408
        %3894 = vst [vmem:[%s258 + $0xbf8] sm:$0xff] %v2410
        %3895 = vst [vmem:[%s258 + $0xc00] sm:$0xff] %v2412
        %3896 = vst [vmem:[%s258 + $0xc08] sm:$0xff] %v2414
        %3897 = vst [vmem:[%s258 + $0xc10] sm:$0xff] %v2416
        %3898 = vst [vmem:[%s258 + $0xc18] sm:$0xff] %v2418
        %3899 = vst [vmem:[%s258 + $0xc20] sm:$0xff] %v2420
        %3900 = vst [vmem:[%s258 + $0xc28] sm:$0xff] %v2422
        %3901 = vst [vmem:[%s258 + $0xc30] sm:$0xff] %v2424
        %3902 = vst [vmem:[%s258 + $0xc38] sm:$0xff] %v2426
        %3903 = vst [vmem:[%s258 + $0xc40] sm:$0xff] %v2428
        %3904 = vst [vmem:[%s258 + $0xc48] sm:$0xff] %v2430
        %3905 = vst [vmem:[%s258 + $0xc50] sm:$0xff] %v2432
        %3906 = vst [vmem:[%s258 + $0xc58] sm:$0xff] %v2434
        %3907 = vst [vmem:[%s258 + $0xc60] sm:$0x1f] %v2436
        %3908 = vst [vmem:[%s258 + $0xc68] sm:$0x1f] %v2438
        %3909 = vst [vmem:[%s258 + $0xc70] sm:$0x1f] %v2440
        %3910 = vst [vmem:[%s258 + $0xc78] sm:$0x1f] %v2442
        %3911 = vst [vmem:[%s258 + $0xcc0] sm:$0xfe] %v2443
        %3912 = vst [vmem:[%s258 + $0xcc8] sm:$0xfe] %v2444
        %3913 = vst [vmem:[%s258 + $0xcd0] sm:$0xfe] %v2445
        %3914 = vst [vmem:[%s258 + $0xcd8] sm:$0xfe] %v2446
        %3915 = vst [vmem:[%s258 + $0xce0] sm:$0xff] %v2448
        %3916 = vst [vmem:[%s258 + $0xce8] sm:$0xff] %v2450
        %3917 = vst [vmem:[%s258 + $0xcf0] sm:$0xff] %v2452
        %3918 = vst [vmem:[%s258 + $0xcf8] sm:$0xff] %v2454
        %3919 = vst [vmem:[%s258 + $0xd00] sm:$0xff] %v2456
        %3920 = vst [vmem:[%s258 + $0xd08] sm:$0xff] %v2458
        %3921 = vst [vmem:[%s258 + $0xd10] sm:$0xff] %v2460
        %3922 = vst [vmem:[%s258 + $0xd18] sm:$0xff] %v2462
        %3923 = vst [vmem:[%s258 + $0xd20] sm:$0xff] %v2464
        %3924 = vst [vmem:[%s258 + $0xd28] sm:$0xff] %v2466
        %3925 = vst [vmem:[%s258 + $0xd30] sm:$0xff] %v2468
        %3926 = vst [vmem:[%s258 + $0xd38] sm:$0xff] %v2470
        %3927 = vst [vmem:[%s258 + $0xd40] sm:$0xff] %v2472
        %3928 = vst [vmem:[%s258 + $0xd48] sm:$0xff] %v2474
        %3929 = vst [vmem:[%s258 + $0xd50] sm:$0xff] %v2476
        %3930 = vst [vmem:[%s258 + $0xd58] sm:$0xff] %v2478
        %3931 = vst [vmem:[%s258 + $0xd60] sm:$0xff] %v2480
        %3932 = vst [vmem:[%s258 + $0xd68] sm:$0xff] %v2482
        %3933 = vst [vmem:[%s258 + $0xd70] sm:$0xff] %v2484
        %3934 = vst [vmem:[%s258 + $0xd78] sm:$0xff] %v2486
        %3935 = vst [vmem:[%s258 + $0xd80] sm:$0xff] %v2488
        %3936 = vst [vmem:[%s258 + $0xd88] sm:$0xff] %v2490
        %3937 = vst [vmem:[%s258 + $0xd90] sm:$0xff] %v2492
        %3938 = vst [vmem:[%s258 + $0xd98] sm:$0xff] %v2494
        %3939 = vst [vmem:[%s258 + $0xda0] sm:$0x1f] %v2496
        %3940 = vst [vmem:[%s258 + $0xda8] sm:$0x1f] %v2498
        %3941 = vst [vmem:[%s258 + $0xdb0] sm:$0x1f] %v2500
        %3942 = vst [vmem:[%s258 + $0xdb8] sm:$0x1f] %v2502
        %3943 = vst [vmem:[%s258 + $0xe00] sm:$0xfe] %v2503
        %3944 = vst [vmem:[%s258 + $0xe08] sm:$0xfe] %v2504
        %3945 = vst [vmem:[%s258 + $0xe10] sm:$0xfe] %v2505
        %3946 = vst [vmem:[%s258 + $0xe18] sm:$0xfe] %v2506
        %3947 = vst [vmem:[%s258 + $0xe20] sm:$0xff] %v2508
        %3948 = vst [vmem:[%s258 + $0xe28] sm:$0xff] %v2510
        %3949 = vst [vmem:[%s258 + $0xe30] sm:$0xff] %v2512
        %3950 = vst [vmem:[%s258 + $0xe38] sm:$0xff] %v2514
        %3951 = vst [vmem:[%s258 + $0xe40] sm:$0xff] %v2516
        %3952 = vst [vmem:[%s258 + $0xe48] sm:$0xff] %v2518
        %3953 = vst [vmem:[%s258 + $0xe50] sm:$0xff] %v2520
        %3954 = vst [vmem:[%s258 + $0xe58] sm:$0xff] %v2522
        %3955 = vst [vmem:[%s258 + $0xe60] sm:$0xff] %v2524
        %3956 = vst [vmem:[%s258 + $0xe68] sm:$0xff] %v2526
        %3957 = vst [vmem:[%s258 + $0xe70] sm:$0xff] %v2528
        %3958 = vst [vmem:[%s258 + $0xe78] sm:$0xff] %v2530
        %3959 = vst [vmem:[%s258 + $0xe80] sm:$0xff] %v2532
        %3960 = vst [vmem:[%s258 + $0xe88] sm:$0xff] %v2534
        %3961 = vst [vmem:[%s258 + $0xe90] sm:$0xff] %v2536
        %3962 = vst [vmem:[%s258 + $0xe98] sm:$0xff] %v2538
        %3963 = vst [vmem:[%s258 + $0xea0] sm:$0xff] %v2540
        %3964 = vst [vmem:[%s258 + $0xea8] sm:$0xff] %v2542
        %3965 = vst [vmem:[%s258 + $0xeb0] sm:$0xff] %v2544
        %3966 = vst [vmem:[%s258 + $0xeb8] sm:$0xff] %v2546
        %3967 = vst [vmem:[%s258 + $0xec0] sm:$0xff] %v2548
        %3968 = vst [vmem:[%s258 + $0xec8] sm:$0xff] %v2550
        %3969 = vst [vmem:[%s258 + $0xed0] sm:$0xff] %v2552
        %3970 = vst [vmem:[%s258 + $0xed8] sm:$0xff] %v2554
        %3971 = vst [vmem:[%s258 + $0xee0] sm:$0x1f] %v2556
        %3972 = vst [vmem:[%s258 + $0xee8] sm:$0x1f] %v2558
        %3973 = vst [vmem:[%s258 + $0xef0] sm:$0x1f] %v2560
        %3974 = vst [vmem:[%s258 + $0xef8] sm:$0x1f] %v2562
        %3975 = vst [vmem:[%s258 + $0xf40] sm:$0xfe] %v2563
        %3976 = vst [vmem:[%s258 + $0xf48] sm:$0xfe] %v2564
        %3977 = vst [vmem:[%s258 + $0xf50] sm:$0xfe] %v2565
        %3978 = vst [vmem:[%s258 + $0xf58] sm:$0xfe] %v2566
        %3979 = vst [vmem:[%s258 + $0xf60] sm:$0xff] %v2568
        %3980 = vst [vmem:[%s258 + $0xf68] sm:$0xff] %v2570
        %3981 = vst [vmem:[%s258 + $0xf70] sm:$0xff] %v2572
        %3982 = vst [vmem:[%s258 + $0xf78] sm:$0xff] %v2574
        %3983 = vst [vmem:[%s258 + $0xf80] sm:$0xff] %v2576
        %3984 = vst [vmem:[%s258 + $0xf88] sm:$0xff] %v2578
        %3985 = vst [vmem:[%s258 + $0xf90] sm:$0xff] %v2580
        %3986 = vst [vmem:[%s258 + $0xf98] sm:$0xff] %v2582
        %3987 = vst [vmem:[%s258 + $0xfa0] sm:$0xff] %v2584
        %3988 = vst [vmem:[%s258 + $0xfa8] sm:$0xff] %v2586
        %3989 = vst [vmem:[%s258 + $0xfb0] sm:$0xff] %v2588
        %3990 = vst [vmem:[%s258 + $0xfb8] sm:$0xff] %v2590
        %3991 = vst [vmem:[%s258 + $0xfc0] sm:$0xff] %v2592
        %3992 = vst [vmem:[%s258 + $0xfc8] sm:$0xff] %v2594
        %3993 = vst [vmem:[%s258 + $0xfd0] sm:$0xff] %v2596
        %3994 = vst [vmem:[%s258 + $0xfd8] sm:$0xff] %v2598
        %3995 = vst [vmem:[%s258 + $0xfe0] sm:$0xff] %v2600
        %3996 = vst [vmem:[%s258 + $0xfe8] sm:$0xff] %v2602
        %3997 = vst [vmem:[%s258 + $0xff0] sm:$0xff] %v2604
        %3998 = vst [vmem:[%s258 + $0xff8] sm:$0xff] %v2606
        %3999 = vst [vmem:[%s258 + $0x1000] sm:$0xff] %v2608
        %4000 = vst [vmem:[%s258 + $0x1008] sm:$0xff] %v2610
        %4001 = vst [vmem:[%s258 + $0x1010] sm:$0xff] %v2612
        %4002 = vst [vmem:[%s258 + $0x1018] sm:$0xff] %v2614
        %4003 = vst [vmem:[%s258 + $0x1020] sm:$0x1f] %v2616
        %4004 = vst [vmem:[%s258 + $0x1028] sm:$0x1f] %v2618
        %4005 = vst [vmem:[%s258 + $0x1030] sm:$0x1f] %v2620
        %4006 = vst [vmem:[%s258 + $0x1038] sm:$0x1f] %v2622
        %4007 = vst [vmem:[%s258 + $0x1080] sm:$0xfe] %v2623
        %4008 = vst [vmem:[%s258 + $0x1088] sm:$0xfe] %v2624
        %4009 = vst [vmem:[%s258 + $0x1090] sm:$0xfe] %v2625
        %4010 = vst [vmem:[%s258 + $0x1098] sm:$0xfe] %v2626
        %4011 = vst [vmem:[%s258 + $0x10a0] sm:$0xff] %v2628
        %4012 = vst [vmem:[%s258 + $0x10a8] sm:$0xff] %v2630
        %4013 = vst [vmem:[%s258 + $0x10b0] sm:$0xff] %v2632
        %4014 = vst [vmem:[%s258 + $0x10b8] sm:$0xff] %v2634
        %4015 = vst [vmem:[%s258 + $0x10c0] sm:$0xff] %v2636
        %4016 = vst [vmem:[%s258 + $0x10c8] sm:$0xff] %v2638
        %4017 = vst [vmem:[%s258 + $0x10d0] sm:$0xff] %v2640
        %4018 = vst [vmem:[%s258 + $0x10d8] sm:$0xff] %v2642
        %4019 = vst [vmem:[%s258 + $0x10e0] sm:$0xff] %v2644
        %4020 = vst [vmem:[%s258 + $0x10e8] sm:$0xff] %v2646
        %4021 = vst [vmem:[%s258 + $0x10f0] sm:$0xff] %v2648
        %4022 = vst [vmem:[%s258 + $0x10f8] sm:$0xff] %v2650
        %4023 = vst [vmem:[%s258 + $0x1100] sm:$0xff] %v2652
        %4024 = vst [vmem:[%s258 + $0x1108] sm:$0xff] %v2654
        %4025 = vst [vmem:[%s258 + $0x1110] sm:$0xff] %v2656
        %4026 = vst [vmem:[%s258 + $0x1118] sm:$0xff] %v2658
        %4027 = vst [vmem:[%s258 + $0x1120] sm:$0xff] %v2660
        %4028 = vst [vmem:[%s258 + $0x1128] sm:$0xff] %v2662
        %4029 = vst [vmem:[%s258 + $0x1130] sm:$0xff] %v2664
        %4030 = vst [vmem:[%s258 + $0x1138] sm:$0xff] %v2666
        %4031 = vst [vmem:[%s258 + $0x1140] sm:$0xff] %v2668
        %4032 = vst [vmem:[%s258 + $0x1148] sm:$0xff] %v2670
        %4033 = vst [vmem:[%s258 + $0x1150] sm:$0xff] %v2672
        %4034 = vst [vmem:[%s258 + $0x1158] sm:$0xff] %v2674
        %4035 = vst [vmem:[%s258 + $0x1160] sm:$0x1f] %v2676
        %4036 = vst [vmem:[%s258 + $0x1168] sm:$0x1f] %v2678
        %4037 = vst [vmem:[%s258 + $0x1170] sm:$0x1f] %v2680
        %4038 = vst [vmem:[%s258 + $0x1178] sm:$0x1f] %v2682
        %4039 = vst [vmem:[%s258 + $0x11c0] sm:$0xfe] %v2683
        %4040 = vst [vmem:[%s258 + $0x11c8] sm:$0xfe] %v2684
        %4041 = vst [vmem:[%s258 + $0x11d0] sm:$0xfe] %v2685
        %4042 = vst [vmem:[%s258 + $0x11d8] sm:$0xfe] %v2686
        %4043 = vst [vmem:[%s258 + $0x11e0] sm:$0xff] %v2688
        %4044 = vst [vmem:[%s258 + $0x11e8] sm:$0xff] %v2690
        %4045 = vst [vmem:[%s258 + $0x11f0] sm:$0xff] %v2692
        %4046 = vst [vmem:[%s258 + $0x11f8] sm:$0xff] %v2694
        %4047 = vst [vmem:[%s258 + $0x1200] sm:$0xff] %v2696
        %4048 = vst [vmem:[%s258 + $0x1208] sm:$0xff] %v2698
        %4049 = vst [vmem:[%s258 + $0x1210] sm:$0xff] %v2700
        %4050 = vst [vmem:[%s258 + $0x1218] sm:$0xff] %v2702
        %4051 = vst [vmem:[%s258 + $0x1220] sm:$0xff] %v2704
        %4052 = vst [vmem:[%s258 + $0x1228] sm:$0xff] %v2706
        %4053 = vst [vmem:[%s258 + $0x1230] sm:$0xff] %v2708
        %4054 = vst [vmem:[%s258 + $0x1238] sm:$0xff] %v2710
        %4055 = vst [vmem:[%s258 + $0x1240] sm:$0xff] %v2712
        %4056 = vst [vmem:[%s258 + $0x1248] sm:$0xff] %v2714
        %4057 = vst [vmem:[%s258 + $0x1250] sm:$0xff] %v2716
        %4058 = vst [vmem:[%s258 + $0x1258] sm:$0xff] %v2718
        %4059 = vst [vmem:[%s258 + $0x1260] sm:$0xff] %v2720
        %4060 = vst [vmem:[%s258 + $0x1268] sm:$0xff] %v2722
        %4061 = vst [vmem:[%s258 + $0x1270] sm:$0xff] %v2724
        %4062 = vst [vmem:[%s258 + $0x1278] sm:$0xff] %v2726
        %4063 = vst [vmem:[%s258 + $0x1280] sm:$0xff] %v2728
        %4064 = vst [vmem:[%s258 + $0x1288] sm:$0xff] %v2730
        %4065 = vst [vmem:[%s258 + $0x1290] sm:$0xff] %v2732
        %4066 = vst [vmem:[%s258 + $0x1298] sm:$0xff] %v2734
        %4067 = vst [vmem:[%s258 + $0x12a0] sm:$0x1f] %v2736
        %4068 = vst [vmem:[%s258 + $0x12a8] sm:$0x1f] %v2738
        %4069 = vst [vmem:[%s258 + $0x12b0] sm:$0x1f] %v2740
        %4070 = vst [vmem:[%s258 + $0x12b8] sm:$0x1f] %v2742
        %4071 = vst [vmem:[%s258 + $0x1300] sm:$0xfe] %v2743
        %4072 = vst [vmem:[%s258 + $0x1308] sm:$0xfe] %v2744
        %4073 = vst [vmem:[%s258 + $0x1310] sm:$0xfe] %v2745
        %4074 = vst [vmem:[%s258 + $0x1318] sm:$0xfe] %v2746
        %4075 = vst [vmem:[%s258 + $0x1320] sm:$0xff] %v2748
        %4076 = vst [vmem:[%s258 + $0x1328] sm:$0xff] %v2750
        %4077 = vst [vmem:[%s258 + $0x1330] sm:$0xff] %v2752
        %4078 = vst [vmem:[%s258 + $0x1338] sm:$0xff] %v2754
        %4079 = vst [vmem:[%s258 + $0x1340] sm:$0xff] %v2756
        %4080 = vst [vmem:[%s258 + $0x1348] sm:$0xff] %v2758
        %4081 = vst [vmem:[%s258 + $0x1350] sm:$0xff] %v2760
        %4082 = vst [vmem:[%s258 + $0x1358] sm:$0xff] %v2762
        %4083 = vst [vmem:[%s258 + $0x1360] sm:$0xff] %v2764
        %4084 = vst [vmem:[%s258 + $0x1368] sm:$0xff] %v2766
        %4085 = vst [vmem:[%s258 + $0x1370] sm:$0xff] %v2768
        %4086 = vst [vmem:[%s258 + $0x1378] sm:$0xff] %v2770
        %4087 = vst [vmem:[%s258 + $0x1380] sm:$0xff] %v2772
        %4088 = vst [vmem:[%s258 + $0x1388] sm:$0xff] %v2774
        %4089 = vst [vmem:[%s258 + $0x1390] sm:$0xff] %v2776
        %4090 = vst [vmem:[%s258 + $0x1398] sm:$0xff] %v2778
        %4091 = vst [vmem:[%s258 + $0x13a0] sm:$0xff] %v2780
        %4092 = vst [vmem:[%s258 + $0x13a8] sm:$0xff] %v2782
        %4093 = vst [vmem:[%s258 + $0x13b0] sm:$0xff] %v2784
        %4094 = vst [vmem:[%s258 + $0x13b8] sm:$0xff] %v2786
        %4095 = vst [vmem:[%s258 + $0x13c0] sm:$0xff] %v2788
        %4096 = vst [vmem:[%s258 + $0x13c8] sm:$0xff] %v2790
        %4097 = vst [vmem:[%s258 + $0x13d0] sm:$0xff] %v2792
        %4098 = vst [vmem:[%s258 + $0x13d8] sm:$0xff] %v2794
        %4099 = vst [vmem:[%s258 + $0x13e0] sm:$0x1f] %v2796
        %4100 = vst [vmem:[%s258 + $0x13e8] sm:$0x1f] %v2798
        %4101 = vst [vmem:[%s258 + $0x13f0] sm:$0x1f] %v2800
        %4102 = vst [vmem:[%s258 + $0x13f8] sm:$0x1f] %v2802
        %4103 = vst [vmem:[%s258 + $0x1440] sm:$0xfe] %v2803
        %4104 = vst [vmem:[%s258 + $0x1448] sm:$0xfe] %v2804
        %4105 = vst [vmem:[%s258 + $0x1450] sm:$0xfe] %v2805
        %4106 = vst [vmem:[%s258 + $0x1458] sm:$0xfe] %v2806
        %4107 = vst [vmem:[%s258 + $0x1460] sm:$0xff] %v2808
        %4108 = vst [vmem:[%s258 + $0x1468] sm:$0xff] %v2810
        %4109 = vst [vmem:[%s258 + $0x1470] sm:$0xff] %v2812
        %4110 = vst [vmem:[%s258 + $0x1478] sm:$0xff] %v2814
        %4111 = vst [vmem:[%s258 + $0x1480] sm:$0xff] %v2816
        %4112 = vst [vmem:[%s258 + $0x1488] sm:$0xff] %v2818
        %4113 = vst [vmem:[%s258 + $0x1490] sm:$0xff] %v2820
        %4114 = vst [vmem:[%s258 + $0x1498] sm:$0xff] %v2822
        %4115 = vst [vmem:[%s258 + $0x14a0] sm:$0xff] %v2824
        %4116 = vst [vmem:[%s258 + $0x14a8] sm:$0xff] %v2826
        %4117 = vst [vmem:[%s258 + $0x14b0] sm:$0xff] %v2828
        %4118 = vst [vmem:[%s258 + $0x14b8] sm:$0xff] %v2830
        %4119 = vst [vmem:[%s258 + $0x14c0] sm:$0xff] %v2832
        %4120 = vst [vmem:[%s258 + $0x14c8] sm:$0xff] %v2834
        %4121 = vst [vmem:[%s258 + $0x14d0] sm:$0xff] %v2836
        %4122 = vst [vmem:[%s258 + $0x14d8] sm:$0xff] %v2838
        %4123 = vst [vmem:[%s258 + $0x14e0] sm:$0xff] %v2840
        %4124 = vst [vmem:[%s258 + $0x14e8] sm:$0xff] %v2842
        %4125 = vst [vmem:[%s258 + $0x14f0] sm:$0xff] %v2844
        %4126 = vst [vmem:[%s258 + $0x14f8] sm:$0xff] %v2846
        %4127 = vst [vmem:[%s258 + $0x1500] sm:$0xff] %v2848
        %4128 = vst [vmem:[%s258 + $0x1508] sm:$0xff] %v2850
        %4129 = vst [vmem:[%s258 + $0x1510] sm:$0xff] %v2852
        %4130 = vst [vmem:[%s258 + $0x1518] sm:$0xff] %v2854
        %4131 = vst [vmem:[%s258 + $0x1520] sm:$0x1f] %v2856
        %4132 = vst [vmem:[%s258 + $0x1528] sm:$0x1f] %v2858
        %4133 = vst [vmem:[%s258 + $0x1530] sm:$0x1f] %v2860
        %4134 = vst [vmem:[%s258 + $0x1538] sm:$0x1f] %v2862
        %4135 = vst [vmem:[%s258 + $0x1580] sm:$0xfe] %v2863
        %4136 = vst [vmem:[%s258 + $0x1588] sm:$0xfe] %v2864
        %4137 = vst [vmem:[%s258 + $0x1590] sm:$0xfe] %v2865
        %4138 = vst [vmem:[%s258 + $0x1598] sm:$0xfe] %v2866
        %4139 = vst [vmem:[%s258 + $0x15a0] sm:$0xff] %v2868
        %4140 = vst [vmem:[%s258 + $0x15a8] sm:$0xff] %v2870
        %4141 = vst [vmem:[%s258 + $0x15b0] sm:$0xff] %v2872
        %4142 = vst [vmem:[%s258 + $0x15b8] sm:$0xff] %v2874
        %4143 = vst [vmem:[%s258 + $0x15c0] sm:$0xff] %v2876
        %4144 = vst [vmem:[%s258 + $0x15c8] sm:$0xff] %v2878
        %4145 = vst [vmem:[%s258 + $0x15d0] sm:$0xff] %v2880
        %4146 = vst [vmem:[%s258 + $0x15d8] sm:$0xff] %v2882
        %4147 = vst [vmem:[%s258 + $0x15e0] sm:$0xff] %v2884
        %4148 = vst [vmem:[%s258 + $0x15e8] sm:$0xff] %v2886
        %4149 = vst [vmem:[%s258 + $0x15f0] sm:$0xff] %v2888
        %4150 = vst [vmem:[%s258 + $0x15f8] sm:$0xff] %v2890
        %4151 = vst [vmem:[%s258 + $0x1600] sm:$0xff] %v2892
        %4152 = vst [vmem:[%s258 + $0x1608] sm:$0xff] %v2894
        %4153 = vst [vmem:[%s258 + $0x1610] sm:$0xff] %v2896
        %4154 = vst [vmem:[%s258 + $0x1618] sm:$0xff] %v2898
        %4155 = vst [vmem:[%s258 + $0x1620] sm:$0xff] %v2900
        %4156 = vst [vmem:[%s258 + $0x1628] sm:$0xff] %v2902
        %4157 = vst [vmem:[%s258 + $0x1630] sm:$0xff] %v2904
        %4158 = vst [vmem:[%s258 + $0x1638] sm:$0xff] %v2906
        %4159 = vst [vmem:[%s258 + $0x1640] sm:$0xff] %v2908
        %4160 = vst [vmem:[%s258 + $0x1648] sm:$0xff] %v2910
        %4161 = vst [vmem:[%s258 + $0x1650] sm:$0xff] %v2912
        %4162 = vst [vmem:[%s258 + $0x1658] sm:$0xff] %v2914
        %4163 = vst [vmem:[%s258 + $0x1660] sm:$0x1f] %v2916
        %4164 = vst [vmem:[%s258 + $0x1668] sm:$0x1f] %v2918
        %4165 = vst [vmem:[%s258 + $0x1670] sm:$0x1f] %v2920
        %4166 = vst [vmem:[%s258 + $0x1678] sm:$0x1f] %v2922
        %4167 = vst [vmem:[%s258 + $0x16c0] sm:$0xfe] %v2923
        %4168 = vst [vmem:[%s258 + $0x16c8] sm:$0xfe] %v2924
        %4169 = vst [vmem:[%s258 + $0x16d0] sm:$0xfe] %v2925
        %4170 = vst [vmem:[%s258 + $0x16d8] sm:$0xfe] %v2926
        %4171 = vst [vmem:[%s258 + $0x16e0] sm:$0xff] %v2928
        %4172 = vst [vmem:[%s258 + $0x16e8] sm:$0xff] %v2930
        %4173 = vst [vmem:[%s258 + $0x16f0] sm:$0xff] %v2932
        %4174 = vst [vmem:[%s258 + $0x16f8] sm:$0xff] %v2934
        %4175 = vst [vmem:[%s258 + $0x1700] sm:$0xff] %v2936
        %4176 = vst [vmem:[%s258 + $0x1708] sm:$0xff] %v2938
        %4177 = vst [vmem:[%s258 + $0x1710] sm:$0xff] %v2940
        %4178 = vst [vmem:[%s258 + $0x1718] sm:$0xff] %v2942
        %4179 = vst [vmem:[%s258 + $0x1720] sm:$0xff] %v2944
        %4180 = vst [vmem:[%s258 + $0x1728] sm:$0xff] %v2946
        %4181 = vst [vmem:[%s258 + $0x1730] sm:$0xff] %v2948
        %4182 = vst [vmem:[%s258 + $0x1738] sm:$0xff] %v2950
        %4183 = vst [vmem:[%s258 + $0x1740] sm:$0xff] %v2952
        %4184 = vst [vmem:[%s258 + $0x1748] sm:$0xff] %v2954
        %4185 = vst [vmem:[%s258 + $0x1750] sm:$0xff] %v2956
        %4186 = vst [vmem:[%s258 + $0x1758] sm:$0xff] %v2958
        %4187 = vst [vmem:[%s258 + $0x1760] sm:$0xff] %v2960
        %4188 = vst [vmem:[%s258 + $0x1768] sm:$0xff] %v2962
        %4189 = vst [vmem:[%s258 + $0x1770] sm:$0xff] %v2964
        %4190 = vst [vmem:[%s258 + $0x1778] sm:$0xff] %v2966
        %4191 = vst [vmem:[%s258 + $0x1780] sm:$0xff] %v2968
        %4192 = vst [vmem:[%s258 + $0x1788] sm:$0xff] %v2970
        %4193 = vst [vmem:[%s258 + $0x1790] sm:$0xff] %v2972
        %4194 = vst [vmem:[%s258 + $0x1798] sm:$0xff] %v2974
        %4195 = vst [vmem:[%s258 + $0x17a0] sm:$0x1f] %v2976
        %4196 = vst [vmem:[%s258 + $0x17a8] sm:$0x1f] %v2978
        %4197 = vst [vmem:[%s258 + $0x17b0] sm:$0x1f] %v2980
        %4198 = vst [vmem:[%s258 + $0x17b8] sm:$0x1f] %v2982
        %s4199 = sand.u32 %s102, 1
        %s4200 = scalar_lea.sflag [#allocation4], %s4199
        %s4201 = sand.u32 %s102, 1
        %s4202 = smul.addr %s4201, 6080
        %s4203 = scalar_lea.vmem [#allocation8], %s4202
        // Predicated region
        $region45: #{tpu_custom_call.1} parent=31 // pred_check
          %p4204 = pneg %p112
        $region46: #{tpu_custom_call.1} parent=31 // pred_check_branch
          %4206 = sbr.rel (%p4204) target = $region48
        $region47: #{tpu_custom_call.1} parent=31 // pred_region
          %s4207 = smul.u32 19, %s21
          %s4208 = ssub.s32 37, %s4207
          %p4209 = scmp.lt.s32.totalorder %s4208, 19
          %s4210 = scalar_select %p4209, %s4208, 19
          %s4211 = smul.u32 128, %s4210
          %s4212 = smul.u32 %s4211, 10
          %s4213 = smul.u32 %s4212, 4
          %s4215 = ssub.s32 97280, %s4213
          %4216 = vsyncadd %s4200, %s4215
          %p4217 = scmp.ne.s32.totalorder 0, %s4213
          %s4218 = smul.addr %s4207, 40
          %s4219 = smul.addr %s4218, 128
          %s4220 = scalar_lea.hbm %s3, %s4219
          %s4221 = smul.u32 %s4210, 10
          %s4222 = smul.u32 32, %s4221
          %s4223 = sshll.u32 %s4203, 4
          %s4224 = int_to_ptr.vmem [resolvable:$true] %s4223
          %s4225 = sshll.u32 %s4222, 4
          %4229 = dma.vmem_to_hbm [thread:$0]  (%p4217), %s4224, %s4225, %s4220, %s4200, 512, 512, 32
        $region48: #{tpu_custom_call.1} parent=31 // pred_fallthru
          _
      $region32: #{tpu_custom_call.1} parent=5 // pred_fallthru
        _
      %p4230 = scmp.le.s32.totalorder 2, %s16
      // Predicated region
      $region49: #{tpu_custom_call.1} parent=5 // pred_check
        %p4231 = pneg %p4230
      $region50: #{tpu_custom_call.1} parent=5 // pred_check_branch
        %4233 = sbr.rel (%p4231) target = $region52
      $region51: #{tpu_custom_call.1} parent=5 // pred_region
        %s4234 = ssub.s32 %s16, 2
        // Predicated region
        $region53: #{tpu_custom_call.1} parent=51 // pred_check
          %p4235 = pneg %p118
        $region54: #{tpu_custom_call.1} parent=51 // pred_check_branch
          %4237 = sbr.rel (%p4235) target = $region56
        $region55: #{tpu_custom_call.1} parent=51 // pred_region
          %s4238 = sand.u32 %s103, 1
          %s4239 = scalar_lea.sflag [#allocation4], %s4238
          %s4240 = sand.u32 %s103, 1
          %s4241 = smul.addr %s4240, 6080
          %s4242 = scalar_lea.vmem [#allocation8], %s4241
          %4243 = dma.done %s4239, 97280
        $region56: #{tpu_custom_call.1} parent=51 // pred_fallthru
          _
      $region52: #{tpu_custom_call.1} parent=5 // pred_fallthru
        _
    $region6: #{tpu_custom_call.1} parent=1 // loop_footer
      %s20 = sadd.s32 1, %s16
    $region7: #{tpu_custom_call.1} parent=1 // loop_footer_branch
      %15 = sbr.rel target = $region3
    $region8: #{tpu_custom_call.1} parent=1 // loop_exit
      _
    %4244 = vsyncpa [#allocation3], 1
    %s4245 = scalar_lea.sflag [#allocation3], 1
    %4246 = vsyncpa %s4245, 1
    %4247 = vsyncpa [#allocation6], 1
    %4248 = vsyncpa [#allocation4], 1
    %s4249 = scalar_lea.sflag [#allocation4], 1
    %4250 = vsyncpa %s4249, 1

</llo_original>
